<compile_context>
chip_gen: v7x
topology: tpu7x:2x2x1
jax: 0.10.0
libtpu: 0.0.40
codegen_flags: <defaults>
</compile_context>

<pallas_src>
import functools

import jax
import jax.numpy as jnp
from jax import lax
from jax.experimental import pallas as pl
from jax.experimental.pallas import tpu as pltpu


NEG_INF = -1e30


# ----------------------------------------------------------------------------
# In-kernel helper: one MultiHeadGATLayer (merge='cat'), all heads fused
# ----------------------------------------------------------------------------
def _gat_layer(h, bias, wp_aug, num_heads, d_out, out_slope,
               alpha_ref, zbd_ref, bd_mask_ref):
    n = h.shape[0]
    hd = num_heads * d_out

    # ONE augmented projection matmul: [z | s_dst | s_src] = h @ [Wp | Wa_dst | Wa_src]
    zz = jnp.dot(h, wp_aug, preferred_element_type=jnp.float32)    # (N, H*Dout + 2H)
    z = zz[:, :hd]                                                 # (N, H*Dout)
    s_dst = zz[:, hd:hd + num_heads]                               # (N, H)  dst scores
    # src scores need the node index on lanes: tiny (N,2H)->(2H,N) XLU transpose
    scores_t = zz[:, hd:hd + 2 * num_heads].T                      # (2H, N); rows [H:) = src

    single_head = num_heads == 1
    out = None
    for hh in range(num_heads):                                    # H <= 4, static unroll
        e = s_dst[:, hh:hh + 1] + scores_t[num_heads + hh:num_heads + hh + 1, :]  # (N, N)
        e = jnp.where(e > 0, e, 0.01 * e)                          # F.leaky_relu (0.01)
        e = e + bias                                               # additive edge mask
        e = e - jnp.max(e, axis=-1, keepdims=True)
        p = jnp.exp(e)                                             # masked -> exactly 0
        # NOTE: relies on every dst node having >=1 in-edge (self-loops in driver)
        denom = jnp.sum(p, axis=-1, keepdims=True)
        alpha = p * pl.reciprocal(denom, approx=True)              # EUP, not VPU divide
        if single_head:
            out = jnp.dot(alpha, z, preferred_element_type=jnp.float32)
        else:
            alpha_ref[:, hh * n:(hh + 1) * n] = alpha              # retire this head's vregs

    if not single_head:
        # Block-diagonal z (row block hh carries head hh's columns), built with a
        # precomputed 0/1 mask: no per-head lane-shifted stores, no zero-init.
        zbd_ref[...] = jnp.concatenate([z] * num_heads, axis=0) * bd_mask_ref[...]
        # ONE wide aggregation matmul for all heads: (N, H*N) @ (H*N, H*Dout)
        out = jnp.dot(alpha_ref[...], zbd_ref[...], preferred_element_type=jnp.float32)

    if out_slope is not None:                                      # inter-layer LeakyReLU(0.1)
        out = jnp.where(out > 0, out, out_slope * out)
    return out


# ----------------------------------------------------------------------------
# Single fused kernel: layer1 -> LeakyReLU(0.1) -> layer2 -> LeakyReLU(0.1) -> layer3
# ----------------------------------------------------------------------------
def gat_fused_kernel(h_ref, bias_ref, bd_mask_ref,
                     wp1_ref, wp2_ref, wp3_ref,
                     out_ref, alpha_ref, zbd_ref, *, dims):
    bias = bias_ref[...]
    (h1, d1), (h2, d2), (h3, d3) = dims
    x = h_ref[...]
    x = _gat_layer(x, bias, wp1_ref[...], h1, d1, 0.1, alpha_ref, zbd_ref, bd_mask_ref)
    x = _gat_layer(x, bias, wp2_ref[...], h2, d2, 0.1, alpha_ref, zbd_ref, bd_mask_ref)
    x = _gat_layer(x, bias, wp3_ref[...], h3, d3, None, alpha_ref, zbd_ref, bd_mask_ref)
    out_ref[...] = x


# ----------------------------------------------------------------------------
# Wrapper: fold attention vectors into ONE augmented projection per layer
# ----------------------------------------------------------------------------
def fold_layer_params(W, a_src, a_dst):
    # W: (H, Din, Dout); a_src/a_dst: (H, 1, Dout)
    H, Din, Dout = W.shape
    wp = jnp.transpose(W, (1, 0, 2)).reshape(Din, H * Dout)        # head-major columns
    wa_dst = jnp.einsum("hid,hd->ih", W, a_dst[:, 0, :])           # (Din, H)
    wa_src = jnp.einsum("hid,hd->ih", W, a_src[:, 0, :])           # (Din, H)
    return jnp.concatenate([wp, wa_dst, wa_src], axis=1)           # (Din, H*Dout + 2H)


def make_block_diag_mask(num_heads, n, d_out):
    row_head = jnp.repeat(jnp.arange(num_heads), n)                # (H*N,)
    col_head = jnp.repeat(jnp.arange(num_heads), d_out)            # (H*Dout,)
    return (row_head[:, None] == col_head[None, :]).astype(jnp.float32)


def gat_forward(h, params, adj_in):
    N = h.shape[0]
    # Additive mask bias, computed once and reused by all layers/heads.
    # NOTE: every dst row must have >=1 in-edge (driver adds self-loops); a fully
    # masked row would silently give uniform attention with the exp-underflow trick.
    bias = jnp.where(adj_in > 0, 0.0, NEG_INF).astype(jnp.float32)

    dims = tuple((params[k][0].shape[0], params[k][0].shape[2])
                 for k in ("l1", "l2", "l3"))
    (H1, D1), (H2, D2), (H3, D3) = dims
    # GAT module guarantees layer1/layer2 share (num_heads, hidden_dim) and layer3
    # is single-head; the shared scratch slabs + block-diag mask rely on that.
    assert (H1, D1) == (H2, D2) and H3 == 1, dims

    wp1 = fold_layer_params(*params["l1"])
    wp2 = fold_layer_params(*params["l2"])
    wp3 = fold_layer_params(*params["l3"])
    bd_mask = make_block_diag_mask(H1, N, D1)                      # (H1*N, H1*D1)
    out_dim = H3 * D3

    kernel = functools.partial(gat_fused_kernel, dims=dims)
    # No grid: the whole N=64 problem is VMEM-resident; one launch, zero DMA steps.
    # TODO(synk): for batched graphs / larger N, add a "parallel" grid axis over
    # dst-row blocks (uses both v7x TensorCores) with flash-style tiling sized for
    # v7x's 64 MiB VMEM (deeper pl.Buffered pipelining to recover overlap).
    return pl.pallas_call(
        kernel,
        out_shape=jax.ShapeDtypeStruct((N, out_dim), jnp.float32),
        scratch_shapes=[
            pltpu.VMEM((N, H1 * N), jnp.float32),                  # per-head alpha slab
            pltpu.VMEM((H1 * N, H1 * D1), jnp.float32),            # block-diagonal z
        ],
    )(h, bias, bd_mask, wp1, wp2, wp3)


# ----------------------------------------------------------------------------
# Deterministic parameter init (torch.nn.Linear-style uniform(-1/sqrt(fan_in)))
# ----------------------------------------------------------------------------
def init_layer(key, num_heads, in_dim, out_dim):
    kw, ks, kd = jax.random.split(key, 3)
    bw = 1.0 / jnp.sqrt(in_dim)
    ba = 1.0 / jnp.sqrt(2.0 * out_dim)
    W = jax.random.uniform(kw, (num_heads, in_dim, out_dim), jnp.float32, -bw, bw)
    a_src = jax.random.uniform(ks, (num_heads, 1, out_dim), jnp.float32, -ba, ba)
    a_dst = jax.random.uniform(kd, (num_heads, 1, out_dim), jnp.float32, -ba, ba)
    return (W, a_src, a_dst)


# ----------------------------------------------------------------------------
# Pure-JAX reference (raw, un-folded math) for the correctness check
# ----------------------------------------------------------------------------
def ref_layer(h, W, a_src, a_dst, adj_in, out_slope=None):
    outs = []
    for hh in range(W.shape[0]):
        z = h @ W[hh]
        e = jnp.sum(z * a_dst[hh], axis=-1, keepdims=True) + (z @ a_src[hh].T).T
        e = jnp.where(e > 0, e, 0.01 * e)
        edge = adj_in > 0
        e = jnp.where(edge, e, NEG_INF)
        e = e - jnp.max(e, axis=-1, keepdims=True)
        p = jnp.where(edge, jnp.exp(e), 0.0)
        alpha = p / jnp.sum(p, axis=-1, keepdims=True)
        o = alpha @ z
        if out_slope is not None:
            o = jnp.where(o > 0, o, out_slope * o)
        outs.append(o)
    return jnp.concatenate(outs, axis=1)


def ref_forward(h, params, adj_in):
    h = ref_layer(h, *params["l1"], adj_in, out_slope=0.1)
    h = ref_layer(h, *params["l2"], adj_in, out_slope=0.1)
    h = ref_layer(h, *params["l3"], adj_in, out_slope=None)
    return h


if __name__ == "__main__":
    # small, module-consistent shapes
    N = 64            # number of graph nodes
    IN_DIM = 16
    HIDDEN_DIM = 32
    OUT_DIM = 16
    NUM_HEADS = 4

    root = jax.random.PRNGKey(0)
    k_h, k_adj, k1, k2, k3 = jax.random.split(root, 5)

    # node features
    h = jax.random.normal(k_h, (N, IN_DIM), jnp.float32)

    # deterministic random directed graph + self-loops (every node has an in-edge)
    adj = jax.random.bernoulli(k_adj, 0.2, (N, N)).astype(jnp.float32)
    adj_in = jnp.maximum(adj, jnp.eye(N, dtype=jnp.float32))   # adj_in[dst, src]
    assert bool(jnp.all(adj_in.sum(axis=1) > 0)), "every dst node needs >=1 in-edge"

    params = {
        "l1": init_layer(k1, NUM_HEADS, IN_DIM, HIDDEN_DIM),
        "l2": init_layer(k2, NUM_HEADS, HIDDEN_DIM * NUM_HEADS, HIDDEN_DIM),
        "l3": init_layer(k3, 1, HIDDEN_DIM * NUM_HEADS, OUT_DIM),
    }

    fwd = jax.jit(gat_forward)
    out = jax.block_until_ready(fwd(h, params, adj_in))
    assert out.shape == (N, OUT_DIM), out.shape

    ref = jax.block_until_ready(ref_forward(h, params, adj_in))
    assert jnp.allclose(out, ref, rtol=2e-3, atol=2e-3), float(jnp.max(jnp.abs(out - ref)))

    print("KERNEL_OK")
</pallas_src>

<mosaic_0001>
module attributes {stable_mosaic.version = 11 : i64} {
  func.func @gat_fused_kernel(%arg0: memref<64x16xf32, #tpu.memory_space<vmem>>, %arg1: memref<64x64xf32, #tpu.memory_space<vmem>>, %arg2: memref<256x128xf32, #tpu.memory_space<vmem>>, %arg3: memref<16x136xf32, #tpu.memory_space<vmem>>, %arg4: memref<128x136xf32, #tpu.memory_space<vmem>>, %arg5: memref<128x18xf32, #tpu.memory_space<vmem>>, %arg6: memref<64x16xf32, #tpu.memory_space<vmem>>, %arg7: memref<64x256xf32, #tpu.memory_space<vmem>>, %arg8: memref<256x128xf32, #tpu.memory_space<vmem>>) attributes {dimension_semantics = [], scalar_prefetch = 0 : i64, scratch_operands = 2 : i64, tpu.core_type = #tpu.core_type<tc>} {
    %c0 = arith.constant 0 : index
    %c0_0 = arith.constant 0 : index
    %0 = vector.load %arg1[%c0, %c0_0] : memref<64x64xf32, #tpu.memory_space<vmem>>, vector<64x64xf32>
    %c0_1 = arith.constant 0 : index
    %c0_2 = arith.constant 0 : index
    %1 = vector.load %arg0[%c0_1, %c0_2] : memref<64x16xf32, #tpu.memory_space<vmem>>, vector<64x16xf32>
    %c0_3 = arith.constant 0 : index
    %c0_4 = arith.constant 0 : index
    %2 = vector.load %arg3[%c0_3, %c0_4] : memref<16x136xf32, #tpu.memory_space<vmem>>, vector<16x136xf32>
    %cst = arith.constant dense<0.000000e+00> : vector<64x136xf32>
    %3 = tpu.matmul %1, %2, %cst {dimension_numbers = #tpu.dot_dimension_numbers<[1], [0], [0], [1], [0, 0, 1, 1], [], []>} : vector<64x16xf32>, vector<16x136xf32>, vector<64x136xf32> -> vector<64x136xf32>
    %4 = vector.extract_strided_slice %3 {offsets = [0, 0], sizes = [64, 128], strides = [1, 1]} : vector<64x136xf32> to vector<64x128xf32>
    %5 = vector.extract_strided_slice %3 {offsets = [0, 128], sizes = [64, 4], strides = [1, 1]} : vector<64x136xf32> to vector<64x4xf32>
    %6 = vector.extract_strided_slice %3 {offsets = [0, 128], sizes = [64, 8], strides = [1, 1]} : vector<64x136xf32> to vector<64x8xf32>
    %7 = tpu.transpose %6, [1, 0] : vector<64x8xf32> -> vector<8x64xf32>
    %8 = vector.extract_strided_slice %5 {offsets = [0, 0], sizes = [64, 1], strides = [1, 1]} : vector<64x4xf32> to vector<64x1xf32>
    %9 = vector.extract_strided_slice %7 {offsets = [4, 0], sizes = [1, 64], strides = [1, 1]} : vector<8x64xf32> to vector<1x64xf32>
    %10 = vector.broadcast %8 : vector<64x1xf32> to vector<64x64xf32>
    %11 = vector.broadcast %9 : vector<1x64xf32> to vector<64x64xf32>
    %12 = arith.addf %10, %11 : vector<64x64xf32>
    %cst_5 = arith.constant 0.000000e+00 : f32
    %13 = vector.broadcast %cst_5 : f32 to vector<64x64xf32>
    %14 = arith.cmpf ogt, %12, %13 : vector<64x64xf32>
    %cst_6 = arith.constant 0.00999999977 : f32
    %15 = vector.broadcast %cst_6 : f32 to vector<64x64xf32>
    %16 = arith.mulf %15, %12 : vector<64x64xf32>
    %17 = arith.select %14, %12, %16 : vector<64x64xi1>, vector<64x64xf32>
    %18 = arith.addf %17, %0 : vector<64x64xf32>
    %cst_7 = arith.constant dense<0xFF800000> : vector<64xf32>
    %19 = vector.multi_reduction <maximumf>, %18, %cst_7 [1] : vector<64x64xf32> to vector<64xf32>
    %20 = vector.shape_cast %19 : vector<64xf32> to vector<64x1xf32>
    %21 = vector.broadcast %20 : vector<64x1xf32> to vector<64x64xf32>
    %22 = arith.subf %18, %21 : vector<64x64xf32>
    %23 = math.exp %22 : vector<64x64xf32>
    %cst_8 = arith.constant dense<0.000000e+00> : vector<64xf32>
    %24 = vector.multi_reduction <add>, %23, %cst_8 [1] : vector<64x64xf32> to vector<64xf32>
    %25 = vector.shape_cast %24 : vector<64xf32> to vector<64x1xf32>
    %26 = tpu.reciprocal %25 {approx = true} : vector<64x1xf32> -> vector<64x1xf32>
    %27 = vector.broadcast %26 : vector<64x1xf32> to vector<64x64xf32>
    %28 = arith.mulf %23, %27 : vector<64x64xf32>
    %c0_9 = arith.constant 0 : index
    %c0_10 = arith.constant 0 : index
    %29 = vector.load %arg7[%c0_9, %c0_10] : memref<64x256xf32, #tpu.memory_space<vmem>>, vector<64x64xf32>
    tpu.vector_store %arg7[%c0_9, %c0_10], %28 {strides = array<i32>} : memref<64x256xf32, #tpu.memory_space<vmem>>, vector<64x64xf32>,
    %30 = vector.extract_strided_slice %5 {offsets = [0, 1], sizes = [64, 1], strides = [1, 1]} : vector<64x4xf32> to vector<64x1xf32>
    %31 = vector.extract_strided_slice %7 {offsets = [5, 0], sizes = [1, 64], strides = [1, 1]} : vector<8x64xf32> to vector<1x64xf32>
    %32 = vector.broadcast %30 : vector<64x1xf32> to vector<64x64xf32>
    %33 = vector.broadcast %31 : vector<1x64xf32> to vector<64x64xf32>
    %34 = arith.addf %32, %33 : vector<64x64xf32>
    %cst_11 = arith.constant 0.000000e+00 : f32
    %35 = vector.broadcast %cst_11 : f32 to vector<64x64xf32>
    %36 = arith.cmpf ogt, %34, %35 : vector<64x64xf32>
    %cst_12 = arith.constant 0.00999999977 : f32
    %37 = vector.broadcast %cst_12 : f32 to vector<64x64xf32>
    %38 = arith.mulf %37, %34 : vector<64x64xf32>
    %39 = arith.select %36, %34, %38 : vector<64x64xi1>, vector<64x64xf32>
    %40 = arith.addf %39, %0 : vector<64x64xf32>
    %cst_13 = arith.constant dense<0xFF800000> : vector<64xf32>
    %41 = vector.multi_reduction <maximumf>, %40, %cst_13 [1] : vector<64x64xf32> to vector<64xf32>
    %42 = vector.shape_cast %41 : vector<64xf32> to vector<64x1xf32>
    %43 = vector.broadcast %42 : vector<64x1xf32> to vector<64x64xf32>
    %44 = arith.subf %40, %43 : vector<64x64xf32>
    %45 = math.exp %44 : vector<64x64xf32>
    %cst_14 = arith.constant dense<0.000000e+00> : vector<64xf32>
    %46 = vector.multi_reduction <add>, %45, %cst_14 [1] : vector<64x64xf32> to vector<64xf32>
    %47 = vector.shape_cast %46 : vector<64xf32> to vector<64x1xf32>
    %48 = tpu.reciprocal %47 {approx = true} : vector<64x1xf32> -> vector<64x1xf32>
    %49 = vector.broadcast %48 : vector<64x1xf32> to vector<64x64xf32>
    %50 = arith.mulf %45, %49 : vector<64x64xf32>
    %c0_15 = arith.constant 0 : index
    %c64 = arith.constant 64 : index
    %51 = vector.load %arg7[%c0_15, %c64] : memref<64x256xf32, #tpu.memory_space<vmem>>, vector<64x64xf32>
    tpu.vector_store %arg7[%c0_15, %c64], %50 {strides = array<i32>} : memref<64x256xf32, #tpu.memory_space<vmem>>, vector<64x64xf32>,
    %52 = vector.extract_strided_slice %5 {offsets = [0, 2], sizes = [64, 1], strides = [1, 1]} : vector<64x4xf32> to vector<64x1xf32>
    %53 = vector.extract_strided_slice %7 {offsets = [6, 0], sizes = [1, 64], strides = [1, 1]} : vector<8x64xf32> to vector<1x64xf32>
    %54 = vector.broadcast %52 : vector<64x1xf32> to vector<64x64xf32>
    %55 = vector.broadcast %53 : vector<1x64xf32> to vector<64x64xf32>
    %56 = arith.addf %54, %55 : vector<64x64xf32>
    %cst_16 = arith.constant 0.000000e+00 : f32
    %57 = vector.broadcast %cst_16 : f32 to vector<64x64xf32>
    %58 = arith.cmpf ogt, %56, %57 : vector<64x64xf32>
    %cst_17 = arith.constant 0.00999999977 : f32
    %59 = vector.broadcast %cst_17 : f32 to vector<64x64xf32>
    %60 = arith.mulf %59, %56 : vector<64x64xf32>
    %61 = arith.select %58, %56, %60 : vector<64x64xi1>, vector<64x64xf32>
    %62 = arith.addf %61, %0 : vector<64x64xf32>
    %cst_18 = arith.constant dense<0xFF800000> : vector<64xf32>
    %63 = vector.multi_reduction <maximumf>, %62, %cst_18 [1] : vector<64x64xf32> to vector<64xf32>
    %64 = vector.shape_cast %63 : vector<64xf32> to vector<64x1xf32>
    %65 = vector.broadcast %64 : vector<64x1xf32> to vector<64x64xf32>
    %66 = arith.subf %62, %65 : vector<64x64xf32>
    %67 = math.exp %66 : vector<64x64xf32>
    %cst_19 = arith.constant dense<0.000000e+00> : vector<64xf32>
    %68 = vector.multi_reduction <add>, %67, %cst_19 [1] : vector<64x64xf32> to vector<64xf32>
    %69 = vector.shape_cast %68 : vector<64xf32> to vector<64x1xf32>
    %70 = tpu.reciprocal %69 {approx = true} : vector<64x1xf32> -> vector<64x1xf32>
    %71 = vector.broadcast %70 : vector<64x1xf32> to vector<64x64xf32>
    %72 = arith.mulf %67, %71 : vector<64x64xf32>
    %c0_20 = arith.constant 0 : index
    %c128 = arith.constant 128 : index
    %73 = vector.load %arg7[%c0_20, %c128] : memref<64x256xf32, #tpu.memory_space<vmem>>, vector<64x64xf32>
    tpu.vector_store %arg7[%c0_20, %c128], %72 {strides = array<i32>} : memref<64x256xf32, #tpu.memory_space<vmem>>, vector<64x64xf32>,
    %74 = vector.extract_strided_slice %5 {offsets = [0, 3], sizes = [64, 1], strides = [1, 1]} : vector<64x4xf32> to vector<64x1xf32>
    %75 = vector.extract_strided_slice %7 {offsets = [7, 0], sizes = [1, 64], strides = [1, 1]} : vector<8x64xf32> to vector<1x64xf32>
    %76 = vector.broadcast %74 : vector<64x1xf32> to vector<64x64xf32>
    %77 = vector.broadcast %75 : vector<1x64xf32> to vector<64x64xf32>
    %78 = arith.addf %76, %77 : vector<64x64xf32>
    %cst_21 = arith.constant 0.000000e+00 : f32
    %79 = vector.broadcast %cst_21 : f32 to vector<64x64xf32>
    %80 = arith.cmpf ogt, %78, %79 : vector<64x64xf32>
    %cst_22 = arith.constant 0.00999999977 : f32
    %81 = vector.broadcast %cst_22 : f32 to vector<64x64xf32>
    %82 = arith.mulf %81, %78 : vector<64x64xf32>
    %83 = arith.select %80, %78, %82 : vector<64x64xi1>, vector<64x64xf32>
    %84 = arith.addf %83, %0 : vector<64x64xf32>
    %cst_23 = arith.constant dense<0xFF800000> : vector<64xf32>
    %85 = vector.multi_reduction <maximumf>, %84, %cst_23 [1] : vector<64x64xf32> to vector<64xf32>
    %86 = vector.shape_cast %85 : vector<64xf32> to vector<64x1xf32>
    %87 = vector.broadcast %86 : vector<64x1xf32> to vector<64x64xf32>
    %88 = arith.subf %84, %87 : vector<64x64xf32>
    %89 = math.exp %88 : vector<64x64xf32>
    %cst_24 = arith.constant dense<0.000000e+00> : vector<64xf32>
    %90 = vector.multi_reduction <add>, %89, %cst_24 [1] : vector<64x64xf32> to vector<64xf32>
    %91 = vector.shape_cast %90 : vector<64xf32> to vector<64x1xf32>
    %92 = tpu.reciprocal %91 {approx = true} : vector<64x1xf32> -> vector<64x1xf32>
    %93 = vector.broadcast %92 : vector<64x1xf32> to vector<64x64xf32>
    %94 = arith.mulf %89, %93 : vector<64x64xf32>
    %c0_25 = arith.constant 0 : index
    %c192 = arith.constant 192 : index
    %95 = vector.load %arg7[%c0_25, %c192] : memref<64x256xf32, #tpu.memory_space<vmem>>, vector<64x64xf32>
    tpu.vector_store %arg7[%c0_25, %c192], %94 {strides = array<i32>} : memref<64x256xf32, #tpu.memory_space<vmem>>, vector<64x64xf32>,
    %96 = tpu.concatenate %4, %4, %4, %4 in 0 : vector<64x128xf32>, vector<64x128xf32>, vector<64x128xf32>, vector<64x128xf32> -> vector<256x128xf32>
    %c0_26 = arith.constant 0 : index
    %c0_27 = arith.constant 0 : index
    %97 = vector.load %arg2[%c0_26, %c0_27] : memref<256x128xf32, #tpu.memory_space<vmem>>, vector<256x128xf32>
    %98 = arith.mulf %96, %97 : vector<256x128xf32>
    %c0_28 = arith.constant 0 : index
    %c0_29 = arith.constant 0 : index
    %99 = vector.load %arg8[%c0_28, %c0_29] : memref<256x128xf32, #tpu.memory_space<vmem>>, vector<256x128xf32>
    tpu.vector_store %arg8[%c0_28, %c0_29], %98 {strides = array<i32>} : memref<256x128xf32, #tpu.memory_space<vmem>>, vector<256x128xf32>,
    %c0_30 = arith.constant 0 : index
    %c0_31 = arith.constant 0 : index
    %100 = vector.load %arg7[%c0_30, %c0_31] : memref<64x256xf32, #tpu.memory_space<vmem>>, vector<64x256xf32>
    %c0_32 = arith.constant 0 : index
    %c0_33 = arith.constant 0 : index
    %101 = vector.load %arg8[%c0_32, %c0_33] : memref<256x128xf32, #tpu.memory_space<vmem>>, vector<256x128xf32>
    %cst_34 = arith.constant dense<0.000000e+00> : vector<64x128xf32>
    %102 = tpu.matmul %100, %101, %cst_34 {dimension_numbers = #tpu.dot_dimension_numbers<[1], [0], [0], [1], [0, 0, 1, 1], [], []>} : vector<64x256xf32>, vector<256x128xf32>, vector<64x128xf32> -> vector<64x128xf32>
    %cst_35 = arith.constant 0.000000e+00 : f32
    %103 = vector.broadcast %cst_35 : f32 to vector<64x128xf32>
    %104 = arith.cmpf ogt, %102, %103 : vector<64x128xf32>
    %cst_36 = arith.constant 1.000000e-01 : f32
    %105 = vector.broadcast %cst_36 : f32 to vector<64x128xf32>
    %106 = arith.mulf %105, %102 : vector<64x128xf32>
    %107 = arith.select %104, %102, %106 : vector<64x128xi1>, vector<64x128xf32>
    %c0_37 = arith.constant 0 : index
    %c0_38 = arith.constant 0 : index
    %108 = vector.load %arg4[%c0_37, %c0_38] : memref<128x136xf32, #tpu.memory_space<vmem>>, vector<128x136xf32>
    %cst_39 = arith.constant dense<0.000000e+00> : vector<64x136xf32>
    %109 = tpu.matmul %107, %108, %cst_39 {dimension_numbers = #tpu.dot_dimension_numbers<[1], [0], [0], [1], [0, 0, 1, 1], [], []>} : vector<64x128xf32>, vector<128x136xf32>, vector<64x136xf32> -> vector<64x136xf32>
    %110 = vector.extract_strided_slice %109 {offsets = [0, 0], sizes = [64, 128], strides = [1, 1]} : vector<64x136xf32> to vector<64x128xf32>
    %111 = vector.extract_strided_slice %109 {offsets = [0, 128], sizes = [64, 4], strides = [1, 1]} : vector<64x136xf32> to vector<64x4xf32>
    %112 = vector.extract_strided_slice %109 {offsets = [0, 128], sizes = [64, 8], strides = [1, 1]} : vector<64x136xf32> to vector<64x8xf32>
    %113 = tpu.transpose %112, [1, 0] : vector<64x8xf32> -> vector<8x64xf32>
    %114 = vector.extract_strided_slice %111 {offsets = [0, 0], sizes = [64, 1], strides = [1, 1]} : vector<64x4xf32> to vector<64x1xf32>
    %115 = vector.extract_strided_slice %113 {offsets = [4, 0], sizes = [1, 64], strides = [1, 1]} : vector<8x64xf32> to vector<1x64xf32>
    %116 = vector.broadcast %114 : vector<64x1xf32> to vector<64x64xf32>
    %117 = vector.broadcast %115 : vector<1x64xf32> to vector<64x64xf32>
    %118 = arith.addf %116, %117 : vector<64x64xf32>
    %cst_40 = arith.constant 0.000000e+00 : f32
    %119 = vector.broadcast %cst_40 : f32 to vector<64x64xf32>
    %120 = arith.cmpf ogt, %118, %119 : vector<64x64xf32>
    %cst_41 = arith.constant 0.00999999977 : f32
    %121 = vector.broadcast %cst_41 : f32 to vector<64x64xf32>
    %122 = arith.mulf %121, %118 : vector<64x64xf32>
    %123 = arith.select %120, %118, %122 : vector<64x64xi1>, vector<64x64xf32>
    %124 = arith.addf %123, %0 : vector<64x64xf32>
    %cst_42 = arith.constant dense<0xFF800000> : vector<64xf32>
    %125 = vector.multi_reduction <maximumf>, %124, %cst_42 [1] : vector<64x64xf32> to vector<64xf32>
    %126 = vector.shape_cast %125 : vector<64xf32> to vector<64x1xf32>
    %127 = vector.broadcast %126 : vector<64x1xf32> to vector<64x64xf32>
    %128 = arith.subf %124, %127 : vector<64x64xf32>
    %129 = math.exp %128 : vector<64x64xf32>
    %cst_43 = arith.constant dense<0.000000e+00> : vector<64xf32>
    %130 = vector.multi_reduction <add>, %129, %cst_43 [1] : vector<64x64xf32> to vector<64xf32>
    %131 = vector.shape_cast %130 : vector<64xf32> to vector<64x1xf32>
    %132 = tpu.reciprocal %131 {approx = true} : vector<64x1xf32> -> vector<64x1xf32>
    %133 = vector.broadcast %132 : vector<64x1xf32> to vector<64x64xf32>
    %134 = arith.mulf %129, %133 : vector<64x64xf32>
    %c0_44 = arith.constant 0 : index
    %c0_45 = arith.constant 0 : index
    %135 = vector.load %arg7[%c0_44, %c0_45] : memref<64x256xf32, #tpu.memory_space<vmem>>, vector<64x64xf32>
    tpu.vector_store %arg7[%c0_44, %c0_45], %134 {strides = array<i32>} : memref<64x256xf32, #tpu.memory_space<vmem>>, vector<64x64xf32>,
    %136 = vector.extract_strided_slice %111 {offsets = [0, 1], sizes = [64, 1], strides = [1, 1]} : vector<64x4xf32> to vector<64x1xf32>
    %137 = vector.extract_strided_slice %113 {offsets = [5, 0], sizes = [1, 64], strides = [1, 1]} : vector<8x64xf32> to vector<1x64xf32>
    %138 = vector.broadcast %136 : vector<64x1xf32> to vector<64x64xf32>
    %139 = vector.broadcast %137 : vector<1x64xf32> to vector<64x64xf32>
    %140 = arith.addf %138, %139 : vector<64x64xf32>
    %cst_46 = arith.constant 0.000000e+00 : f32
    %141 = vector.broadcast %cst_46 : f32 to vector<64x64xf32>
    %142 = arith.cmpf ogt, %140, %141 : vector<64x64xf32>
    %cst_47 = arith.constant 0.00999999977 : f32
    %143 = vector.broadcast %cst_47 : f32 to vector<64x64xf32>
    %144 = arith.mulf %143, %140 : vector<64x64xf32>
    %145 = arith.select %142, %140, %144 : vector<64x64xi1>, vector<64x64xf32>
    %146 = arith.addf %145, %0 : vector<64x64xf32>
    %cst_48 = arith.constant dense<0xFF800000> : vector<64xf32>
    %147 = vector.multi_reduction <maximumf>, %146, %cst_48 [1] : vector<64x64xf32> to vector<64xf32>
    %148 = vector.shape_cast %147 : vector<64xf32> to vector<64x1xf32>
    %149 = vector.broadcast %148 : vector<64x1xf32> to vector<64x64xf32>
    %150 = arith.subf %146, %149 : vector<64x64xf32>
    %151 = math.exp %150 : vector<64x64xf32>
    %cst_49 = arith.constant dense<0.000000e+00> : vector<64xf32>
    %152 = vector.multi_reduction <add>, %151, %cst_49 [1] : vector<64x64xf32> to vector<64xf32>
    %153 = vector.shape_cast %152 : vector<64xf32> to vector<64x1xf32>
    %154 = tpu.reciprocal %153 {approx = true} : vector<64x1xf32> -> vector<64x1xf32>
    %155 = vector.broadcast %154 : vector<64x1xf32> to vector<64x64xf32>
    %156 = arith.mulf %151, %155 : vector<64x64xf32>
    %c0_50 = arith.constant 0 : index
    %c64_51 = arith.constant 64 : index
    %157 = vector.load %arg7[%c0_50, %c64_51] : memref<64x256xf32, #tpu.memory_space<vmem>>, vector<64x64xf32>
    tpu.vector_store %arg7[%c0_50, %c64_51], %156 {strides = array<i32>} : memref<64x256xf32, #tpu.memory_space<vmem>>, vector<64x64xf32>,
    %158 = vector.extract_strided_slice %111 {offsets = [0, 2], sizes = [64, 1], strides = [1, 1]} : vector<64x4xf32> to vector<64x1xf32>
    %159 = vector.extract_strided_slice %113 {offsets = [6, 0], sizes = [1, 64], strides = [1, 1]} : vector<8x64xf32> to vector<1x64xf32>
    %160 = vector.broadcast %158 : vector<64x1xf32> to vector<64x64xf32>
    %161 = vector.broadcast %159 : vector<1x64xf32> to vector<64x64xf32>
    %162 = arith.addf %160, %161 : vector<64x64xf32>
    %cst_52 = arith.constant 0.000000e+00 : f32
    %163 = vector.broadcast %cst_52 : f32 to vector<64x64xf32>
    %164 = arith.cmpf ogt, %162, %163 : vector<64x64xf32>
    %cst_53 = arith.constant 0.00999999977 : f32
    %165 = vector.broadcast %cst_53 : f32 to vector<64x64xf32>
    %166 = arith.mulf %165, %162 : vector<64x64xf32>
    %167 = arith.select %164, %162, %166 : vector<64x64xi1>, vector<64x64xf32>
    %168 = arith.addf %167, %0 : vector<64x64xf32>
    %cst_54 = arith.constant dense<0xFF800000> : vector<64xf32>
    %169 = vector.multi_reduction <maximumf>, %168, %cst_54 [1] : vector<64x64xf32> to vector<64xf32>
    %170 = vector.shape_cast %169 : vector<64xf32> to vector<64x1xf32>
    %171 = vector.broadcast %170 : vector<64x1xf32> to vector<64x64xf32>
    %172 = arith.subf %168, %171 : vector<64x64xf32>
    %173 = math.exp %172 : vector<64x64xf32>
    %cst_55 = arith.constant dense<0.000000e+00> : vector<64xf32>
    %174 = vector.multi_reduction <add>, %173, %cst_55 [1] : vector<64x64xf32> to vector<64xf32>
    %175 = vector.shape_cast %174 : vector<64xf32> to vector<64x1xf32>
    %176 = tpu.reciprocal %175 {approx = true} : vector<64x1xf32> -> vector<64x1xf32>
    %177 = vector.broadcast %176 : vector<64x1xf32> to vector<64x64xf32>
    %178 = arith.mulf %173, %177 : vector<64x64xf32>
    %c0_56 = arith.constant 0 : index
    %c128_57 = arith.constant 128 : index
    %179 = vector.load %arg7[%c0_56, %c128_57] : memref<64x256xf32, #tpu.memory_space<vmem>>, vector<64x64xf32>
    tpu.vector_store %arg7[%c0_56, %c128_57], %178 {strides = array<i32>} : memref<64x256xf32, #tpu.memory_space<vmem>>, vector<64x64xf32>,
    %180 = vector.extract_strided_slice %111 {offsets = [0, 3], sizes = [64, 1], strides = [1, 1]} : vector<64x4xf32> to vector<64x1xf32>
    %181 = vector.extract_strided_slice %113 {offsets = [7, 0], sizes = [1, 64], strides = [1, 1]} : vector<8x64xf32> to vector<1x64xf32>
    %182 = vector.broadcast %180 : vector<64x1xf32> to vector<64x64xf32>
    %183 = vector.broadcast %181 : vector<1x64xf32> to vector<64x64xf32>
    %184 = arith.addf %182, %183 : vector<64x64xf32>
    %cst_58 = arith.constant 0.000000e+00 : f32
    %185 = vector.broadcast %cst_58 : f32 to vector<64x64xf32>
    %186 = arith.cmpf ogt, %184, %185 : vector<64x64xf32>
    %cst_59 = arith.constant 0.00999999977 : f32
    %187 = vector.broadcast %cst_59 : f32 to vector<64x64xf32>
    %188 = arith.mulf %187, %184 : vector<64x64xf32>
    %189 = arith.select %186, %184, %188 : vector<64x64xi1>, vector<64x64xf32>
    %190 = arith.addf %189, %0 : vector<64x64xf32>
    %cst_60 = arith.constant dense<0xFF800000> : vector<64xf32>
    %191 = vector.multi_reduction <maximumf>, %190, %cst_60 [1] : vector<64x64xf32> to vector<64xf32>
    %192 = vector.shape_cast %191 : vector<64xf32> to vector<64x1xf32>
    %193 = vector.broadcast %192 : vector<64x1xf32> to vector<64x64xf32>
    %194 = arith.subf %190, %193 : vector<64x64xf32>
    %195 = math.exp %194 : vector<64x64xf32>
    %cst_61 = arith.constant dense<0.000000e+00> : vector<64xf32>
    %196 = vector.multi_reduction <add>, %195, %cst_61 [1] : vector<64x64xf32> to vector<64xf32>
    %197 = vector.shape_cast %196 : vector<64xf32> to vector<64x1xf32>
    %198 = tpu.reciprocal %197 {approx = true} : vector<64x1xf32> -> vector<64x1xf32>
    %199 = vector.broadcast %198 : vector<64x1xf32> to vector<64x64xf32>
    %200 = arith.mulf %195, %199 : vector<64x64xf32>
    %c0_62 = arith.constant 0 : index
    %c192_63 = arith.constant 192 : index
    %201 = vector.load %arg7[%c0_62, %c192_63] : memref<64x256xf32, #tpu.memory_space<vmem>>, vector<64x64xf32>
    tpu.vector_store %arg7[%c0_62, %c192_63], %200 {strides = array<i32>} : memref<64x256xf32, #tpu.memory_space<vmem>>, vector<64x64xf32>,
    %202 = tpu.concatenate %110, %110, %110, %110 in 0 : vector<64x128xf32>, vector<64x128xf32>, vector<64x128xf32>, vector<64x128xf32> -> vector<256x128xf32>
    %c0_64 = arith.constant 0 : index
    %c0_65 = arith.constant 0 : index
    %203 = vector.load %arg2[%c0_64, %c0_65] : memref<256x128xf32, #tpu.memory_space<vmem>>, vector<256x128xf32>
    %204 = arith.mulf %202, %203 : vector<256x128xf32>
    %c0_66 = arith.constant 0 : index
    %c0_67 = arith.constant 0 : index
    %205 = vector.load %arg8[%c0_66, %c0_67] : memref<256x128xf32, #tpu.memory_space<vmem>>, vector<256x128xf32>
    tpu.vector_store %arg8[%c0_66, %c0_67], %204 {strides = array<i32>} : memref<256x128xf32, #tpu.memory_space<vmem>>, vector<256x128xf32>,
    %c0_68 = arith.constant 0 : index
    %c0_69 = arith.constant 0 : index
    %206 = vector.load %arg7[%c0_68, %c0_69] : memref<64x256xf32, #tpu.memory_space<vmem>>, vector<64x256xf32>
    %c0_70 = arith.constant 0 : index
    %c0_71 = arith.constant 0 : index
    %207 = vector.load %arg8[%c0_70, %c0_71] : memref<256x128xf32, #tpu.memory_space<vmem>>, vector<256x128xf32>
    %cst_72 = arith.constant dense<0.000000e+00> : vector<64x128xf32>
    %208 = tpu.matmul %206, %207, %cst_72 {dimension_numbers = #tpu.dot_dimension_numbers<[1], [0], [0], [1], [0, 0, 1, 1], [], []>} : vector<64x256xf32>, vector<256x128xf32>, vector<64x128xf32> -> vector<64x128xf32>
    %cst_73 = arith.constant 0.000000e+00 : f32
    %209 = vector.broadcast %cst_73 : f32 to vector<64x128xf32>
    %210 = arith.cmpf ogt, %208, %209 : vector<64x128xf32>
    %cst_74 = arith.constant 1.000000e-01 : f32
    %211 = vector.broadcast %cst_74 : f32 to vector<64x128xf32>
    %212 = arith.mulf %211, %208 : vector<64x128xf32>
    %213 = arith.select %210, %208, %212 : vector<64x128xi1>, vector<64x128xf32>
    %c0_75 = arith.constant 0 : index
    %c0_76 = arith.constant 0 : index
    %214 = vector.load %arg5[%c0_75, %c0_76] : memref<128x18xf32, #tpu.memory_space<vmem>>, vector<128x18xf32>
    %cst_77 = arith.constant dense<0.000000e+00> : vector<64x18xf32>
    %215 = tpu.matmul %213, %214, %cst_77 {dimension_numbers = #tpu.dot_dimension_numbers<[1], [0], [0], [1], [0, 0, 1, 1], [], []>} : vector<64x128xf32>, vector<128x18xf32>, vector<64x18xf32> -> vector<64x18xf32>
    %216 = vector.extract_strided_slice %215 {offsets = [0, 0], sizes = [64, 16], strides = [1, 1]} : vector<64x18xf32> to vector<64x16xf32>
    %217 = vector.extract_strided_slice %215 {offsets = [0, 16], sizes = [64, 1], strides = [1, 1]} : vector<64x18xf32> to vector<64x1xf32>
    %218 = vector.extract_strided_slice %215 {offsets = [0, 16], sizes = [64, 2], strides = [1, 1]} : vector<64x18xf32> to vector<64x2xf32>
    %219 = tpu.transpose %218, [1, 0] : vector<64x2xf32> -> vector<2x64xf32>
    %220 = vector.extract_strided_slice %219 {offsets = [1, 0], sizes = [1, 64], strides = [1, 1]} : vector<2x64xf32> to vector<1x64xf32>
    %221 = vector.broadcast %217 : vector<64x1xf32> to vector<64x64xf32>
    %222 = vector.broadcast %220 : vector<1x64xf32> to vector<64x64xf32>
    %223 = arith.addf %221, %222 : vector<64x64xf32>
    %cst_78 = arith.constant 0.000000e+00 : f32
    %224 = vector.broadcast %cst_78 : f32 to vector<64x64xf32>
    %225 = arith.cmpf ogt, %223, %224 : vector<64x64xf32>
    %cst_79 = arith.constant 0.00999999977 : f32
    %226 = vector.broadcast %cst_79 : f32 to vector<64x64xf32>
    %227 = arith.mulf %226, %223 : vector<64x64xf32>
    %228 = arith.select %225, %223, %227 : vector<64x64xi1>, vector<64x64xf32>
    %229 = arith.addf %228, %0 : vector<64x64xf32>
    %cst_80 = arith.constant dense<0xFF800000> : vector<64xf32>
    %230 = vector.multi_reduction <maximumf>, %229, %cst_80 [1] : vector<64x64xf32> to vector<64xf32>
    %231 = vector.shape_cast %230 : vector<64xf32> to vector<64x1xf32>
    %232 = vector.broadcast %231 : vector<64x1xf32> to vector<64x64xf32>
    %233 = arith.subf %229, %232 : vector<64x64xf32>
    %234 = math.exp %233 : vector<64x64xf32>
    %cst_81 = arith.constant dense<0.000000e+00> : vector<64xf32>
    %235 = vector.multi_reduction <add>, %234, %cst_81 [1] : vector<64x64xf32> to vector<64xf32>
    %236 = vector.shape_cast %235 : vector<64xf32> to vector<64x1xf32>
    %237 = tpu.reciprocal %236 {approx = true} : vector<64x1xf32> -> vector<64x1xf32>
    %238 = vector.broadcast %237 : vector<64x1xf32> to vector<64x64xf32>
    %239 = arith.mulf %234, %238 : vector<64x64xf32>
    %cst_82 = arith.constant dense<0.000000e+00> : vector<64x16xf32>
    %240 = tpu.matmul %239, %216, %cst_82 {dimension_numbers = #tpu.dot_dimension_numbers<[1], [0], [0], [1], [0, 0, 1, 1], [], []>} : vector<64x64xf32>, vector<64x16xf32>, vector<64x16xf32> -> vector<64x16xf32>
    %c0_83 = arith.constant 0 : index
    %c0_84 = arith.constant 0 : index
    %241 = vector.load %arg6[%c0_83, %c0_84] : memref<64x16xf32, #tpu.memory_space<vmem>>, vector<64x16xf32>
    tpu.vector_store %arg6[%c0_83, %c0_84], %240 {strides = array<i32>} : memref<64x16xf32, #tpu.memory_space<vmem>>, vector<64x16xf32>,
    return
  }
}

</mosaic_0001>

<llo_original>
// kernel: eq.8
$region0: #{eq.8}
  %s0 = inlined_call_operand.vmem [shape: s32[4,64], index: 0, kind: input, shape index: {}]
  %s1 = inlined_call_operand.vmem [shape: s32[256], index: 1, kind: output, shape index: {}]
  $region1: #{eq.8} parent=0
    #allocation0 [shape = 'u8[4096]{0}', space=vmem, size = 0x1000, scoped, tag = 'scoped mem for output reshape']
    #allocation1 [shape = 'u8[4096]{0}', space=vmem, size = 0x1000, scoped, tag = 'scoped mem for input reshape']
    %s3 = sshllo.u32 0, 4
    %v4 = vld [vmem:[%s0] sm:%s3]
    %5 = vst [vmem:[#allocation1] sm:%s3] %v4
    %s6 = smov 3
    %v7 = vld [vmem:[#allocation1] ss:$2 sm:%s6]
    %vm8 = vcmask 523264
    %9 = vst.msk [vmem:[#allocation0] sm:$0x3] %vm8, %v7
    %s10 = scalar_lea.vmem [#allocation1], 1
    %s11 = smov 3
    %v12 = vld [vmem:[%s10] ss:$2 sm:%s11]
    %13 = vrot.lane.b32.xlu0 %v12, 64
    %v14 = vpop.permute.xlu0 %13
    %vm15 = vcmask 1048064
    %16 = vst.msk [vmem:[#allocation0] sm:$0x3] %vm15, %v14
    %s18 = sshllo.u32 0, 2
    %v20 = vld [vmem:[#allocation0] sm:%s18]
    %s21 = sshllo.u32 0, 2
    %22 = vst [vmem:[%s1] sm:%s21] %v20

// kernel: eq.11
$region0: #{eq.11}
  %s0 = inlined_call_operand.vmem [shape: s32[4,32], index: 0, kind: input, shape index: {}]
  %s1 = inlined_call_operand.vmem [shape: s32[128], index: 1, kind: output, shape index: {}]
  $region1: #{eq.11} parent=0
    #allocation0 [shape = 'u8[4096]{0}', space=vmem, size = 0x1000, scoped, tag = 'scoped mem for output reshape']
    #allocation1 [shape = 'u8[4096]{0}', space=vmem, size = 0x1000, scoped, tag = 'scoped mem for input reshape']
    %s3 = sshllo.u32 0, 4
    %v4 = vld [vmem:[%s0] sm:%s3]
    %5 = vst [vmem:[#allocation1] sm:%s3] %v4
    %v6 = vld [vmem:[#allocation1] sm:$0x1]
    %vm7 = vcmask 261120
    %8 = vst.msk [vmem:[#allocation0] sm:$0x1] %vm7, %v6
    %s9 = scalar_lea.vmem [#allocation1], 3
    %v10 = vld [vmem:[%s9] sm:$0x1]
    %11 = vrot.lane.b32.xlu0 %v10, 96
    %v12 = vpop.permute.xlu0 %11
    %vm13 = vcmask 1048320
    %14 = vst.msk [vmem:[#allocation0] sm:$0x1] %vm13, %v12
    %s15 = scalar_lea.vmem [#allocation1], 2
    %v16 = vld [vmem:[%s15] sm:$0x1]
    %17 = vrot.lane.b32.xlu0 %v16, 64
    %v18 = vpop.permute.xlu0 %17
    %vm19 = vcmask 785920
    %20 = vst.msk [vmem:[#allocation0] sm:$0x1] %vm19, %v18
    %s21 = scalar_lea.vmem [#allocation1], 1
    %v22 = vld [vmem:[%s21] sm:$0x1]
    %23 = vrot.lane.b32.xlu0 %v22, 32
    %v24 = vpop.permute.xlu0 %23
    %vm25 = vcmask 523520
    %26 = vst.msk [vmem:[#allocation0] sm:$0x1] %vm25, %v24
    %s28 = sshllo.u32 0, 1
    %v30 = vld [vmem:[#allocation0] sm:%s28]
    %s31 = sshllo.u32 0, 1
    %32 = vst [vmem:[%s1] sm:%s31] %v30

// kernel: gat_forward.1
$region0: #{gat_forward.1}
  #allocation0 [shape = 'u32[]', space=smem, size = 0x4, offset = 0x4, fixed_abs, tag = 'smem constant byte address 0x4 - core index']
  #allocation1 [shape = 'u32[144,128]{1,0:T(1,128)}', space=vmem, size = 0x12000, scoped, tag = 'internal scratch']
  #allocation2 [shape = 'f32[64,256]{1,0:T(8,128)}', space=vmem, size = 0x10000, scoped, tag = 'scratch operand']
  #allocation3 [shape = 'f32[256,128]{1,0:T(8,128)}', space=vmem, size = 0x20000, scoped, tag = 'scratch operand']
  %s0 = inlined_call_operand.vmem [shape: f32[64,16], index: 0, kind: input, shape index: {}]
  %s1 = inlined_call_operand.vmem [shape: f32[64,64], index: 1, kind: input, shape index: {}]
  %s2 = inlined_call_operand.vmem [shape: f32[256,128], index: 2, kind: input, shape index: {}]
  %s3 = inlined_call_operand.vmem [shape: f32[16,136], index: 3, kind: input, shape index: {}]
  %s4 = inlined_call_operand.vmem [shape: f32[128,136], index: 4, kind: input, shape index: {}]
  %s5 = inlined_call_operand.vmem [shape: f32[128,18], index: 5, kind: input, shape index: {}]
  %s6 = inlined_call_operand.vmem [shape: f32[64,16], index: 6, kind: output, shape index: {}]
  %s7 = sld [smem:[#allocation0]]
  $region34: #{gat_forward.1} parent=0
    _
  %s9 = ssub.s32 1, %s7
  %s10 = scalar_select 0, %s9, %s7
  // Predicated region
  $region2: #{gat_forward.1} parent=0 // pred_check
    _
  $region3: #{gat_forward.1} parent=0 // pred_check_branch
    %12 = sbr.rel (0) target = $region5
  $region4: #{gat_forward.1} parent=0 // pred_region
    _
  $region5: #{gat_forward.1} parent=0 // pred_fallthru
    _
  // Predicated region
  $region6: #{gat_forward.1} parent=0 // pred_check
    _
  $region7: #{gat_forward.1} parent=0 // pred_check_branch
    %14 = sbr.rel (0) target = $region9
  $region8: #{gat_forward.1} parent=0 // pred_region
    _
  $region9: #{gat_forward.1} parent=0 // pred_fallthru
    _
  // Predicated region
  $region10: #{gat_forward.1} parent=0 // pred_check
    _
  $region11: #{gat_forward.1} parent=0 // pred_check_branch
    %16 = sbr.rel (0) target = $region13
  $region12: #{gat_forward.1} parent=0 // pred_region
    _
  $region13: #{gat_forward.1} parent=0 // pred_fallthru
    _
  // Predicated region
  $region14: #{gat_forward.1} parent=0 // pred_check
    _
  $region15: #{gat_forward.1} parent=0 // pred_check_branch
    %18 = sbr.rel (0) target = $region17
  $region16: #{gat_forward.1} parent=0 // pred_region
    _
  $region17: #{gat_forward.1} parent=0 // pred_fallthru
    _
  // Predicated region
  $region18: #{gat_forward.1} parent=0 // pred_check
    _
  $region19: #{gat_forward.1} parent=0 // pred_check_branch
    %20 = sbr.rel (0) target = $region21
  $region20: #{gat_forward.1} parent=0 // pred_region
    _
  $region21: #{gat_forward.1} parent=0 // pred_fallthru
    _
  // Predicated region
  $region22: #{gat_forward.1} parent=0 // pred_check
    _
  $region23: #{gat_forward.1} parent=0 // pred_check_branch
    %22 = sbr.rel (0) target = $region25
  $region24: #{gat_forward.1} parent=0 // pred_region
    _
  $region25: #{gat_forward.1} parent=0 // pred_fallthru
    _
  %v23 = vld [vmem:[%s1] sm:$0xff]
  %v24 = vld [vmem:[%s1 + $0x8] sm:$0xff]
  %v25 = vld [vmem:[%s1 + $0x10] sm:$0xff]
  %v26 = vld [vmem:[%s1 + $0x18] sm:$0xff]
  %v27 = vld [vmem:[%s1 + $0x20] sm:$0xff]
  %v28 = vld [vmem:[%s1 + $0x28] sm:$0xff]
  %v29 = vld [vmem:[%s1 + $0x30] sm:$0xff]
  %v30 = vld [vmem:[%s1 + $0x38] sm:$0xff]
  %v31 = vld [vmem:[%s0] sm:$0xff]
  %v32 = vld [vmem:[%s0 + $0x8] sm:$0xff]
  %v33 = vld [vmem:[%s0 + $0x10] sm:$0xff]
  %v34 = vld [vmem:[%s0 + $0x18] sm:$0xff]
  %v35 = vld [vmem:[%s0 + $0x20] sm:$0xff]
  %v36 = vld [vmem:[%s0 + $0x28] sm:$0xff]
  %v37 = vld [vmem:[%s0 + $0x30] sm:$0xff]
  %v38 = vld [vmem:[%s0 + $0x38] sm:$0xff]
  %v39 = vld [vmem:[%s3] sm:$0xff]
  %v40 = vld [vmem:[%s3 + $0x8] sm:$0xff]
  %v41 = vld [vmem:[%s3 + $0x10] sm:$0xff]
  %v42 = vld [vmem:[%s3 + $0x18] sm:$0xff]
  %vm43 = vcmask 130048
  %v45 = vsel %vm43, %v31, 0
  %v48 = vsel %vm43, %v32, 0
  %v51 = vsel %vm43, %v33, 0
  %v54 = vsel %vm43, %v34, 0
  %v57 = vsel %vm43, %v35, 0
  %v60 = vsel %vm43, %v36, 0
  %v63 = vsel %vm43, %v37, 0
  %v66 = vsel %vm43, %v38, 0
  %68 = vmatprep.subr.mxu0 %v40
  %69 = vmatpush1.msra.mxu0 %v39
  %70 = vmatprep.subr.mxu0 %v42
  %71 = vmatpush1.msra.mxu0 %v41
  %72 = vmatprep.subr.mxu0 0.0
  %73 = vmatpush1.msra.mxu0 0.0
  %74 = vmatprep.subr.mxu0 0.0
  %75 = vmatpush1.msra.mxu0 0.0
  %76 = vmatprep.subr.mxu0 0.0
  %77 = vmatpush1.msra.mxu0 0.0
  %78 = vmatprep.subr.mxu0 0.0
  %79 = vmatpush1.msra.mxu0 0.0
  %80 = vmatprep.subr.mxu0 0.0
  %81 = vmatpush1.msra.mxu0 0.0
  %82 = vmatprep.subr.mxu0 0.0
  %83 = vmatpush1.msra.mxu0 0.0
  %84 = vmatprep.subr.mxu0 0.0
  %85 = vmatpush1.msra.mxu0 0.0
  %86 = vmatprep.subr.mxu0 0.0
  %87 = vmatpush1.msra.mxu0 0.0
  %88 = vmatprep.subr.mxu0 0.0
  %89 = vmatpush1.msra.mxu0 0.0
  %90 = vmatprep.subr.mxu0 0.0
  %91 = vmatpush1.msra.mxu0 0.0
  %92 = vmatprep.subr.mxu0 0.0
  %93 = vmatpush1.msra.mxu0 0.0
  %94 = vmatprep.subr.mxu0 0.0
  %95 = vmatpush1.msra.mxu0 0.0
  %96 = vmatprep.subr.mxu0 0.0
  %97 = vmatpush1.msra.mxu0 0.0
  %98 = vmatprep.subr.mxu0 0.0
  %99 = vmatpush1.msra.mxu0 0.0
  %100 = vmatprep.subr.mxu0 0.0
  %101 = vmatpush1.msra.mxu0 0.0
  %102 = vmatprep.subr.mxu0 0.0
  %103 = vmatpush1.msra.mxu0 0.0
  %104 = vmatprep.subr.mxu0 0.0
  %105 = vmatpush1.msra.mxu0 0.0
  %106 = vmatprep.subr.mxu0 0.0
  %107 = vmatpush1.msra.mxu0 0.0
  %108 = vmatprep.subr.mxu0 0.0
  %109 = vmatpush1.msra.mxu0 0.0
  %110 = vmatprep.subr.mxu0 0.0
  %111 = vmatpush1.msra.mxu0 0.0
  %112 = vmatprep.subr.mxu0 0.0
  %113 = vmatpush1.msra.mxu0 0.0
  %114 = vmatprep.subr.mxu0 0.0
  %115 = vmatpush1.msra.mxu0 0.0
  %116 = vmatprep.subr.mxu0 0.0
  %117 = vmatpush1.msra.mxu0 0.0
  %118 = vmatprep.subr.mxu0 0.0
  %119 = vmatpush1.msra.mxu0 0.0
  %120 = vmatprep.subr.mxu0 0.0
  %121 = vmatpush1.msra.mxu0 0.0
  %122 = vmatprep.subr.mxu0 0.0
  %123 = vmatpush1.msra.mxu0 0.0
  %124 = vmatprep.subr.mxu0 0.0
  %125 = vmatpush1.msra.mxu0 0.0
  %126 = vmatprep.subr.mxu0 0.0
  %127 = vmatpush1.msra.mxu0 0.0
  %128 = vmatprep.subr.mxu0 0.0
  %129 = vmatpush1.msra.mxu0 0.0
  %130 = vmatprep.subr.mxu0 0.0
  %131 = vmatpush1.msra.mxu0 0.0
  %132 = vmatprep.mubr.f32.mxu0 0.0
  %133 = vmatmul.mubr.f32.gmra.mrb[0].mxu0 %v45
  %v134 = vpop.f32.mrb[0].mxu0
  %v135 = vadd.f32 0.0, %v134
  %v136 = vpop.f32.mrb[0].mxu0
  %v137 = vadd.f32 0.0, %v136
  %138 = vmatprep.mubr.f32.mxu0 0.0
  %139 = vmatmul.mubr.f32.gmra.mrb[0].mxu0 %v48
  %v140 = vpop.f32.mrb[0].mxu0
  %v141 = vadd.f32 0.0, %v140
  %v142 = vpop.f32.mrb[0].mxu0
  %v143 = vadd.f32 0.0, %v142
  %144 = vmatprep.mubr.f32.mxu0 0.0
  %145 = vmatmul.mubr.f32.gmra.mrb[0].mxu0 %v51
  %v146 = vpop.f32.mrb[0].mxu0
  %v147 = vadd.f32 0.0, %v146
  %v148 = vpop.f32.mrb[0].mxu0
  %v149 = vadd.f32 0.0, %v148
  %150 = vmatprep.mubr.f32.mxu0 0.0
  %151 = vmatmul.mubr.f32.gmra.mrb[0].mxu0 %v54
  %v152 = vpop.f32.mrb[0].mxu0
  %v153 = vadd.f32 0.0, %v152
  %v154 = vpop.f32.mrb[0].mxu0
  %v155 = vadd.f32 0.0, %v154
  %156 = vmatprep.mubr.f32.mxu0 0.0
  %157 = vmatmul.mubr.f32.gmra.mrb[0].mxu0 %v57
  %v158 = vpop.f32.mrb[0].mxu0
  %v159 = vadd.f32 0.0, %v158
  %v160 = vpop.f32.mrb[0].mxu0
  %v161 = vadd.f32 0.0, %v160
  %162 = vmatprep.mubr.f32.mxu0 0.0
  %163 = vmatmul.mubr.f32.gmra.mrb[0].mxu0 %v60
  %v164 = vpop.f32.mrb[0].mxu0
  %v165 = vadd.f32 0.0, %v164
  %v166 = vpop.f32.mrb[0].mxu0
  %v167 = vadd.f32 0.0, %v166
  %168 = vmatprep.mubr.f32.mxu0 0.0
  %169 = vmatmul.mubr.f32.gmra.mrb[0].mxu0 %v63
  %v170 = vpop.f32.mrb[0].mxu0
  %v171 = vadd.f32 0.0, %v170
  %v172 = vpop.f32.mrb[0].mxu0
  %v173 = vadd.f32 0.0, %v172
  %174 = vmatprep.mubr.f32.mxu0 0.0
  %175 = vmatmul.mubr.f32.gmra.mrb[0].mxu0 %v66
  %v176 = vpop.f32.mrb[0].mxu0
  %v177 = vadd.f32 0.0, %v176
  %v178 = vpop.f32.mrb[0].mxu0
  %v179 = vadd.f32 0.0, %v178
  %180 = vdwg.mxu0
  %181 = vxpose.xlu0.b32.start [1/16] %v137, 128
  %182 = vxpose.xlu0.b32.cont [2/16] %v143, 128
  %183 = vxpose.xlu0.b32.cont [3/16] %v149, 128
  %184 = vxpose.xlu0.b32.cont [4/16] %v155, 128
  %185 = vxpose.xlu0.b32.cont [5/16] %v161, 128
  %186 = vxpose.xlu0.b32.cont [6/16] %v167, 128
  %187 = vxpose.xlu0.b32.cont [7/16] %v173, 128
  %188 = vxpose.xlu0.b32.cont [8/16] %v179, 128
  %189 = vxpose.xlu0.b32.cont [9/16] 0.0, 128
  %190 = vxpose.xlu0.b32.cont [10/16] 0.0, 128
  %191 = vxpose.xlu0.b32.cont [11/16] 0.0, 128
  %192 = vxpose.xlu0.b32.cont [12/16] 0.0, 128
  %193 = vxpose.xlu0.b32.cont [13/16] 0.0, 128
  %194 = vxpose.xlu0.b32.cont [14/16] 0.0, 128
  %195 = vxpose.xlu0.b32.cont [15/16] 0.0, 128
  %196 = vxpose.xlu0.b32.end [16/16] 0.0, 128
  %v197 = vpop.trf.xlu0
  %v198 = vpop.trf.xlu0
  %v199 = vpop.trf.xlu0
  %v200 = vpop.trf.xlu0
  %v201 = vpop.trf.xlu0
  %v202 = vpop.trf.xlu0
  %v203 = vpop.trf.xlu0
  %v204 = vpop.trf.xlu0
  %v205 = vpop.trf.xlu0
  %v206 = vpop.trf.xlu0
  %v207 = vpop.trf.xlu0
  %v208 = vpop.trf.xlu0
  %v209 = vpop.trf.xlu0
  %v210 = vpop.trf.xlu0
  %v211 = vpop.trf.xlu0
  %v212 = vpop.trf.xlu0
  %214 = vset.pattern.permute.xlu0 0
  %215 = vperm.xlu0 %214, %v137
  %v216 = vpop.permute.xlu0 %215
  %219 = vset.pattern.permute.xlu0 0
  %220 = vperm.xlu0 %219, %v143
  %v221 = vpop.permute.xlu0 %220
  %224 = vset.pattern.permute.xlu0 0
  %225 = vperm.xlu0 %224, %v149
  %v226 = vpop.permute.xlu0 %225
  %229 = vset.pattern.permute.xlu0 0
  %230 = vperm.xlu0 %229, %v155
  %v231 = vpop.permute.xlu0 %230
  %234 = vset.pattern.permute.xlu0 0
  %235 = vperm.xlu0 %234, %v161
  %v236 = vpop.permute.xlu0 %235
  %239 = vset.pattern.permute.xlu0 0
  %240 = vperm.xlu0 %239, %v167
  %v241 = vpop.permute.xlu0 %240
  %244 = vset.pattern.permute.xlu0 0
  %245 = vperm.xlu0 %244, %v173
  %v246 = vpop.permute.xlu0 %245
  %249 = vset.pattern.permute.xlu0 0
  %250 = vperm.xlu0 %249, %v179
  %v251 = vpop.permute.xlu0 %250
  %v253 = vlaneseq
  %v254 = vshrl.u32 %v253, 7
  %v255 = vsub.s32 4, %v254
  %v256 = vrot.slane %v197, %v255
  %v257 = vadd.f32 %v216, %v256
  %v258 = vadd.f32 %v221, %v256
  %v259 = vadd.f32 %v226, %v256
  %v260 = vadd.f32 %v231, %v256
  %v261 = vadd.f32 %v236, %v256
  %v262 = vadd.f32 %v241, %v256
  %v263 = vadd.f32 %v246, %v256
  %v264 = vadd.f32 %v251, %v256
  %vm265 = vcmp.gt.f32.partialorder %v257, 0.0
  %vm266 = vcmp.gt.f32.partialorder %v258, 0.0
  %vm267 = vcmp.gt.f32.partialorder %v259, 0.0
  %vm268 = vcmp.gt.f32.partialorder %v260, 0.0
  %vm269 = vcmp.gt.f32.partialorder %v261, 0.0
  %vm270 = vcmp.gt.f32.partialorder %v262, 0.0
  %vm271 = vcmp.gt.f32.partialorder %v263, 0.0
  %vm272 = vcmp.gt.f32.partialorder %v264, 0.0
  %v273 = vmul.f32 %v257, 0.01
  %v274 = vmul.f32 %v258, 0.01
  %v275 = vmul.f32 %v259, 0.01
  %v276 = vmul.f32 %v260, 0.01
  %v277 = vmul.f32 %v261, 0.01
  %v278 = vmul.f32 %v262, 0.01
  %v279 = vmul.f32 %v263, 0.01
  %v280 = vmul.f32 %v264, 0.01
  %v281 = vsel %vm265, %v257, %v273
  %v282 = vsel %vm266, %v258, %v274
  %v283 = vsel %vm267, %v259, %v275
  %v284 = vsel %vm268, %v260, %v276
  %v285 = vsel %vm269, %v261, %v277
  %v286 = vsel %vm270, %v262, %v278
  %v287 = vsel %vm271, %v263, %v279
  %v288 = vsel %vm272, %v264, %v280
  %v289 = vadd.f32 %v281, %v23
  %v290 = vadd.f32 %v282, %v24
  %v291 = vadd.f32 %v283, %v25
  %v292 = vadd.f32 %v284, %v26
  %v293 = vadd.f32 %v285, %v27
  %v294 = vadd.f32 %v286, %v28
  %v295 = vadd.f32 %v287, %v29
  %v296 = vadd.f32 %v288, %v30
  %vm297 = vcmask 523264
  %v298 = vsel %vm297, %v289, -inf
  %299 = vmax.xlane.f32.xlu0 %v298
  %v300 = vpop.xlane.xlu0 %299
  %v301 = vsel %vm297, %v290, -inf
  %302 = vmax.xlane.f32.xlu0 %v301
  %v303 = vpop.xlane.xlu0 %302
  %v304 = vsel %vm297, %v291, -inf
  %305 = vmax.xlane.f32.xlu0 %v304
  %v306 = vpop.xlane.xlu0 %305
  %v307 = vsel %vm297, %v292, -inf
  %308 = vmax.xlane.f32.xlu0 %v307
  %v309 = vpop.xlane.xlu0 %308
  %v310 = vsel %vm297, %v293, -inf
  %311 = vmax.xlane.f32.xlu0 %v310
  %v312 = vpop.xlane.xlu0 %311
  %v313 = vsel %vm297, %v294, -inf
  %314 = vmax.xlane.f32.xlu0 %v313
  %v315 = vpop.xlane.xlu0 %314
  %v316 = vsel %vm297, %v295, -inf
  %317 = vmax.xlane.f32.xlu0 %v316
  %v318 = vpop.xlane.xlu0 %317
  %v319 = vsel %vm297, %v296, -inf
  %320 = vmax.xlane.f32.xlu0 %v319
  %v321 = vpop.xlane.xlu0 %320
  %v322 = vsub.f32 %v289, %v300
  %v323 = vsub.f32 %v290, %v303
  %v324 = vsub.f32 %v291, %v306
  %v325 = vsub.f32 %v292, %v309
  %v326 = vsub.f32 %v293, %v312
  %v327 = vsub.f32 %v294, %v315
  %v328 = vsub.f32 %v295, %v318
  %v329 = vsub.f32 %v296, %v321
  %v330 = vmul.f32 %v322, 1.442695
  %v331 = vpow.pop %v330
  %v332 = vmul.f32 %v323, 1.442695
  %v333 = vpow.pop %v332
  %v334 = vmul.f32 %v324, 1.442695
  %v335 = vpow.pop %v334
  %v336 = vmul.f32 %v325, 1.442695
  %v337 = vpow.pop %v336
  %v338 = vmul.f32 %v326, 1.442695
  %v339 = vpow.pop %v338
  %v340 = vmul.f32 %v327, 1.442695
  %v341 = vpow.pop %v340
  %v342 = vmul.f32 %v328, 1.442695
  %v343 = vpow.pop %v342
  %v344 = vmul.f32 %v329, 1.442695
  %v345 = vpow.pop %v344
  %v346 = vsel %vm297, %v331, 0.0
  %347 = vadd.xlane.f32.xlu0 %v346
  %v348 = vpop.xlane.xlu0 %347
  %v349 = vsel %vm297, %v333, 0.0
  %350 = vadd.xlane.f32.xlu0 %v349
  %v351 = vpop.xlane.xlu0 %350
  %v352 = vsel %vm297, %v335, 0.0
  %353 = vadd.xlane.f32.xlu0 %v352
  %v354 = vpop.xlane.xlu0 %353
  %v355 = vsel %vm297, %v337, 0.0
  %356 = vadd.xlane.f32.xlu0 %v355
  %v357 = vpop.xlane.xlu0 %356
  %v358 = vsel %vm297, %v339, 0.0
  %359 = vadd.xlane.f32.xlu0 %v358
  %v360 = vpop.xlane.xlu0 %359
  %v361 = vsel %vm297, %v341, 0.0
  %362 = vadd.xlane.f32.xlu0 %v361
  %v363 = vpop.xlane.xlu0 %362
  %v364 = vsel %vm297, %v343, 0.0
  %365 = vadd.xlane.f32.xlu0 %v364
  %v366 = vpop.xlane.xlu0 %365
  %v367 = vsel %vm297, %v345, 0.0
  %368 = vadd.xlane.f32.xlu0 %v367
  %v369 = vpop.xlane.xlu0 %368
  %v370 = vrcp.pop %v348
  %v371 = vrcp.pop %v351
  %v372 = vrcp.pop %v354
  %v373 = vrcp.pop %v357
  %v374 = vrcp.pop %v360
  %v375 = vrcp.pop %v363
  %v376 = vrcp.pop %v366
  %v377 = vrcp.pop %v369
  %v378 = vmul.f32 %v331, %v370
  %v379 = vmul.f32 %v333, %v371
  %v380 = vmul.f32 %v335, %v372
  %v381 = vmul.f32 %v337, %v373
  %v382 = vmul.f32 %v339, %v374
  %v383 = vmul.f32 %v341, %v375
  %v384 = vmul.f32 %v343, %v376
  %v385 = vmul.f32 %v345, %v377
  %386 = vst.msk [vmem:[#allocation2] sm:$0xff] %vm297, %v378
  %387 = vst.msk [vmem:[#allocation2 + $0x10] sm:$0xff] %vm297, %v379
  %388 = vst.msk [vmem:[#allocation2 + $0x20] sm:$0xff] %vm297, %v380
  %389 = vst.msk [vmem:[#allocation2 + $0x30] sm:$0xff] %vm297, %v381
  %390 = vst.msk [vmem:[#allocation2 + $0x40] sm:$0xff] %vm297, %v382
  %391 = vst.msk [vmem:[#allocation2 + $0x50] sm:$0xff] %vm297, %v383
  %392 = vst.msk [vmem:[#allocation2 + $0x60] sm:$0xff] %vm297, %v384
  %393 = vst.msk [vmem:[#allocation2 + $0x70] sm:$0xff] %vm297, %v385
  %394 = vset.pattern.permute.xlu0 1
  %395 = vperm.xlu0 %394, %v137
  %v396 = vpop.permute.xlu0 %395
  %398 = vset.pattern.permute.xlu0 1
  %399 = vperm.xlu0 %398, %v143
  %v400 = vpop.permute.xlu0 %399
  %402 = vset.pattern.permute.xlu0 1
  %403 = vperm.xlu0 %402, %v149
  %v404 = vpop.permute.xlu0 %403
  %406 = vset.pattern.permute.xlu0 1
  %407 = vperm.xlu0 %406, %v155
  %v408 = vpop.permute.xlu0 %407
  %410 = vset.pattern.permute.xlu0 1
  %411 = vperm.xlu0 %410, %v161
  %v412 = vpop.permute.xlu0 %411
  %414 = vset.pattern.permute.xlu0 1
  %415 = vperm.xlu0 %414, %v167
  %v416 = vpop.permute.xlu0 %415
  %418 = vset.pattern.permute.xlu0 1
  %419 = vperm.xlu0 %418, %v173
  %v420 = vpop.permute.xlu0 %419
  %422 = vset.pattern.permute.xlu0 1
  %423 = vperm.xlu0 %422, %v179
  %v424 = vpop.permute.xlu0 %423
  %v426 = vlaneseq
  %v427 = vshrl.u32 %v426, 7
  %v428 = vsub.s32 5, %v427
  %v429 = vrot.slane %v197, %v428
  %v430 = vadd.f32 %v396, %v429
  %v431 = vadd.f32 %v400, %v429
  %v432 = vadd.f32 %v404, %v429
  %v433 = vadd.f32 %v408, %v429
  %v434 = vadd.f32 %v412, %v429
  %v435 = vadd.f32 %v416, %v429
  %v436 = vadd.f32 %v420, %v429
  %v437 = vadd.f32 %v424, %v429
  %vm438 = vcmp.gt.f32.partialorder %v430, 0.0
  %vm439 = vcmp.gt.f32.partialorder %v431, 0.0
  %vm440 = vcmp.gt.f32.partialorder %v432, 0.0
  %vm441 = vcmp.gt.f32.partialorder %v433, 0.0
  %vm442 = vcmp.gt.f32.partialorder %v434, 0.0
  %vm443 = vcmp.gt.f32.partialorder %v435, 0.0
  %vm444 = vcmp.gt.f32.partialorder %v436, 0.0
  %vm445 = vcmp.gt.f32.partialorder %v437, 0.0
  %v446 = vmul.f32 %v430, 0.01
  %v447 = vmul.f32 %v431, 0.01
  %v448 = vmul.f32 %v432, 0.01
  %v449 = vmul.f32 %v433, 0.01
  %v450 = vmul.f32 %v434, 0.01
  %v451 = vmul.f32 %v435, 0.01
  %v452 = vmul.f32 %v436, 0.01
  %v453 = vmul.f32 %v437, 0.01
  %v454 = vsel %vm438, %v430, %v446
  %v455 = vsel %vm439, %v431, %v447
  %v456 = vsel %vm440, %v432, %v448
  %v457 = vsel %vm441, %v433, %v449
  %v458 = vsel %vm442, %v434, %v450
  %v459 = vsel %vm443, %v435, %v451
  %v460 = vsel %vm444, %v436, %v452
  %v461 = vsel %vm445, %v437, %v453
  %v462 = vadd.f32 %v454, %v23
  %v463 = vadd.f32 %v455, %v24
  %v464 = vadd.f32 %v456, %v25
  %v465 = vadd.f32 %v457, %v26
  %v466 = vadd.f32 %v458, %v27
  %v467 = vadd.f32 %v459, %v28
  %v468 = vadd.f32 %v460, %v29
  %v469 = vadd.f32 %v461, %v30
  %v470 = vsel %vm297, %v462, -inf
  %471 = vmax.xlane.f32.xlu0 %v470
  %v472 = vpop.xlane.xlu0 %471
  %v473 = vsel %vm297, %v463, -inf
  %474 = vmax.xlane.f32.xlu0 %v473
  %v475 = vpop.xlane.xlu0 %474
  %v476 = vsel %vm297, %v464, -inf
  %477 = vmax.xlane.f32.xlu0 %v476
  %v478 = vpop.xlane.xlu0 %477
  %v479 = vsel %vm297, %v465, -inf
  %480 = vmax.xlane.f32.xlu0 %v479
  %v481 = vpop.xlane.xlu0 %480
  %v482 = vsel %vm297, %v466, -inf
  %483 = vmax.xlane.f32.xlu0 %v482
  %v484 = vpop.xlane.xlu0 %483
  %v485 = vsel %vm297, %v467, -inf
  %486 = vmax.xlane.f32.xlu0 %v485
  %v487 = vpop.xlane.xlu0 %486
  %v488 = vsel %vm297, %v468, -inf
  %489 = vmax.xlane.f32.xlu0 %v488
  %v490 = vpop.xlane.xlu0 %489
  %v491 = vsel %vm297, %v469, -inf
  %492 = vmax.xlane.f32.xlu0 %v491
  %v493 = vpop.xlane.xlu0 %492
  %v494 = vsub.f32 %v462, %v472
  %v495 = vsub.f32 %v463, %v475
  %v496 = vsub.f32 %v464, %v478
  %v497 = vsub.f32 %v465, %v481
  %v498 = vsub.f32 %v466, %v484
  %v499 = vsub.f32 %v467, %v487
  %v500 = vsub.f32 %v468, %v490
  %v501 = vsub.f32 %v469, %v493
  %v502 = vmul.f32 %v494, 1.442695
  %v503 = vpow.pop %v502
  %v504 = vmul.f32 %v495, 1.442695
  %v505 = vpow.pop %v504
  %v506 = vmul.f32 %v496, 1.442695
  %v507 = vpow.pop %v506
  %v508 = vmul.f32 %v497, 1.442695
  %v509 = vpow.pop %v508
  %v510 = vmul.f32 %v498, 1.442695
  %v511 = vpow.pop %v510
  %v512 = vmul.f32 %v499, 1.442695
  %v513 = vpow.pop %v512
  %v514 = vmul.f32 %v500, 1.442695
  %v515 = vpow.pop %v514
  %v516 = vmul.f32 %v501, 1.442695
  %v517 = vpow.pop %v516
  %v518 = vsel %vm297, %v503, 0.0
  %519 = vadd.xlane.f32.xlu0 %v518
  %v520 = vpop.xlane.xlu0 %519
  %v521 = vsel %vm297, %v505, 0.0
  %522 = vadd.xlane.f32.xlu0 %v521
  %v523 = vpop.xlane.xlu0 %522
  %v524 = vsel %vm297, %v507, 0.0
  %525 = vadd.xlane.f32.xlu0 %v524
  %v526 = vpop.xlane.xlu0 %525
  %v527 = vsel %vm297, %v509, 0.0
  %528 = vadd.xlane.f32.xlu0 %v527
  %v529 = vpop.xlane.xlu0 %528
  %v530 = vsel %vm297, %v511, 0.0
  %531 = vadd.xlane.f32.xlu0 %v530
  %v532 = vpop.xlane.xlu0 %531
  %v533 = vsel %vm297, %v513, 0.0
  %534 = vadd.xlane.f32.xlu0 %v533
  %v535 = vpop.xlane.xlu0 %534
  %v536 = vsel %vm297, %v515, 0.0
  %537 = vadd.xlane.f32.xlu0 %v536
  %v538 = vpop.xlane.xlu0 %537
  %v539 = vsel %vm297, %v517, 0.0
  %540 = vadd.xlane.f32.xlu0 %v539
  %v541 = vpop.xlane.xlu0 %540
  %v542 = vrcp.pop %v520
  %v543 = vrcp.pop %v523
  %v544 = vrcp.pop %v526
  %v545 = vrcp.pop %v529
  %v546 = vrcp.pop %v532
  %v547 = vrcp.pop %v535
  %v548 = vrcp.pop %v538
  %v549 = vrcp.pop %v541
  %v550 = vmul.f32 %v503, %v542
  %v551 = vmul.f32 %v505, %v543
  %v552 = vmul.f32 %v507, %v544
  %v553 = vmul.f32 %v509, %v545
  %v554 = vmul.f32 %v511, %v546
  %v555 = vmul.f32 %v513, %v547
  %v556 = vmul.f32 %v515, %v548
  %v557 = vmul.f32 %v517, %v549
  %566 = vrot.lane.b32.xlu0 %v550, 64
  %v567 = vpop.permute.xlu0 %566
  %568 = vrot.lane.b32.xlu0 %v551, 64
  %v569 = vpop.permute.xlu0 %568
  %570 = vrot.lane.b32.xlu0 %v552, 64
  %v571 = vpop.permute.xlu0 %570
  %572 = vrot.lane.b32.xlu0 %v553, 64
  %v573 = vpop.permute.xlu0 %572
  %574 = vrot.lane.b32.xlu0 %v554, 64
  %v575 = vpop.permute.xlu0 %574
  %576 = vrot.lane.b32.xlu0 %v555, 64
  %v577 = vpop.permute.xlu0 %576
  %578 = vrot.lane.b32.xlu0 %v556, 64
  %v579 = vpop.permute.xlu0 %578
  %580 = vrot.lane.b32.xlu0 %v557, 64
  %v581 = vpop.permute.xlu0 %580
  %vm590 = vcmask 1048064
  %591 = vst.msk [vmem:[#allocation2] sm:$0xff] %vm590, %v567
  %592 = vst.msk [vmem:[#allocation2 + $0x10] sm:$0xff] %vm590, %v569
  %593 = vst.msk [vmem:[#allocation2 + $0x20] sm:$0xff] %vm590, %v571
  %594 = vst.msk [vmem:[#allocation2 + $0x30] sm:$0xff] %vm590, %v573
  %595 = vst.msk [vmem:[#allocation2 + $0x40] sm:$0xff] %vm590, %v575
  %596 = vst.msk [vmem:[#allocation2 + $0x50] sm:$0xff] %vm590, %v577
  %597 = vst.msk [vmem:[#allocation2 + $0x60] sm:$0xff] %vm590, %v579
  %598 = vst.msk [vmem:[#allocation2 + $0x70] sm:$0xff] %vm590, %v581
  %599 = vset.pattern.permute.xlu0 2
  %600 = vperm.xlu0 %599, %v137
  %v601 = vpop.permute.xlu0 %600
  %603 = vset.pattern.permute.xlu0 2
  %604 = vperm.xlu0 %603, %v143
  %v605 = vpop.permute.xlu0 %604
  %607 = vset.pattern.permute.xlu0 2
  %608 = vperm.xlu0 %607, %v149
  %v609 = vpop.permute.xlu0 %608
  %611 = vset.pattern.permute.xlu0 2
  %612 = vperm.xlu0 %611, %v155
  %v613 = vpop.permute.xlu0 %612
  %615 = vset.pattern.permute.xlu0 2
  %616 = vperm.xlu0 %615, %v161
  %v617 = vpop.permute.xlu0 %616
  %619 = vset.pattern.permute.xlu0 2
  %620 = vperm.xlu0 %619, %v167
  %v621 = vpop.permute.xlu0 %620
  %623 = vset.pattern.permute.xlu0 2
  %624 = vperm.xlu0 %623, %v173
  %v625 = vpop.permute.xlu0 %624
  %627 = vset.pattern.permute.xlu0 2
  %628 = vperm.xlu0 %627, %v179
  %v629 = vpop.permute.xlu0 %628
  %v631 = vlaneseq
  %v632 = vshrl.u32 %v631, 7
  %v633 = vsub.s32 6, %v632
  %v634 = vrot.slane %v197, %v633
  %v635 = vadd.f32 %v601, %v634
  %v636 = vadd.f32 %v605, %v634
  %v637 = vadd.f32 %v609, %v634
  %v638 = vadd.f32 %v613, %v634
  %v639 = vadd.f32 %v617, %v634
  %v640 = vadd.f32 %v621, %v634
  %v641 = vadd.f32 %v625, %v634
  %v642 = vadd.f32 %v629, %v634
  %vm643 = vcmp.gt.f32.partialorder %v635, 0.0
  %vm644 = vcmp.gt.f32.partialorder %v636, 0.0
  %vm645 = vcmp.gt.f32.partialorder %v637, 0.0
  %vm646 = vcmp.gt.f32.partialorder %v638, 0.0
  %vm647 = vcmp.gt.f32.partialorder %v639, 0.0
  %vm648 = vcmp.gt.f32.partialorder %v640, 0.0
  %vm649 = vcmp.gt.f32.partialorder %v641, 0.0
  %vm650 = vcmp.gt.f32.partialorder %v642, 0.0
  %v651 = vmul.f32 %v635, 0.01
  %v652 = vmul.f32 %v636, 0.01
  %v653 = vmul.f32 %v637, 0.01
  %v654 = vmul.f32 %v638, 0.01
  %v655 = vmul.f32 %v639, 0.01
  %v656 = vmul.f32 %v640, 0.01
  %v657 = vmul.f32 %v641, 0.01
  %v658 = vmul.f32 %v642, 0.01
  %v659 = vsel %vm643, %v635, %v651
  %v660 = vsel %vm644, %v636, %v652
  %v661 = vsel %vm645, %v637, %v653
  %v662 = vsel %vm646, %v638, %v654
  %v663 = vsel %vm647, %v639, %v655
  %v664 = vsel %vm648, %v640, %v656
  %v665 = vsel %vm649, %v641, %v657
  %v666 = vsel %vm650, %v642, %v658
  %v667 = vadd.f32 %v659, %v23
  %v668 = vadd.f32 %v660, %v24
  %v669 = vadd.f32 %v661, %v25
  %v670 = vadd.f32 %v662, %v26
  %v671 = vadd.f32 %v663, %v27
  %v672 = vadd.f32 %v664, %v28
  %v673 = vadd.f32 %v665, %v29
  %v674 = vadd.f32 %v666, %v30
  %v675 = vsel %vm297, %v667, -inf
  %676 = vmax.xlane.f32.xlu0 %v675
  %v677 = vpop.xlane.xlu0 %676
  %v678 = vsel %vm297, %v668, -inf
  %679 = vmax.xlane.f32.xlu0 %v678
  %v680 = vpop.xlane.xlu0 %679
  %v681 = vsel %vm297, %v669, -inf
  %682 = vmax.xlane.f32.xlu0 %v681
  %v683 = vpop.xlane.xlu0 %682
  %v684 = vsel %vm297, %v670, -inf
  %685 = vmax.xlane.f32.xlu0 %v684
  %v686 = vpop.xlane.xlu0 %685
  %v687 = vsel %vm297, %v671, -inf
  %688 = vmax.xlane.f32.xlu0 %v687
  %v689 = vpop.xlane.xlu0 %688
  %v690 = vsel %vm297, %v672, -inf
  %691 = vmax.xlane.f32.xlu0 %v690
  %v692 = vpop.xlane.xlu0 %691
  %v693 = vsel %vm297, %v673, -inf
  %694 = vmax.xlane.f32.xlu0 %v693
  %v695 = vpop.xlane.xlu0 %694
  %v696 = vsel %vm297, %v674, -inf
  %697 = vmax.xlane.f32.xlu0 %v696
  %v698 = vpop.xlane.xlu0 %697
  %v699 = vsub.f32 %v667, %v677
  %v700 = vsub.f32 %v668, %v680
  %v701 = vsub.f32 %v669, %v683
  %v702 = vsub.f32 %v670, %v686
  %v703 = vsub.f32 %v671, %v689
  %v704 = vsub.f32 %v672, %v692
  %v705 = vsub.f32 %v673, %v695
  %v706 = vsub.f32 %v674, %v698
  %v707 = vmul.f32 %v699, 1.442695
  %v708 = vpow.pop %v707
  %v709 = vmul.f32 %v700, 1.442695
  %v710 = vpow.pop %v709
  %v711 = vmul.f32 %v701, 1.442695
  %v712 = vpow.pop %v711
  %v713 = vmul.f32 %v702, 1.442695
  %v714 = vpow.pop %v713
  %v715 = vmul.f32 %v703, 1.442695
  %v716 = vpow.pop %v715
  %v717 = vmul.f32 %v704, 1.442695
  %v718 = vpow.pop %v717
  %v719 = vmul.f32 %v705, 1.442695
  %v720 = vpow.pop %v719
  %v721 = vmul.f32 %v706, 1.442695
  %v722 = vpow.pop %v721
  %v723 = vsel %vm297, %v708, 0.0
  %724 = vadd.xlane.f32.xlu0 %v723
  %v725 = vpop.xlane.xlu0 %724
  %v726 = vsel %vm297, %v710, 0.0
  %727 = vadd.xlane.f32.xlu0 %v726
  %v728 = vpop.xlane.xlu0 %727
  %v729 = vsel %vm297, %v712, 0.0
  %730 = vadd.xlane.f32.xlu0 %v729
  %v731 = vpop.xlane.xlu0 %730
  %v732 = vsel %vm297, %v714, 0.0
  %733 = vadd.xlane.f32.xlu0 %v732
  %v734 = vpop.xlane.xlu0 %733
  %v735 = vsel %vm297, %v716, 0.0
  %736 = vadd.xlane.f32.xlu0 %v735
  %v737 = vpop.xlane.xlu0 %736
  %v738 = vsel %vm297, %v718, 0.0
  %739 = vadd.xlane.f32.xlu0 %v738
  %v740 = vpop.xlane.xlu0 %739
  %v741 = vsel %vm297, %v720, 0.0
  %742 = vadd.xlane.f32.xlu0 %v741
  %v743 = vpop.xlane.xlu0 %742
  %v744 = vsel %vm297, %v722, 0.0
  %745 = vadd.xlane.f32.xlu0 %v744
  %v746 = vpop.xlane.xlu0 %745
  %v747 = vrcp.pop %v725
  %v748 = vrcp.pop %v728
  %v749 = vrcp.pop %v731
  %v750 = vrcp.pop %v734
  %v751 = vrcp.pop %v737
  %v752 = vrcp.pop %v740
  %v753 = vrcp.pop %v743
  %v754 = vrcp.pop %v746
  %v755 = vmul.f32 %v708, %v747
  %v756 = vmul.f32 %v710, %v748
  %v757 = vmul.f32 %v712, %v749
  %v758 = vmul.f32 %v714, %v750
  %v759 = vmul.f32 %v716, %v751
  %v760 = vmul.f32 %v718, %v752
  %v761 = vmul.f32 %v720, %v753
  %v762 = vmul.f32 %v722, %v754
  %763 = vst.msk [vmem:[#allocation2 + $0x8] sm:$0xff] %vm297, %v755
  %764 = vst.msk [vmem:[#allocation2 + $0x18] sm:$0xff] %vm297, %v756
  %765 = vst.msk [vmem:[#allocation2 + $0x28] sm:$0xff] %vm297, %v757
  %766 = vst.msk [vmem:[#allocation2 + $0x38] sm:$0xff] %vm297, %v758
  %767 = vst.msk [vmem:[#allocation2 + $0x48] sm:$0xff] %vm297, %v759
  %768 = vst.msk [vmem:[#allocation2 + $0x58] sm:$0xff] %vm297, %v760
  %769 = vst.msk [vmem:[#allocation2 + $0x68] sm:$0xff] %vm297, %v761
  %770 = vst.msk [vmem:[#allocation2 + $0x78] sm:$0xff] %vm297, %v762
  %771 = vset.pattern.permute.xlu0 3
  %772 = vperm.xlu0 %771, %v137
  %v773 = vpop.permute.xlu0 %772
  %775 = vset.pattern.permute.xlu0 3
  %776 = vperm.xlu0 %775, %v143
  %v777 = vpop.permute.xlu0 %776
  %779 = vset.pattern.permute.xlu0 3
  %780 = vperm.xlu0 %779, %v149
  %v781 = vpop.permute.xlu0 %780
  %783 = vset.pattern.permute.xlu0 3
  %784 = vperm.xlu0 %783, %v155
  %v785 = vpop.permute.xlu0 %784
  %787 = vset.pattern.permute.xlu0 3
  %788 = vperm.xlu0 %787, %v161
  %v789 = vpop.permute.xlu0 %788
  %791 = vset.pattern.permute.xlu0 3
  %792 = vperm.xlu0 %791, %v167
  %v793 = vpop.permute.xlu0 %792
  %795 = vset.pattern.permute.xlu0 3
  %796 = vperm.xlu0 %795, %v173
  %v797 = vpop.permute.xlu0 %796
  %799 = vset.pattern.permute.xlu0 3
  %800 = vperm.xlu0 %799, %v179
  %v801 = vpop.permute.xlu0 %800
  %v803 = vlaneseq
  %v804 = vshrl.u32 %v803, 7
  %v805 = vsub.s32 7, %v804
  %v806 = vrot.slane %v197, %v805
  %v807 = vadd.f32 %v773, %v806
  %v808 = vadd.f32 %v777, %v806
  %v809 = vadd.f32 %v781, %v806
  %v810 = vadd.f32 %v785, %v806
  %v811 = vadd.f32 %v789, %v806
  %v812 = vadd.f32 %v793, %v806
  %v813 = vadd.f32 %v797, %v806
  %v814 = vadd.f32 %v801, %v806
  %vm815 = vcmp.gt.f32.partialorder %v807, 0.0
  %vm816 = vcmp.gt.f32.partialorder %v808, 0.0
  %vm817 = vcmp.gt.f32.partialorder %v809, 0.0
  %vm818 = vcmp.gt.f32.partialorder %v810, 0.0
  %vm819 = vcmp.gt.f32.partialorder %v811, 0.0
  %vm820 = vcmp.gt.f32.partialorder %v812, 0.0
  %vm821 = vcmp.gt.f32.partialorder %v813, 0.0
  %vm822 = vcmp.gt.f32.partialorder %v814, 0.0
  %v823 = vmul.f32 %v807, 0.01
  %v824 = vmul.f32 %v808, 0.01
  %v825 = vmul.f32 %v809, 0.01
  %v826 = vmul.f32 %v810, 0.01
  %v827 = vmul.f32 %v811, 0.01
  %v828 = vmul.f32 %v812, 0.01
  %v829 = vmul.f32 %v813, 0.01
  %v830 = vmul.f32 %v814, 0.01
  %v831 = vsel %vm815, %v807, %v823
  %v832 = vsel %vm816, %v808, %v824
  %v833 = vsel %vm817, %v809, %v825
  %v834 = vsel %vm818, %v810, %v826
  %v835 = vsel %vm819, %v811, %v827
  %v836 = vsel %vm820, %v812, %v828
  %v837 = vsel %vm821, %v813, %v829
  %v838 = vsel %vm822, %v814, %v830
  %v839 = vadd.f32 %v831, %v23
  %v840 = vadd.f32 %v832, %v24
  %v841 = vadd.f32 %v833, %v25
  %v842 = vadd.f32 %v834, %v26
  %v843 = vadd.f32 %v835, %v27
  %v844 = vadd.f32 %v836, %v28
  %v845 = vadd.f32 %v837, %v29
  %v846 = vadd.f32 %v838, %v30
  %v847 = vsel %vm297, %v839, -inf
  %848 = vmax.xlane.f32.xlu0 %v847
  %v849 = vpop.xlane.xlu0 %848
  %v850 = vsel %vm297, %v840, -inf
  %851 = vmax.xlane.f32.xlu0 %v850
  %v852 = vpop.xlane.xlu0 %851
  %v853 = vsel %vm297, %v841, -inf
  %854 = vmax.xlane.f32.xlu0 %v853
  %v855 = vpop.xlane.xlu0 %854
  %v856 = vsel %vm297, %v842, -inf
  %857 = vmax.xlane.f32.xlu0 %v856
  %v858 = vpop.xlane.xlu0 %857
  %v859 = vsel %vm297, %v843, -inf
  %860 = vmax.xlane.f32.xlu0 %v859
  %v861 = vpop.xlane.xlu0 %860
  %v862 = vsel %vm297, %v844, -inf
  %863 = vmax.xlane.f32.xlu0 %v862
  %v864 = vpop.xlane.xlu0 %863
  %v865 = vsel %vm297, %v845, -inf
  %866 = vmax.xlane.f32.xlu0 %v865
  %v867 = vpop.xlane.xlu0 %866
  %v868 = vsel %vm297, %v846, -inf
  %869 = vmax.xlane.f32.xlu0 %v868
  %v870 = vpop.xlane.xlu0 %869
  %v871 = vsub.f32 %v839, %v849
  %v872 = vsub.f32 %v840, %v852
  %v873 = vsub.f32 %v841, %v855
  %v874 = vsub.f32 %v842, %v858
  %v875 = vsub.f32 %v843, %v861
  %v876 = vsub.f32 %v844, %v864
  %v877 = vsub.f32 %v845, %v867
  %v878 = vsub.f32 %v846, %v870
  %v879 = vmul.f32 %v871, 1.442695
  %v880 = vpow.pop %v879
  %v881 = vmul.f32 %v872, 1.442695
  %v882 = vpow.pop %v881
  %v883 = vmul.f32 %v873, 1.442695
  %v884 = vpow.pop %v883
  %v885 = vmul.f32 %v874, 1.442695
  %v886 = vpow.pop %v885
  %v887 = vmul.f32 %v875, 1.442695
  %v888 = vpow.pop %v887
  %v889 = vmul.f32 %v876, 1.442695
  %v890 = vpow.pop %v889
  %v891 = vmul.f32 %v877, 1.442695
  %v892 = vpow.pop %v891
  %v893 = vmul.f32 %v878, 1.442695
  %v894 = vpow.pop %v893
  %v895 = vsel %vm297, %v880, 0.0
  %896 = vadd.xlane.f32.xlu0 %v895
  %v897 = vpop.xlane.xlu0 %896
  %v898 = vsel %vm297, %v882, 0.0
  %899 = vadd.xlane.f32.xlu0 %v898
  %v900 = vpop.xlane.xlu0 %899
  %v901 = vsel %vm297, %v884, 0.0
  %902 = vadd.xlane.f32.xlu0 %v901
  %v903 = vpop.xlane.xlu0 %902
  %v904 = vsel %vm297, %v886, 0.0
  %905 = vadd.xlane.f32.xlu0 %v904
  %v906 = vpop.xlane.xlu0 %905
  %v907 = vsel %vm297, %v888, 0.0
  %908 = vadd.xlane.f32.xlu0 %v907
  %v909 = vpop.xlane.xlu0 %908
  %v910 = vsel %vm297, %v890, 0.0
  %911 = vadd.xlane.f32.xlu0 %v910
  %v912 = vpop.xlane.xlu0 %911
  %v913 = vsel %vm297, %v892, 0.0
  %914 = vadd.xlane.f32.xlu0 %v913
  %v915 = vpop.xlane.xlu0 %914
  %v916 = vsel %vm297, %v894, 0.0
  %917 = vadd.xlane.f32.xlu0 %v916
  %v918 = vpop.xlane.xlu0 %917
  %v919 = vrcp.pop %v897
  %v920 = vrcp.pop %v900
  %v921 = vrcp.pop %v903
  %v922 = vrcp.pop %v906
  %v923 = vrcp.pop %v909
  %v924 = vrcp.pop %v912
  %v925 = vrcp.pop %v915
  %v926 = vrcp.pop %v918
  %v927 = vmul.f32 %v880, %v919
  %v928 = vmul.f32 %v882, %v920
  %v929 = vmul.f32 %v884, %v921
  %v930 = vmul.f32 %v886, %v922
  %v931 = vmul.f32 %v888, %v923
  %v932 = vmul.f32 %v890, %v924
  %v933 = vmul.f32 %v892, %v925
  %v934 = vmul.f32 %v894, %v926
  %943 = vrot.lane.b32.xlu0 %v927, 64
  %v944 = vpop.permute.xlu0 %943
  %945 = vrot.lane.b32.xlu0 %v928, 64
  %v946 = vpop.permute.xlu0 %945
  %947 = vrot.lane.b32.xlu0 %v929, 64
  %v948 = vpop.permute.xlu0 %947
  %949 = vrot.lane.b32.xlu0 %v930, 64
  %v950 = vpop.permute.xlu0 %949
  %951 = vrot.lane.b32.xlu0 %v931, 64
  %v952 = vpop.permute.xlu0 %951
  %953 = vrot.lane.b32.xlu0 %v932, 64
  %v954 = vpop.permute.xlu0 %953
  %955 = vrot.lane.b32.xlu0 %v933, 64
  %v956 = vpop.permute.xlu0 %955
  %957 = vrot.lane.b32.xlu0 %v934, 64
  %v958 = vpop.permute.xlu0 %957
  %967 = vst.msk [vmem:[#allocation2 + $0x8] sm:$0xff] %vm590, %v944
  %968 = vst.msk [vmem:[#allocation2 + $0x18] sm:$0xff] %vm590, %v946
  %969 = vst.msk [vmem:[#allocation2 + $0x28] sm:$0xff] %vm590, %v948
  %970 = vst.msk [vmem:[#allocation2 + $0x38] sm:$0xff] %vm590, %v950
  %971 = vst.msk [vmem:[#allocation2 + $0x48] sm:$0xff] %vm590, %v952
  %972 = vst.msk [vmem:[#allocation2 + $0x58] sm:$0xff] %vm590, %v954
  %973 = vst.msk [vmem:[#allocation2 + $0x68] sm:$0xff] %vm590, %v956
  %974 = vst.msk [vmem:[#allocation2 + $0x78] sm:$0xff] %vm590, %v958
  %v975 = vld [vmem:[%s2] sm:$0xff]
  %v976 = vld [vmem:[%s2 + $0x8] sm:$0xff]
  %v977 = vld [vmem:[%s2 + $0x10] sm:$0xff]
  %v978 = vld [vmem:[%s2 + $0x18] sm:$0xff]
  %v979 = vld [vmem:[%s2 + $0x20] sm:$0xff]
  %v980 = vld [vmem:[%s2 + $0x28] sm:$0xff]
  %v981 = vld [vmem:[%s2 + $0x30] sm:$0xff]
  %v982 = vld [vmem:[%s2 + $0x38] sm:$0xff]
  %v983 = vld [vmem:[%s2 + $0x40] sm:$0xff]
  %v984 = vld [vmem:[%s2 + $0x48] sm:$0xff]
  %v985 = vld [vmem:[%s2 + $0x50] sm:$0xff]
  %v986 = vld [vmem:[%s2 + $0x58] sm:$0xff]
  %v987 = vld [vmem:[%s2 + $0x60] sm:$0xff]
  %v988 = vld [vmem:[%s2 + $0x68] sm:$0xff]
  %v989 = vld [vmem:[%s2 + $0x70] sm:$0xff]
  %v990 = vld [vmem:[%s2 + $0x78] sm:$0xff]
  %v991 = vld [vmem:[%s2 + $0x80] sm:$0xff]
  %v992 = vld [vmem:[%s2 + $0x88] sm:$0xff]
  %v993 = vld [vmem:[%s2 + $0x90] sm:$0xff]
  %v994 = vld [vmem:[%s2 + $0x98] sm:$0xff]
  %v995 = vld [vmem:[%s2 + $0xa0] sm:$0xff]
  %v996 = vld [vmem:[%s2 + $0xa8] sm:$0xff]
  %v997 = vld [vmem:[%s2 + $0xb0] sm:$0xff]
  %v998 = vld [vmem:[%s2 + $0xb8] sm:$0xff]
  %v999 = vld [vmem:[%s2 + $0xc0] sm:$0xff]
  %v1000 = vld [vmem:[%s2 + $0xc8] sm:$0xff]
  %v1001 = vld [vmem:[%s2 + $0xd0] sm:$0xff]
  %v1002 = vld [vmem:[%s2 + $0xd8] sm:$0xff]
  %v1003 = vld [vmem:[%s2 + $0xe0] sm:$0xff]
  %v1004 = vld [vmem:[%s2 + $0xe8] sm:$0xff]
  %v1005 = vld [vmem:[%s2 + $0xf0] sm:$0xff]
  %v1006 = vld [vmem:[%s2 + $0xf8] sm:$0xff]
  %v1007 = vmul.f32 %v135, %v975
  %v1008 = vmul.f32 %v141, %v976
  %v1009 = vmul.f32 %v147, %v977
  %v1010 = vmul.f32 %v153, %v978
  %v1011 = vmul.f32 %v159, %v979
  %v1012 = vmul.f32 %v165, %v980
  %v1013 = vmul.f32 %v171, %v981
  %v1014 = vmul.f32 %v177, %v982
  %v1015 = vmul.f32 %v135, %v983
  %v1016 = vmul.f32 %v141, %v984
  %v1017 = vmul.f32 %v147, %v985
  %v1018 = vmul.f32 %v153, %v986
  %v1019 = vmul.f32 %v159, %v987
  %v1020 = vmul.f32 %v165, %v988
  %v1021 = vmul.f32 %v171, %v989
  %v1022 = vmul.f32 %v177, %v990
  %v1023 = vmul.f32 %v135, %v991
  %v1024 = vmul.f32 %v141, %v992
  %v1025 = vmul.f32 %v147, %v993
  %v1026 = vmul.f32 %v153, %v994
  %v1027 = vmul.f32 %v159, %v995
  %v1028 = vmul.f32 %v165, %v996
  %v1029 = vmul.f32 %v171, %v997
  %v1030 = vmul.f32 %v177, %v998
  %v1031 = vmul.f32 %v135, %v999
  %v1032 = vmul.f32 %v141, %v1000
  %v1033 = vmul.f32 %v147, %v1001
  %v1034 = vmul.f32 %v153, %v1002
  %v1035 = vmul.f32 %v159, %v1003
  %v1036 = vmul.f32 %v165, %v1004
  %v1037 = vmul.f32 %v171, %v1005
  %v1038 = vmul.f32 %v177, %v1006
  %1039 = vst [vmem:[#allocation3] sm:$0xff] %v1007
  %1040 = vst [vmem:[#allocation3 + $0x8] sm:$0xff] %v1008
  %1041 = vst [vmem:[#allocation3 + $0x10] sm:$0xff] %v1009
  %1042 = vst [vmem:[#allocation3 + $0x18] sm:$0xff] %v1010
  %1043 = vst [vmem:[#allocation3 + $0x20] sm:$0xff] %v1011
  %1044 = vst [vmem:[#allocation3 + $0x28] sm:$0xff] %v1012
  %1045 = vst [vmem:[#allocation3 + $0x30] sm:$0xff] %v1013
  %1046 = vst [vmem:[#allocation3 + $0x38] sm:$0xff] %v1014
  %1047 = vst [vmem:[#allocation3 + $0x40] sm:$0xff] %v1015
  %1048 = vst [vmem:[#allocation3 + $0x48] sm:$0xff] %v1016
  %1049 = vst [vmem:[#allocation3 + $0x50] sm:$0xff] %v1017
  %1050 = vst [vmem:[#allocation3 + $0x58] sm:$0xff] %v1018
  %1051 = vst [vmem:[#allocation3 + $0x60] sm:$0xff] %v1019
  %1052 = vst [vmem:[#allocation3 + $0x68] sm:$0xff] %v1020
  %1053 = vst [vmem:[#allocation3 + $0x70] sm:$0xff] %v1021
  %1054 = vst [vmem:[#allocation3 + $0x78] sm:$0xff] %v1022
  %1055 = vst [vmem:[#allocation3 + $0x80] sm:$0xff] %v1023
  %1056 = vst [vmem:[#allocation3 + $0x88] sm:$0xff] %v1024
  %1057 = vst [vmem:[#allocation3 + $0x90] sm:$0xff] %v1025
  %1058 = vst [vmem:[#allocation3 + $0x98] sm:$0xff] %v1026
  %1059 = vst [vmem:[#allocation3 + $0xa0] sm:$0xff] %v1027
  %1060 = vst [vmem:[#allocation3 + $0xa8] sm:$0xff] %v1028
  %1061 = vst [vmem:[#allocation3 + $0xb0] sm:$0xff] %v1029
  %1062 = vst [vmem:[#allocation3 + $0xb8] sm:$0xff] %v1030
  %1063 = vst [vmem:[#allocation3 + $0xc0] sm:$0xff] %v1031
  %1064 = vst [vmem:[#allocation3 + $0xc8] sm:$0xff] %v1032
  %1065 = vst [vmem:[#allocation3 + $0xd0] sm:$0xff] %v1033
  %1066 = vst [vmem:[#allocation3 + $0xd8] sm:$0xff] %v1034
  %1067 = vst [vmem:[#allocation3 + $0xe0] sm:$0xff] %v1035
  %1068 = vst [vmem:[#allocation3 + $0xe8] sm:$0xff] %v1036
  %1069 = vst [vmem:[#allocation3 + $0xf0] sm:$0xff] %v1037
  %1070 = vst [vmem:[#allocation3 + $0xf8] sm:$0xff] %v1038
  %v1071 = vld [vmem:[#allocation2] sm:$0xff]
  %v1072 = vld [vmem:[#allocation2 + $0x8] sm:$0xff]
  %v1073 = vld [vmem:[#allocation2 + $0x10] sm:$0xff]
  %v1074 = vld [vmem:[#allocation2 + $0x18] sm:$0xff]
  %v1075 = vld [vmem:[#allocation2 + $0x20] sm:$0xff]
  %v1076 = vld [vmem:[#allocation2 + $0x28] sm:$0xff]
  %v1077 = vld [vmem:[#allocation2 + $0x30] sm:$0xff]
  %v1078 = vld [vmem:[#allocation2 + $0x38] sm:$0xff]
  %v1079 = vld [vmem:[#allocation2 + $0x40] sm:$0xff]
  %v1080 = vld [vmem:[#allocation2 + $0x48] sm:$0xff]
  %v1081 = vld [vmem:[#allocation2 + $0x50] sm:$0xff]
  %v1082 = vld [vmem:[#allocation2 + $0x58] sm:$0xff]
  %v1083 = vld [vmem:[#allocation2 + $0x60] sm:$0xff]
  %v1084 = vld [vmem:[#allocation2 + $0x68] sm:$0xff]
  %v1085 = vld [vmem:[#allocation2 + $0x70] sm:$0xff]
  %v1086 = vld [vmem:[#allocation2 + $0x78] sm:$0xff]
  %v1087 = vld [vmem:[#allocation3] sm:$0xff]
  %v1088 = vld [vmem:[#allocation3 + $0x8] sm:$0xff]
  %v1089 = vld [vmem:[#allocation3 + $0x10] sm:$0xff]
  %v1090 = vld [vmem:[#allocation3 + $0x18] sm:$0xff]
  %v1091 = vld [vmem:[#allocation3 + $0x20] sm:$0xff]
  %v1092 = vld [vmem:[#allocation3 + $0x28] sm:$0xff]
  %v1093 = vld [vmem:[#allocation3 + $0x30] sm:$0xff]
  %v1094 = vld [vmem:[#allocation3 + $0x38] sm:$0xff]
  %v1095 = vld [vmem:[#allocation3 + $0x40] sm:$0xff]
  %v1096 = vld [vmem:[#allocation3 + $0x48] sm:$0xff]
  %v1097 = vld [vmem:[#allocation3 + $0x50] sm:$0xff]
  %v1098 = vld [vmem:[#allocation3 + $0x58] sm:$0xff]
  %v1099 = vld [vmem:[#allocation3 + $0x60] sm:$0xff]
  %v1100 = vld [vmem:[#allocation3 + $0x68] sm:$0xff]
  %v1101 = vld [vmem:[#allocation3 + $0x70] sm:$0xff]
  %v1102 = vld [vmem:[#allocation3 + $0x78] sm:$0xff]
  %v1103 = vld [vmem:[#allocation3 + $0x80] sm:$0xff]
  %v1104 = vld [vmem:[#allocation3 + $0x88] sm:$0xff]
  %v1105 = vld [vmem:[#allocation3 + $0x90] sm:$0xff]
  %v1106 = vld [vmem:[#allocation3 + $0x98] sm:$0xff]
  %v1107 = vld [vmem:[#allocation3 + $0xa0] sm:$0xff]
  %v1108 = vld [vmem:[#allocation3 + $0xa8] sm:$0xff]
  %v1109 = vld [vmem:[#allocation3 + $0xb0] sm:$0xff]
  %v1110 = vld [vmem:[#allocation3 + $0xb8] sm:$0xff]
  %v1111 = vld [vmem:[#allocation3 + $0xc0] sm:$0xff]
  %v1112 = vld [vmem:[#allocation3 + $0xc8] sm:$0xff]
  %v1113 = vld [vmem:[#allocation3 + $0xd0] sm:$0xff]
  %v1114 = vld [vmem:[#allocation3 + $0xd8] sm:$0xff]
  %v1115 = vld [vmem:[#allocation3 + $0xe0] sm:$0xff]
  %v1116 = vld [vmem:[#allocation3 + $0xe8] sm:$0xff]
  %v1117 = vld [vmem:[#allocation3 + $0xf0] sm:$0xff]
  %v1118 = vld [vmem:[#allocation3 + $0xf8] sm:$0xff]
  %1119 = vmatprep.subr.mxu0 0.0
  %1120 = vmatpush1.msra.mxu0 %v1087
  %1121 = vmatprep.subr.mxu0 0.0
  %1122 = vmatpush1.msra.mxu0 %v1088
  %1123 = vmatprep.subr.mxu0 0.0
  %1124 = vmatpush1.msra.mxu0 %v1089
  %1125 = vmatprep.subr.mxu0 0.0
  %1126 = vmatpush1.msra.mxu0 %v1090
  %1127 = vmatprep.subr.mxu0 0.0
  %1128 = vmatpush1.msra.mxu0 %v1091
  %1129 = vmatprep.subr.mxu0 0.0
  %1130 = vmatpush1.msra.mxu0 %v1092
  %1131 = vmatprep.subr.mxu0 0.0
  %1132 = vmatpush1.msra.mxu0 %v1093
  %1133 = vmatprep.subr.mxu0 0.0
  %1134 = vmatpush1.msra.mxu0 %v1094
  %1135 = vmatprep.subr.mxu0 0.0
  %1136 = vmatpush1.msra.mxu0 %v1095
  %1137 = vmatprep.subr.mxu0 0.0
  %1138 = vmatpush1.msra.mxu0 %v1096
  %1139 = vmatprep.subr.mxu0 0.0
  %1140 = vmatpush1.msra.mxu0 %v1097
  %1141 = vmatprep.subr.mxu0 0.0
  %1142 = vmatpush1.msra.mxu0 %v1098
  %1143 = vmatprep.subr.mxu0 0.0
  %1144 = vmatpush1.msra.mxu0 %v1099
  %1145 = vmatprep.subr.mxu0 0.0
  %1146 = vmatpush1.msra.mxu0 %v1100
  %1147 = vmatprep.subr.mxu0 0.0
  %1148 = vmatpush1.msra.mxu0 %v1101
  %1149 = vmatprep.subr.mxu0 0.0
  %1150 = vmatpush1.msra.mxu0 %v1102
  %1151 = vmatprep.subr.mxu0 0.0
  %1152 = vmatpush1.msra.mxu0 %v1103
  %1153 = vmatprep.subr.mxu0 0.0
  %1154 = vmatpush1.msra.mxu0 %v1104
  %1155 = vmatprep.subr.mxu0 0.0
  %1156 = vmatpush1.msra.mxu0 %v1105
  %1157 = vmatprep.subr.mxu0 0.0
  %1158 = vmatpush1.msra.mxu0 %v1106
  %1159 = vmatprep.subr.mxu0 0.0
  %1160 = vmatpush1.msra.mxu0 %v1107
  %1161 = vmatprep.subr.mxu0 0.0
  %1162 = vmatpush1.msra.mxu0 %v1108
  %1163 = vmatprep.subr.mxu0 0.0
  %1164 = vmatpush1.msra.mxu0 %v1109
  %1165 = vmatprep.subr.mxu0 0.0
  %1166 = vmatpush1.msra.mxu0 %v1110
  %1167 = vmatprep.subr.mxu0 0.0
  %1168 = vmatpush1.msra.mxu0 %v1111
  %1169 = vmatprep.subr.mxu0 0.0
  %1170 = vmatpush1.msra.mxu0 %v1112
  %1171 = vmatprep.subr.mxu0 0.0
  %1172 = vmatpush1.msra.mxu0 %v1113
  %1173 = vmatprep.subr.mxu0 0.0
  %1174 = vmatpush1.msra.mxu0 %v1114
  %1175 = vmatprep.subr.mxu0 0.0
  %1176 = vmatpush1.msra.mxu0 %v1115
  %1177 = vmatprep.subr.mxu0 0.0
  %1178 = vmatpush1.msra.mxu0 %v1116
  %1179 = vmatprep.subr.mxu0 0.0
  %1180 = vmatpush1.msra.mxu0 %v1117
  %1181 = vmatprep.subr.mxu0 0.0
  %1182 = vmatpush1.msra.mxu0 %v1118
  %1183 = vmatprep.mubr.f32.mxu0 %v1072
  %1184 = vmatmul.mubr.f32.gmra.mrb[0].mxu0 %v1071
  %v1185 = vpop.f32.mrb[0].mxu0
  %v1186 = vadd.f32 0.0, %v1185
  %v1187 = vpop.f32.mrb[0].mxu0
  %1188 = vmatprep.mubr.f32.mxu0 %v1074
  %1189 = vmatmul.mubr.f32.gmra.mrb[0].mxu0 %v1073
  %v1190 = vpop.f32.mrb[0].mxu0
  %v1191 = vadd.f32 0.0, %v1190
  %v1192 = vpop.f32.mrb[0].mxu0
  %1193 = vmatprep.mubr.f32.mxu0 %v1076
  %1194 = vmatmul.mubr.f32.gmra.mrb[0].mxu0 %v1075
  %v1195 = vpop.f32.mrb[0].mxu0
  %v1196 = vadd.f32 0.0, %v1195
  %v1197 = vpop.f32.mrb[0].mxu0
  %1198 = vmatprep.mubr.f32.mxu0 %v1078
  %1199 = vmatmul.mubr.f32.gmra.mrb[0].mxu0 %v1077
  %v1200 = vpop.f32.mrb[0].mxu0
  %v1201 = vadd.f32 0.0, %v1200
  %v1202 = vpop.f32.mrb[0].mxu0
  %1203 = vmatprep.mubr.f32.mxu0 %v1080
  %1204 = vmatmul.mubr.f32.gmra.mrb[0].mxu0 %v1079
  %v1205 = vpop.f32.mrb[0].mxu0
  %v1206 = vadd.f32 0.0, %v1205
  %v1207 = vpop.f32.mrb[0].mxu0
  %1208 = vmatprep.mubr.f32.mxu0 %v1082
  %1209 = vmatmul.mubr.f32.gmra.mrb[0].mxu0 %v1081
  %v1210 = vpop.f32.mrb[0].mxu0
  %v1211 = vadd.f32 0.0, %v1210
  %v1212 = vpop.f32.mrb[0].mxu0
  %1213 = vmatprep.mubr.f32.mxu0 %v1084
  %1214 = vmatmul.mubr.f32.gmra.mrb[0].mxu0 %v1083
  %v1215 = vpop.f32.mrb[0].mxu0
  %v1216 = vadd.f32 0.0, %v1215
  %v1217 = vpop.f32.mrb[0].mxu0
  %1218 = vmatprep.mubr.f32.mxu0 %v1086
  %1219 = vmatmul.mubr.f32.gmra.mrb[0].mxu0 %v1085
  %v1220 = vpop.f32.mrb[0].mxu0
  %v1221 = vadd.f32 0.0, %v1220
  %v1222 = vpop.f32.mrb[0].mxu0
  %1223 = vdwg.mxu0
  %vm1224 = vcmp.gt.f32.partialorder %v1186, 0.0
  %vm1225 = vcmp.gt.f32.partialorder %v1191, 0.0
  %vm1226 = vcmp.gt.f32.partialorder %v1196, 0.0
  %vm1227 = vcmp.gt.f32.partialorder %v1201, 0.0
  %vm1228 = vcmp.gt.f32.partialorder %v1206, 0.0
  %vm1229 = vcmp.gt.f32.partialorder %v1211, 0.0
  %vm1230 = vcmp.gt.f32.partialorder %v1216, 0.0
  %vm1231 = vcmp.gt.f32.partialorder %v1221, 0.0
  %v1232 = vmul.f32 %v1186, 0.1
  %v1233 = vmul.f32 %v1191, 0.1
  %v1234 = vmul.f32 %v1196, 0.1
  %v1235 = vmul.f32 %v1201, 0.1
  %v1236 = vmul.f32 %v1206, 0.1
  %v1237 = vmul.f32 %v1211, 0.1
  %v1238 = vmul.f32 %v1216, 0.1
  %v1239 = vmul.f32 %v1221, 0.1
  %v1240 = vsel %vm1224, %v1186, %v1232
  %v1241 = vsel %vm1225, %v1191, %v1233
  %v1242 = vsel %vm1226, %v1196, %v1234
  %v1243 = vsel %vm1227, %v1201, %v1235
  %v1244 = vsel %vm1228, %v1206, %v1236
  %v1245 = vsel %vm1229, %v1211, %v1237
  %v1246 = vsel %vm1230, %v1216, %v1238
  %v1247 = vsel %vm1231, %v1221, %v1239
  %v1248 = vld [vmem:[%s4] sm:$0xff]
  %v1249 = vld [vmem:[%s4 + $0x8] sm:$0xff]
  %v1250 = vld [vmem:[%s4 + $0x10] sm:$0xff]
  %v1251 = vld [vmem:[%s4 + $0x18] sm:$0xff]
  %v1252 = vld [vmem:[%s4 + $0x20] sm:$0xff]
  %v1253 = vld [vmem:[%s4 + $0x28] sm:$0xff]
  %v1254 = vld [vmem:[%s4 + $0x30] sm:$0xff]
  %v1255 = vld [vmem:[%s4 + $0x38] sm:$0xff]
  %v1256 = vld [vmem:[%s4 + $0x40] sm:$0xff]
  %v1257 = vld [vmem:[%s4 + $0x48] sm:$0xff]
  %v1258 = vld [vmem:[%s4 + $0x50] sm:$0xff]
  %v1259 = vld [vmem:[%s4 + $0x58] sm:$0xff]
  %v1260 = vld [vmem:[%s4 + $0x60] sm:$0xff]
  %v1261 = vld [vmem:[%s4 + $0x68] sm:$0xff]
  %v1262 = vld [vmem:[%s4 + $0x70] sm:$0xff]
  %v1263 = vld [vmem:[%s4 + $0x78] sm:$0xff]
  %v1264 = vld [vmem:[%s4 + $0x80] sm:$0xff]
  %v1265 = vld [vmem:[%s4 + $0x88] sm:$0xff]
  %v1266 = vld [vmem:[%s4 + $0x90] sm:$0xff]
  %v1267 = vld [vmem:[%s4 + $0x98] sm:$0xff]
  %v1268 = vld [vmem:[%s4 + $0xa0] sm:$0xff]
  %v1269 = vld [vmem:[%s4 + $0xa8] sm:$0xff]
  %v1270 = vld [vmem:[%s4 + $0xb0] sm:$0xff]
  %v1271 = vld [vmem:[%s4 + $0xb8] sm:$0xff]
  %v1272 = vld [vmem:[%s4 + $0xc0] sm:$0xff]
  %v1273 = vld [vmem:[%s4 + $0xc8] sm:$0xff]
  %v1274 = vld [vmem:[%s4 + $0xd0] sm:$0xff]
  %v1275 = vld [vmem:[%s4 + $0xd8] sm:$0xff]
  %v1276 = vld [vmem:[%s4 + $0xe0] sm:$0xff]
  %v1277 = vld [vmem:[%s4 + $0xe8] sm:$0xff]
  %v1278 = vld [vmem:[%s4 + $0xf0] sm:$0xff]
  %v1279 = vld [vmem:[%s4 + $0xf8] sm:$0xff]
  %1280 = vmatprep.subr.mxu0 %v1249
  %1281 = vmatpush1.msra.mxu0 %v1248
  %1282 = vmatprep.subr.mxu0 %v1251
  %1283 = vmatpush1.msra.mxu0 %v1250
  %1284 = vmatprep.subr.mxu0 %v1253
  %1285 = vmatpush1.msra.mxu0 %v1252
  %1286 = vmatprep.subr.mxu0 %v1255
  %1287 = vmatpush1.msra.mxu0 %v1254
  %1288 = vmatprep.subr.mxu0 %v1257
  %1289 = vmatpush1.msra.mxu0 %v1256
  %1290 = vmatprep.subr.mxu0 %v1259
  %1291 = vmatpush1.msra.mxu0 %v1258
  %1292 = vmatprep.subr.mxu0 %v1261
  %1293 = vmatpush1.msra.mxu0 %v1260
  %1294 = vmatprep.subr.mxu0 %v1263
  %1295 = vmatpush1.msra.mxu0 %v1262
  %1296 = vmatprep.subr.mxu0 %v1265
  %1297 = vmatpush1.msra.mxu0 %v1264
  %1298 = vmatprep.subr.mxu0 %v1267
  %1299 = vmatpush1.msra.mxu0 %v1266
  %1300 = vmatprep.subr.mxu0 %v1269
  %1301 = vmatpush1.msra.mxu0 %v1268
  %1302 = vmatprep.subr.mxu0 %v1271
  %1303 = vmatpush1.msra.mxu0 %v1270
  %1304 = vmatprep.subr.mxu0 %v1273
  %1305 = vmatpush1.msra.mxu0 %v1272
  %1306 = vmatprep.subr.mxu0 %v1275
  %1307 = vmatpush1.msra.mxu0 %v1274
  %1308 = vmatprep.subr.mxu0 %v1277
  %1309 = vmatpush1.msra.mxu0 %v1276
  %1310 = vmatprep.subr.mxu0 %v1279
  %1311 = vmatpush1.msra.mxu0 %v1278
  %1312 = vmatprep.subr.mxu0 0.0
  %1313 = vmatpush1.msra.mxu0 0.0
  %1314 = vmatprep.subr.mxu0 0.0
  %1315 = vmatpush1.msra.mxu0 0.0
  %1316 = vmatprep.subr.mxu0 0.0
  %1317 = vmatpush1.msra.mxu0 0.0
  %1318 = vmatprep.subr.mxu0 0.0
  %1319 = vmatpush1.msra.mxu0 0.0
  %1320 = vmatprep.subr.mxu0 0.0
  %1321 = vmatpush1.msra.mxu0 0.0
  %1322 = vmatprep.subr.mxu0 0.0
  %1323 = vmatpush1.msra.mxu0 0.0
  %1324 = vmatprep.subr.mxu0 0.0
  %1325 = vmatpush1.msra.mxu0 0.0
  %1326 = vmatprep.subr.mxu0 0.0
  %1327 = vmatpush1.msra.mxu0 0.0
  %1328 = vmatprep.subr.mxu0 0.0
  %1329 = vmatpush1.msra.mxu0 0.0
  %1330 = vmatprep.subr.mxu0 0.0
  %1331 = vmatpush1.msra.mxu0 0.0
  %1332 = vmatprep.subr.mxu0 0.0
  %1333 = vmatpush1.msra.mxu0 0.0
  %1334 = vmatprep.subr.mxu0 0.0
  %1335 = vmatpush1.msra.mxu0 0.0
  %1336 = vmatprep.subr.mxu0 0.0
  %1337 = vmatpush1.msra.mxu0 0.0
  %1338 = vmatprep.subr.mxu0 0.0
  %1339 = vmatpush1.msra.mxu0 0.0
  %1340 = vmatprep.subr.mxu0 0.0
  %1341 = vmatpush1.msra.mxu0 0.0
  %1342 = vmatprep.subr.mxu0 0.0
  %1343 = vmatpush1.msra.mxu0 0.0
  %1344 = vmatprep.mubr.f32.mxu0 0.0
  %1345 = vmatmul.mubr.f32.gmra.mrb[0].mxu0 %v1240
  %v1346 = vpop.f32.mrb[0].mxu0
  %v1347 = vadd.f32 0.0, %v1346
  %v1348 = vpop.f32.mrb[0].mxu0
  %v1349 = vadd.f32 0.0, %v1348
  %1350 = vmatprep.mubr.f32.mxu0 0.0
  %1351 = vmatmul.mubr.f32.gmra.mrb[0].mxu0 %v1241
  %v1352 = vpop.f32.mrb[0].mxu0
  %v1353 = vadd.f32 0.0, %v1352
  %v1354 = vpop.f32.mrb[0].mxu0
  %v1355 = vadd.f32 0.0, %v1354
  %1356 = vmatprep.mubr.f32.mxu0 0.0
  %1357 = vmatmul.mubr.f32.gmra.mrb[0].mxu0 %v1242
  %v1358 = vpop.f32.mrb[0].mxu0
  %v1359 = vadd.f32 0.0, %v1358
  %v1360 = vpop.f32.mrb[0].mxu0
  %v1361 = vadd.f32 0.0, %v1360
  %1362 = vmatprep.mubr.f32.mxu0 0.0
  %1363 = vmatmul.mubr.f32.gmra.mrb[0].mxu0 %v1243
  %v1364 = vpop.f32.mrb[0].mxu0
  %v1365 = vadd.f32 0.0, %v1364
  %v1366 = vpop.f32.mrb[0].mxu0
  %v1367 = vadd.f32 0.0, %v1366
  %1368 = vmatprep.mubr.f32.mxu0 0.0
  %1369 = vmatmul.mubr.f32.gmra.mrb[0].mxu0 %v1244
  %v1370 = vpop.f32.mrb[0].mxu0
  %v1371 = vadd.f32 0.0, %v1370
  %v1372 = vpop.f32.mrb[0].mxu0
  %v1373 = vadd.f32 0.0, %v1372
  %1374 = vmatprep.mubr.f32.mxu0 0.0
  %1375 = vmatmul.mubr.f32.gmra.mrb[0].mxu0 %v1245
  %v1376 = vpop.f32.mrb[0].mxu0
  %v1377 = vadd.f32 0.0, %v1376
  %v1378 = vpop.f32.mrb[0].mxu0
  %v1379 = vadd.f32 0.0, %v1378
  %1380 = vmatprep.mubr.f32.mxu0 0.0
  %1381 = vmatmul.mubr.f32.gmra.mrb[0].mxu0 %v1246
  %v1382 = vpop.f32.mrb[0].mxu0
  %v1383 = vadd.f32 0.0, %v1382
  %v1384 = vpop.f32.mrb[0].mxu0
  %v1385 = vadd.f32 0.0, %v1384
  %1386 = vmatprep.mubr.f32.mxu0 0.0
  %1387 = vmatmul.mubr.f32.gmra.mrb[0].mxu0 %v1247
  %v1388 = vpop.f32.mrb[0].mxu0
  %v1389 = vadd.f32 0.0, %v1388
  %v1390 = vpop.f32.mrb[0].mxu0
  %v1391 = vadd.f32 0.0, %v1390
  %1392 = vdwg.mxu0
  %1393 = vxpose.xlu0.b32.start [1/16] %v1349, 128
  %1394 = vxpose.xlu0.b32.cont [2/16] %v1355, 128
  %1395 = vxpose.xlu0.b32.cont [3/16] %v1361, 128
  %1396 = vxpose.xlu0.b32.cont [4/16] %v1367, 128
  %1397 = vxpose.xlu0.b32.cont [5/16] %v1373, 128
  %1398 = vxpose.xlu0.b32.cont [6/16] %v1379, 128
  %1399 = vxpose.xlu0.b32.cont [7/16] %v1385, 128
  %1400 = vxpose.xlu0.b32.cont [8/16] %v1391, 128
  %1401 = vxpose.xlu0.b32.cont [9/16] 0.0, 128
  %1402 = vxpose.xlu0.b32.cont [10/16] 0.0, 128
  %1403 = vxpose.xlu0.b32.cont [11/16] 0.0, 128
  %1404 = vxpose.xlu0.b32.cont [12/16] 0.0, 128
  %1405 = vxpose.xlu0.b32.cont [13/16] 0.0, 128
  %1406 = vxpose.xlu0.b32.cont [14/16] 0.0, 128
  %1407 = vxpose.xlu0.b32.cont [15/16] 0.0, 128
  %1408 = vxpose.xlu0.b32.end [16/16] 0.0, 128
  %v1409 = vpop.trf.xlu0
  %v1410 = vpop.trf.xlu0
  %v1411 = vpop.trf.xlu0
  %v1412 = vpop.trf.xlu0
  %v1413 = vpop.trf.xlu0
  %v1414 = vpop.trf.xlu0
  %v1415 = vpop.trf.xlu0
  %v1416 = vpop.trf.xlu0
  %v1417 = vpop.trf.xlu0
  %v1418 = vpop.trf.xlu0
  %v1419 = vpop.trf.xlu0
  %v1420 = vpop.trf.xlu0
  %v1421 = vpop.trf.xlu0
  %v1422 = vpop.trf.xlu0
  %v1423 = vpop.trf.xlu0
  %v1424 = vpop.trf.xlu0
  %1426 = vset.pattern.permute.xlu0 0
  %1427 = vperm.xlu0 %1426, %v1349
  %v1428 = vpop.permute.xlu0 %1427
  %1431 = vset.pattern.permute.xlu0 0
  %1432 = vperm.xlu0 %1431, %v1355
  %v1433 = vpop.permute.xlu0 %1432
  %1436 = vset.pattern.permute.xlu0 0
  %1437 = vperm.xlu0 %1436, %v1361
  %v1438 = vpop.permute.xlu0 %1437
  %1441 = vset.pattern.permute.xlu0 0
  %1442 = vperm.xlu0 %1441, %v1367
  %v1443 = vpop.permute.xlu0 %1442
  %1446 = vset.pattern.permute.xlu0 0
  %1447 = vperm.xlu0 %1446, %v1373
  %v1448 = vpop.permute.xlu0 %1447
  %1451 = vset.pattern.permute.xlu0 0
  %1452 = vperm.xlu0 %1451, %v1379
  %v1453 = vpop.permute.xlu0 %1452
  %1456 = vset.pattern.permute.xlu0 0
  %1457 = vperm.xlu0 %1456, %v1385
  %v1458 = vpop.permute.xlu0 %1457
  %1461 = vset.pattern.permute.xlu0 0
  %1462 = vperm.xlu0 %1461, %v1391
  %v1463 = vpop.permute.xlu0 %1462
  %v1465 = vlaneseq
  %v1466 = vshrl.u32 %v1465, 7
  %v1467 = vsub.s32 4, %v1466
  %v1468 = vrot.slane %v1409, %v1467
  %v1469 = vadd.f32 %v1428, %v1468
  %v1470 = vadd.f32 %v1433, %v1468
  %v1471 = vadd.f32 %v1438, %v1468
  %v1472 = vadd.f32 %v1443, %v1468
  %v1473 = vadd.f32 %v1448, %v1468
  %v1474 = vadd.f32 %v1453, %v1468
  %v1475 = vadd.f32 %v1458, %v1468
  %v1476 = vadd.f32 %v1463, %v1468
  %vm1477 = vcmp.gt.f32.partialorder %v1469, 0.0
  %vm1478 = vcmp.gt.f32.partialorder %v1470, 0.0
  %vm1479 = vcmp.gt.f32.partialorder %v1471, 0.0
  %vm1480 = vcmp.gt.f32.partialorder %v1472, 0.0
  %vm1481 = vcmp.gt.f32.partialorder %v1473, 0.0
  %vm1482 = vcmp.gt.f32.partialorder %v1474, 0.0
  %vm1483 = vcmp.gt.f32.partialorder %v1475, 0.0
  %vm1484 = vcmp.gt.f32.partialorder %v1476, 0.0
  %v1485 = vmul.f32 %v1469, 0.01
  %v1486 = vmul.f32 %v1470, 0.01
  %v1487 = vmul.f32 %v1471, 0.01
  %v1488 = vmul.f32 %v1472, 0.01
  %v1489 = vmul.f32 %v1473, 0.01
  %v1490 = vmul.f32 %v1474, 0.01
  %v1491 = vmul.f32 %v1475, 0.01
  %v1492 = vmul.f32 %v1476, 0.01
  %v1493 = vsel %vm1477, %v1469, %v1485
  %v1494 = vsel %vm1478, %v1470, %v1486
  %v1495 = vsel %vm1479, %v1471, %v1487
  %v1496 = vsel %vm1480, %v1472, %v1488
  %v1497 = vsel %vm1481, %v1473, %v1489
  %v1498 = vsel %vm1482, %v1474, %v1490
  %v1499 = vsel %vm1483, %v1475, %v1491
  %v1500 = vsel %vm1484, %v1476, %v1492
  %v1501 = vadd.f32 %v1493, %v23
  %v1502 = vadd.f32 %v1494, %v24
  %v1503 = vadd.f32 %v1495, %v25
  %v1504 = vadd.f32 %v1496, %v26
  %v1505 = vadd.f32 %v1497, %v27
  %v1506 = vadd.f32 %v1498, %v28
  %v1507 = vadd.f32 %v1499, %v29
  %v1508 = vadd.f32 %v1500, %v30
  %v1509 = vsel %vm297, %v1501, -inf
  %1510 = vmax.xlane.f32.xlu0 %v1509
  %v1511 = vpop.xlane.xlu0 %1510
  %v1512 = vsel %vm297, %v1502, -inf
  %1513 = vmax.xlane.f32.xlu0 %v1512
  %v1514 = vpop.xlane.xlu0 %1513
  %v1515 = vsel %vm297, %v1503, -inf
  %1516 = vmax.xlane.f32.xlu0 %v1515
  %v1517 = vpop.xlane.xlu0 %1516
  %v1518 = vsel %vm297, %v1504, -inf
  %1519 = vmax.xlane.f32.xlu0 %v1518
  %v1520 = vpop.xlane.xlu0 %1519
  %v1521 = vsel %vm297, %v1505, -inf
  %1522 = vmax.xlane.f32.xlu0 %v1521
  %v1523 = vpop.xlane.xlu0 %1522
  %v1524 = vsel %vm297, %v1506, -inf
  %1525 = vmax.xlane.f32.xlu0 %v1524
  %v1526 = vpop.xlane.xlu0 %1525
  %v1527 = vsel %vm297, %v1507, -inf
  %1528 = vmax.xlane.f32.xlu0 %v1527
  %v1529 = vpop.xlane.xlu0 %1528
  %v1530 = vsel %vm297, %v1508, -inf
  %1531 = vmax.xlane.f32.xlu0 %v1530
  %v1532 = vpop.xlane.xlu0 %1531
  %v1533 = vsub.f32 %v1501, %v1511
  %v1534 = vsub.f32 %v1502, %v1514
  %v1535 = vsub.f32 %v1503, %v1517
  %v1536 = vsub.f32 %v1504, %v1520
  %v1537 = vsub.f32 %v1505, %v1523
  %v1538 = vsub.f32 %v1506, %v1526
  %v1539 = vsub.f32 %v1507, %v1529
  %v1540 = vsub.f32 %v1508, %v1532
  %v1541 = vmul.f32 %v1533, 1.442695
  %v1542 = vpow.pop %v1541
  %v1543 = vmul.f32 %v1534, 1.442695
  %v1544 = vpow.pop %v1543
  %v1545 = vmul.f32 %v1535, 1.442695
  %v1546 = vpow.pop %v1545
  %v1547 = vmul.f32 %v1536, 1.442695
  %v1548 = vpow.pop %v1547
  %v1549 = vmul.f32 %v1537, 1.442695
  %v1550 = vpow.pop %v1549
  %v1551 = vmul.f32 %v1538, 1.442695
  %v1552 = vpow.pop %v1551
  %v1553 = vmul.f32 %v1539, 1.442695
  %v1554 = vpow.pop %v1553
  %v1555 = vmul.f32 %v1540, 1.442695
  %v1556 = vpow.pop %v1555
  %v1557 = vsel %vm297, %v1542, 0.0
  %1558 = vadd.xlane.f32.xlu0 %v1557
  %v1559 = vpop.xlane.xlu0 %1558
  %v1560 = vsel %vm297, %v1544, 0.0
  %1561 = vadd.xlane.f32.xlu0 %v1560
  %v1562 = vpop.xlane.xlu0 %1561
  %v1563 = vsel %vm297, %v1546, 0.0
  %1564 = vadd.xlane.f32.xlu0 %v1563
  %v1565 = vpop.xlane.xlu0 %1564
  %v1566 = vsel %vm297, %v1548, 0.0
  %1567 = vadd.xlane.f32.xlu0 %v1566
  %v1568 = vpop.xlane.xlu0 %1567
  %v1569 = vsel %vm297, %v1550, 0.0
  %1570 = vadd.xlane.f32.xlu0 %v1569
  %v1571 = vpop.xlane.xlu0 %1570
  %v1572 = vsel %vm297, %v1552, 0.0
  %1573 = vadd.xlane.f32.xlu0 %v1572
  %v1574 = vpop.xlane.xlu0 %1573
  %v1575 = vsel %vm297, %v1554, 0.0
  %1576 = vadd.xlane.f32.xlu0 %v1575
  %v1577 = vpop.xlane.xlu0 %1576
  %v1578 = vsel %vm297, %v1556, 0.0
  %1579 = vadd.xlane.f32.xlu0 %v1578
  %v1580 = vpop.xlane.xlu0 %1579
  %v1581 = vrcp.pop %v1559
  %v1582 = vrcp.pop %v1562
  %v1583 = vrcp.pop %v1565
  %v1584 = vrcp.pop %v1568
  %v1585 = vrcp.pop %v1571
  %v1586 = vrcp.pop %v1574
  %v1587 = vrcp.pop %v1577
  %v1588 = vrcp.pop %v1580
  %v1589 = vmul.f32 %v1542, %v1581
  %v1590 = vmul.f32 %v1544, %v1582
  %v1591 = vmul.f32 %v1546, %v1583
  %v1592 = vmul.f32 %v1548, %v1584
  %v1593 = vmul.f32 %v1550, %v1585
  %v1594 = vmul.f32 %v1552, %v1586
  %v1595 = vmul.f32 %v1554, %v1587
  %v1596 = vmul.f32 %v1556, %v1588
  %1597 = vst.msk [vmem:[#allocation2] sm:$0xff] %vm297, %v1589
  %1598 = vst.msk [vmem:[#allocation2 + $0x10] sm:$0xff] %vm297, %v1590
  %1599 = vst.msk [vmem:[#allocation2 + $0x20] sm:$0xff] %vm297, %v1591
  %1600 = vst.msk [vmem:[#allocation2 + $0x30] sm:$0xff] %vm297, %v1592
  %1601 = vst.msk [vmem:[#allocation2 + $0x40] sm:$0xff] %vm297, %v1593
  %1602 = vst.msk [vmem:[#allocation2 + $0x50] sm:$0xff] %vm297, %v1594
  %1603 = vst.msk [vmem:[#allocation2 + $0x60] sm:$0xff] %vm297, %v1595
  %1604 = vst.msk [vmem:[#allocation2 + $0x70] sm:$0xff] %vm297, %v1596
  %1605 = vset.pattern.permute.xlu0 1
  %1606 = vperm.xlu0 %1605, %v1349
  %v1607 = vpop.permute.xlu0 %1606
  %1609 = vset.pattern.permute.xlu0 1
  %1610 = vperm.xlu0 %1609, %v1355
  %v1611 = vpop.permute.xlu0 %1610
  %1613 = vset.pattern.permute.xlu0 1
  %1614 = vperm.xlu0 %1613, %v1361
  %v1615 = vpop.permute.xlu0 %1614
  %1617 = vset.pattern.permute.xlu0 1
  %1618 = vperm.xlu0 %1617, %v1367
  %v1619 = vpop.permute.xlu0 %1618
  %1621 = vset.pattern.permute.xlu0 1
  %1622 = vperm.xlu0 %1621, %v1373
  %v1623 = vpop.permute.xlu0 %1622
  %1625 = vset.pattern.permute.xlu0 1
  %1626 = vperm.xlu0 %1625, %v1379
  %v1627 = vpop.permute.xlu0 %1626
  %1629 = vset.pattern.permute.xlu0 1
  %1630 = vperm.xlu0 %1629, %v1385
  %v1631 = vpop.permute.xlu0 %1630
  %1633 = vset.pattern.permute.xlu0 1
  %1634 = vperm.xlu0 %1633, %v1391
  %v1635 = vpop.permute.xlu0 %1634
  %v1637 = vlaneseq
  %v1638 = vshrl.u32 %v1637, 7
  %v1639 = vsub.s32 5, %v1638
  %v1640 = vrot.slane %v1409, %v1639
  %v1641 = vadd.f32 %v1607, %v1640
  %v1642 = vadd.f32 %v1611, %v1640
  %v1643 = vadd.f32 %v1615, %v1640
  %v1644 = vadd.f32 %v1619, %v1640
  %v1645 = vadd.f32 %v1623, %v1640
  %v1646 = vadd.f32 %v1627, %v1640
  %v1647 = vadd.f32 %v1631, %v1640
  %v1648 = vadd.f32 %v1635, %v1640
  %vm1649 = vcmp.gt.f32.partialorder %v1641, 0.0
  %vm1650 = vcmp.gt.f32.partialorder %v1642, 0.0
  %vm1651 = vcmp.gt.f32.partialorder %v1643, 0.0
  %vm1652 = vcmp.gt.f32.partialorder %v1644, 0.0
  %vm1653 = vcmp.gt.f32.partialorder %v1645, 0.0
  %vm1654 = vcmp.gt.f32.partialorder %v1646, 0.0
  %vm1655 = vcmp.gt.f32.partialorder %v1647, 0.0
  %vm1656 = vcmp.gt.f32.partialorder %v1648, 0.0
  %v1657 = vmul.f32 %v1641, 0.01
  %v1658 = vmul.f32 %v1642, 0.01
  %v1659 = vmul.f32 %v1643, 0.01
  %v1660 = vmul.f32 %v1644, 0.01
  %v1661 = vmul.f32 %v1645, 0.01
  %v1662 = vmul.f32 %v1646, 0.01
  %v1663 = vmul.f32 %v1647, 0.01
  %v1664 = vmul.f32 %v1648, 0.01
  %v1665 = vsel %vm1649, %v1641, %v1657
  %v1666 = vsel %vm1650, %v1642, %v1658
  %v1667 = vsel %vm1651, %v1643, %v1659
  %v1668 = vsel %vm1652, %v1644, %v1660
  %v1669 = vsel %vm1653, %v1645, %v1661
  %v1670 = vsel %vm1654, %v1646, %v1662
  %v1671 = vsel %vm1655, %v1647, %v1663
  %v1672 = vsel %vm1656, %v1648, %v1664
  %v1673 = vadd.f32 %v1665, %v23
  %v1674 = vadd.f32 %v1666, %v24
  %v1675 = vadd.f32 %v1667, %v25
  %v1676 = vadd.f32 %v1668, %v26
  %v1677 = vadd.f32 %v1669, %v27
  %v1678 = vadd.f32 %v1670, %v28
  %v1679 = vadd.f32 %v1671, %v29
  %v1680 = vadd.f32 %v1672, %v30
  %v1681 = vsel %vm297, %v1673, -inf
  %1682 = vmax.xlane.f32.xlu0 %v1681
  %v1683 = vpop.xlane.xlu0 %1682
  %v1684 = vsel %vm297, %v1674, -inf
  %1685 = vmax.xlane.f32.xlu0 %v1684
  %v1686 = vpop.xlane.xlu0 %1685
  %v1687 = vsel %vm297, %v1675, -inf
  %1688 = vmax.xlane.f32.xlu0 %v1687
  %v1689 = vpop.xlane.xlu0 %1688
  %v1690 = vsel %vm297, %v1676, -inf
  %1691 = vmax.xlane.f32.xlu0 %v1690
  %v1692 = vpop.xlane.xlu0 %1691
  %v1693 = vsel %vm297, %v1677, -inf
  %1694 = vmax.xlane.f32.xlu0 %v1693
  %v1695 = vpop.xlane.xlu0 %1694
  %v1696 = vsel %vm297, %v1678, -inf
  %1697 = vmax.xlane.f32.xlu0 %v1696
  %v1698 = vpop.xlane.xlu0 %1697
  %v1699 = vsel %vm297, %v1679, -inf
  %1700 = vmax.xlane.f32.xlu0 %v1699
  %v1701 = vpop.xlane.xlu0 %1700
  %v1702 = vsel %vm297, %v1680, -inf
  %1703 = vmax.xlane.f32.xlu0 %v1702
  %v1704 = vpop.xlane.xlu0 %1703
  %v1705 = vsub.f32 %v1673, %v1683
  %v1706 = vsub.f32 %v1674, %v1686
  %v1707 = vsub.f32 %v1675, %v1689
  %v1708 = vsub.f32 %v1676, %v1692
  %v1709 = vsub.f32 %v1677, %v1695
  %v1710 = vsub.f32 %v1678, %v1698
  %v1711 = vsub.f32 %v1679, %v1701
  %v1712 = vsub.f32 %v1680, %v1704
  %v1713 = vmul.f32 %v1705, 1.442695
  %v1714 = vpow.pop %v1713
  %v1715 = vmul.f32 %v1706, 1.442695
  %v1716 = vpow.pop %v1715
  %v1717 = vmul.f32 %v1707, 1.442695
  %v1718 = vpow.pop %v1717
  %v1719 = vmul.f32 %v1708, 1.442695
  %v1720 = vpow.pop %v1719
  %v1721 = vmul.f32 %v1709, 1.442695
  %v1722 = vpow.pop %v1721
  %v1723 = vmul.f32 %v1710, 1.442695
  %v1724 = vpow.pop %v1723
  %v1725 = vmul.f32 %v1711, 1.442695
  %v1726 = vpow.pop %v1725
  %v1727 = vmul.f32 %v1712, 1.442695
  %v1728 = vpow.pop %v1727
  %v1729 = vsel %vm297, %v1714, 0.0
  %1730 = vadd.xlane.f32.xlu0 %v1729
  %v1731 = vpop.xlane.xlu0 %1730
  %v1732 = vsel %vm297, %v1716, 0.0
  %1733 = vadd.xlane.f32.xlu0 %v1732
  %v1734 = vpop.xlane.xlu0 %1733
  %v1735 = vsel %vm297, %v1718, 0.0
  %1736 = vadd.xlane.f32.xlu0 %v1735
  %v1737 = vpop.xlane.xlu0 %1736
  %v1738 = vsel %vm297, %v1720, 0.0
  %1739 = vadd.xlane.f32.xlu0 %v1738
  %v1740 = vpop.xlane.xlu0 %1739
  %v1741 = vsel %vm297, %v1722, 0.0
  %1742 = vadd.xlane.f32.xlu0 %v1741
  %v1743 = vpop.xlane.xlu0 %1742
  %v1744 = vsel %vm297, %v1724, 0.0
  %1745 = vadd.xlane.f32.xlu0 %v1744
  %v1746 = vpop.xlane.xlu0 %1745
  %v1747 = vsel %vm297, %v1726, 0.0
  %1748 = vadd.xlane.f32.xlu0 %v1747
  %v1749 = vpop.xlane.xlu0 %1748
  %v1750 = vsel %vm297, %v1728, 0.0
  %1751 = vadd.xlane.f32.xlu0 %v1750
  %v1752 = vpop.xlane.xlu0 %1751
  %v1753 = vrcp.pop %v1731
  %v1754 = vrcp.pop %v1734
  %v1755 = vrcp.pop %v1737
  %v1756 = vrcp.pop %v1740
  %v1757 = vrcp.pop %v1743
  %v1758 = vrcp.pop %v1746
  %v1759 = vrcp.pop %v1749
  %v1760 = vrcp.pop %v1752
  %v1761 = vmul.f32 %v1714, %v1753
  %v1762 = vmul.f32 %v1716, %v1754
  %v1763 = vmul.f32 %v1718, %v1755
  %v1764 = vmul.f32 %v1720, %v1756
  %v1765 = vmul.f32 %v1722, %v1757
  %v1766 = vmul.f32 %v1724, %v1758
  %v1767 = vmul.f32 %v1726, %v1759
  %v1768 = vmul.f32 %v1728, %v1760
  %1777 = vrot.lane.b32.xlu0 %v1761, 64
  %v1778 = vpop.permute.xlu0 %1777
  %1779 = vrot.lane.b32.xlu0 %v1762, 64
  %v1780 = vpop.permute.xlu0 %1779
  %1781 = vrot.lane.b32.xlu0 %v1763, 64
  %v1782 = vpop.permute.xlu0 %1781
  %1783 = vrot.lane.b32.xlu0 %v1764, 64
  %v1784 = vpop.permute.xlu0 %1783
  %1785 = vrot.lane.b32.xlu0 %v1765, 64
  %v1786 = vpop.permute.xlu0 %1785
  %1787 = vrot.lane.b32.xlu0 %v1766, 64
  %v1788 = vpop.permute.xlu0 %1787
  %1789 = vrot.lane.b32.xlu0 %v1767, 64
  %v1790 = vpop.permute.xlu0 %1789
  %1791 = vrot.lane.b32.xlu0 %v1768, 64
  %v1792 = vpop.permute.xlu0 %1791
  %1801 = vst.msk [vmem:[#allocation2] sm:$0xff] %vm590, %v1778
  %1802 = vst.msk [vmem:[#allocation2 + $0x10] sm:$0xff] %vm590, %v1780
  %1803 = vst.msk [vmem:[#allocation2 + $0x20] sm:$0xff] %vm590, %v1782
  %1804 = vst.msk [vmem:[#allocation2 + $0x30] sm:$0xff] %vm590, %v1784
  %1805 = vst.msk [vmem:[#allocation2 + $0x40] sm:$0xff] %vm590, %v1786
  %1806 = vst.msk [vmem:[#allocation2 + $0x50] sm:$0xff] %vm590, %v1788
  %1807 = vst.msk [vmem:[#allocation2 + $0x60] sm:$0xff] %vm590, %v1790
  %1808 = vst.msk [vmem:[#allocation2 + $0x70] sm:$0xff] %vm590, %v1792
  %1809 = vset.pattern.permute.xlu0 2
  %1810 = vperm.xlu0 %1809, %v1349
  %v1811 = vpop.permute.xlu0 %1810
  %1813 = vset.pattern.permute.xlu0 2
  %1814 = vperm.xlu0 %1813, %v1355
  %v1815 = vpop.permute.xlu0 %1814
  %1817 = vset.pattern.permute.xlu0 2
  %1818 = vperm.xlu0 %1817, %v1361
  %v1819 = vpop.permute.xlu0 %1818
  %1821 = vset.pattern.permute.xlu0 2
  %1822 = vperm.xlu0 %1821, %v1367
  %v1823 = vpop.permute.xlu0 %1822
  %1825 = vset.pattern.permute.xlu0 2
  %1826 = vperm.xlu0 %1825, %v1373
  %v1827 = vpop.permute.xlu0 %1826
  %1829 = vset.pattern.permute.xlu0 2
  %1830 = vperm.xlu0 %1829, %v1379
  %v1831 = vpop.permute.xlu0 %1830
  %1833 = vset.pattern.permute.xlu0 2
  %1834 = vperm.xlu0 %1833, %v1385
  %v1835 = vpop.permute.xlu0 %1834
  %1837 = vset.pattern.permute.xlu0 2
  %1838 = vperm.xlu0 %1837, %v1391
  %v1839 = vpop.permute.xlu0 %1838
  %v1841 = vlaneseq
  %v1842 = vshrl.u32 %v1841, 7
  %v1843 = vsub.s32 6, %v1842
  %v1844 = vrot.slane %v1409, %v1843
  %v1845 = vadd.f32 %v1811, %v1844
  %v1846 = vadd.f32 %v1815, %v1844
  %v1847 = vadd.f32 %v1819, %v1844
  %v1848 = vadd.f32 %v1823, %v1844
  %v1849 = vadd.f32 %v1827, %v1844
  %v1850 = vadd.f32 %v1831, %v1844
  %v1851 = vadd.f32 %v1835, %v1844
  %v1852 = vadd.f32 %v1839, %v1844
  %vm1853 = vcmp.gt.f32.partialorder %v1845, 0.0
  %vm1854 = vcmp.gt.f32.partialorder %v1846, 0.0
  %vm1855 = vcmp.gt.f32.partialorder %v1847, 0.0
  %vm1856 = vcmp.gt.f32.partialorder %v1848, 0.0
  %vm1857 = vcmp.gt.f32.partialorder %v1849, 0.0
  %vm1858 = vcmp.gt.f32.partialorder %v1850, 0.0
  %vm1859 = vcmp.gt.f32.partialorder %v1851, 0.0
  %vm1860 = vcmp.gt.f32.partialorder %v1852, 0.0
  %v1861 = vmul.f32 %v1845, 0.01
  %v1862 = vmul.f32 %v1846, 0.01
  %v1863 = vmul.f32 %v1847, 0.01
  %v1864 = vmul.f32 %v1848, 0.01
  %v1865 = vmul.f32 %v1849, 0.01
  %v1866 = vmul.f32 %v1850, 0.01
  %v1867 = vmul.f32 %v1851, 0.01
  %v1868 = vmul.f32 %v1852, 0.01
  %v1869 = vsel %vm1853, %v1845, %v1861
  %v1870 = vsel %vm1854, %v1846, %v1862
  %v1871 = vsel %vm1855, %v1847, %v1863
  %v1872 = vsel %vm1856, %v1848, %v1864
  %v1873 = vsel %vm1857, %v1849, %v1865
  %v1874 = vsel %vm1858, %v1850, %v1866
  %v1875 = vsel %vm1859, %v1851, %v1867
  %v1876 = vsel %vm1860, %v1852, %v1868
  %v1877 = vadd.f32 %v1869, %v23
  %v1878 = vadd.f32 %v1870, %v24
  %v1879 = vadd.f32 %v1871, %v25
  %v1880 = vadd.f32 %v1872, %v26
  %v1881 = vadd.f32 %v1873, %v27
  %v1882 = vadd.f32 %v1874, %v28
  %v1883 = vadd.f32 %v1875, %v29
  %v1884 = vadd.f32 %v1876, %v30
  %v1885 = vsel %vm297, %v1877, -inf
  %1886 = vmax.xlane.f32.xlu0 %v1885
  %v1887 = vpop.xlane.xlu0 %1886
  %v1888 = vsel %vm297, %v1878, -inf
  %1889 = vmax.xlane.f32.xlu0 %v1888
  %v1890 = vpop.xlane.xlu0 %1889
  %v1891 = vsel %vm297, %v1879, -inf
  %1892 = vmax.xlane.f32.xlu0 %v1891
  %v1893 = vpop.xlane.xlu0 %1892
  %v1894 = vsel %vm297, %v1880, -inf
  %1895 = vmax.xlane.f32.xlu0 %v1894
  %v1896 = vpop.xlane.xlu0 %1895
  %v1897 = vsel %vm297, %v1881, -inf
  %1898 = vmax.xlane.f32.xlu0 %v1897
  %v1899 = vpop.xlane.xlu0 %1898
  %v1900 = vsel %vm297, %v1882, -inf
  %1901 = vmax.xlane.f32.xlu0 %v1900
  %v1902 = vpop.xlane.xlu0 %1901
  %v1903 = vsel %vm297, %v1883, -inf
  %1904 = vmax.xlane.f32.xlu0 %v1903
  %v1905 = vpop.xlane.xlu0 %1904
  %v1906 = vsel %vm297, %v1884, -inf
  %1907 = vmax.xlane.f32.xlu0 %v1906
  %v1908 = vpop.xlane.xlu0 %1907
  %v1909 = vsub.f32 %v1877, %v1887
  %v1910 = vsub.f32 %v1878, %v1890
  %v1911 = vsub.f32 %v1879, %v1893
  %v1912 = vsub.f32 %v1880, %v1896
  %v1913 = vsub.f32 %v1881, %v1899
  %v1914 = vsub.f32 %v1882, %v1902
  %v1915 = vsub.f32 %v1883, %v1905
  %v1916 = vsub.f32 %v1884, %v1908
  %v1917 = vmul.f32 %v1909, 1.442695
  %v1918 = vpow.pop %v1917
  %v1919 = vmul.f32 %v1910, 1.442695
  %v1920 = vpow.pop %v1919
  %v1921 = vmul.f32 %v1911, 1.442695
  %v1922 = vpow.pop %v1921
  %v1923 = vmul.f32 %v1912, 1.442695
  %v1924 = vpow.pop %v1923
  %v1925 = vmul.f32 %v1913, 1.442695
  %v1926 = vpow.pop %v1925
  %v1927 = vmul.f32 %v1914, 1.442695
  %v1928 = vpow.pop %v1927
  %v1929 = vmul.f32 %v1915, 1.442695
  %v1930 = vpow.pop %v1929
  %v1931 = vmul.f32 %v1916, 1.442695
  %v1932 = vpow.pop %v1931
  %v1933 = vsel %vm297, %v1918, 0.0
  %1934 = vadd.xlane.f32.xlu0 %v1933
  %v1935 = vpop.xlane.xlu0 %1934
  %v1936 = vsel %vm297, %v1920, 0.0
  %1937 = vadd.xlane.f32.xlu0 %v1936
  %v1938 = vpop.xlane.xlu0 %1937
  %v1939 = vsel %vm297, %v1922, 0.0
  %1940 = vadd.xlane.f32.xlu0 %v1939
  %v1941 = vpop.xlane.xlu0 %1940
  %v1942 = vsel %vm297, %v1924, 0.0
  %1943 = vadd.xlane.f32.xlu0 %v1942
  %v1944 = vpop.xlane.xlu0 %1943
  %v1945 = vsel %vm297, %v1926, 0.0
  %1946 = vadd.xlane.f32.xlu0 %v1945
  %v1947 = vpop.xlane.xlu0 %1946
  %v1948 = vsel %vm297, %v1928, 0.0
  %1949 = vadd.xlane.f32.xlu0 %v1948
  %v1950 = vpop.xlane.xlu0 %1949
  %v1951 = vsel %vm297, %v1930, 0.0
  %1952 = vadd.xlane.f32.xlu0 %v1951
  %v1953 = vpop.xlane.xlu0 %1952
  %v1954 = vsel %vm297, %v1932, 0.0
  %1955 = vadd.xlane.f32.xlu0 %v1954
  %v1956 = vpop.xlane.xlu0 %1955
  %v1957 = vrcp.pop %v1935
  %v1958 = vrcp.pop %v1938
  %v1959 = vrcp.pop %v1941
  %v1960 = vrcp.pop %v1944
  %v1961 = vrcp.pop %v1947
  %v1962 = vrcp.pop %v1950
  %v1963 = vrcp.pop %v1953
  %v1964 = vrcp.pop %v1956
  %v1965 = vmul.f32 %v1918, %v1957
  %v1966 = vmul.f32 %v1920, %v1958
  %v1967 = vmul.f32 %v1922, %v1959
  %v1968 = vmul.f32 %v1924, %v1960
  %v1969 = vmul.f32 %v1926, %v1961
  %v1970 = vmul.f32 %v1928, %v1962
  %v1971 = vmul.f32 %v1930, %v1963
  %v1972 = vmul.f32 %v1932, %v1964
  %1973 = vst.msk [vmem:[#allocation2 + $0x8] sm:$0xff] %vm297, %v1965
  %1974 = vst.msk [vmem:[#allocation2 + $0x18] sm:$0xff] %vm297, %v1966
  %1975 = vst.msk [vmem:[#allocation2 + $0x28] sm:$0xff] %vm297, %v1967
  %1976 = vst.msk [vmem:[#allocation2 + $0x38] sm:$0xff] %vm297, %v1968
  %1977 = vst.msk [vmem:[#allocation2 + $0x48] sm:$0xff] %vm297, %v1969
  %1978 = vst.msk [vmem:[#allocation2 + $0x58] sm:$0xff] %vm297, %v1970
  %1979 = vst.msk [vmem:[#allocation2 + $0x68] sm:$0xff] %vm297, %v1971
  %1980 = vst.msk [vmem:[#allocation2 + $0x78] sm:$0xff] %vm297, %v1972
  %1981 = vset.pattern.permute.xlu0 3
  %1982 = vperm.xlu0 %1981, %v1349
  %v1983 = vpop.permute.xlu0 %1982
  %1985 = vset.pattern.permute.xlu0 3
  %1986 = vperm.xlu0 %1985, %v1355
  %v1987 = vpop.permute.xlu0 %1986
  %1989 = vset.pattern.permute.xlu0 3
  %1990 = vperm.xlu0 %1989, %v1361
  %v1991 = vpop.permute.xlu0 %1990
  %1993 = vset.pattern.permute.xlu0 3
  %1994 = vperm.xlu0 %1993, %v1367
  %v1995 = vpop.permute.xlu0 %1994
  %1997 = vset.pattern.permute.xlu0 3
  %1998 = vperm.xlu0 %1997, %v1373
  %v1999 = vpop.permute.xlu0 %1998
  %2001 = vset.pattern.permute.xlu0 3
  %2002 = vperm.xlu0 %2001, %v1379
  %v2003 = vpop.permute.xlu0 %2002
  %2005 = vset.pattern.permute.xlu0 3
  %2006 = vperm.xlu0 %2005, %v1385
  %v2007 = vpop.permute.xlu0 %2006
  %2009 = vset.pattern.permute.xlu0 3
  %2010 = vperm.xlu0 %2009, %v1391
  %v2011 = vpop.permute.xlu0 %2010
  %v2013 = vlaneseq
  %v2014 = vshrl.u32 %v2013, 7
  %v2015 = vsub.s32 7, %v2014
  %v2016 = vrot.slane %v1409, %v2015
  %v2017 = vadd.f32 %v1983, %v2016
  %v2018 = vadd.f32 %v1987, %v2016
  %v2019 = vadd.f32 %v1991, %v2016
  %v2020 = vadd.f32 %v1995, %v2016
  %v2021 = vadd.f32 %v1999, %v2016
  %v2022 = vadd.f32 %v2003, %v2016
  %v2023 = vadd.f32 %v2007, %v2016
  %v2024 = vadd.f32 %v2011, %v2016
  %vm2025 = vcmp.gt.f32.partialorder %v2017, 0.0
  %vm2026 = vcmp.gt.f32.partialorder %v2018, 0.0
  %vm2027 = vcmp.gt.f32.partialorder %v2019, 0.0
  %vm2028 = vcmp.gt.f32.partialorder %v2020, 0.0
  %vm2029 = vcmp.gt.f32.partialorder %v2021, 0.0
  %vm2030 = vcmp.gt.f32.partialorder %v2022, 0.0
  %vm2031 = vcmp.gt.f32.partialorder %v2023, 0.0
  %vm2032 = vcmp.gt.f32.partialorder %v2024, 0.0
  %v2033 = vmul.f32 %v2017, 0.01
  %v2034 = vmul.f32 %v2018, 0.01
  %v2035 = vmul.f32 %v2019, 0.01
  %v2036 = vmul.f32 %v2020, 0.01
  %v2037 = vmul.f32 %v2021, 0.01
  %v2038 = vmul.f32 %v2022, 0.01
  %v2039 = vmul.f32 %v2023, 0.01
  %v2040 = vmul.f32 %v2024, 0.01
  %v2041 = vsel %vm2025, %v2017, %v2033
  %v2042 = vsel %vm2026, %v2018, %v2034
  %v2043 = vsel %vm2027, %v2019, %v2035
  %v2044 = vsel %vm2028, %v2020, %v2036
  %v2045 = vsel %vm2029, %v2021, %v2037
  %v2046 = vsel %vm2030, %v2022, %v2038
  %v2047 = vsel %vm2031, %v2023, %v2039
  %v2048 = vsel %vm2032, %v2024, %v2040
  %v2049 = vadd.f32 %v2041, %v23
  %v2050 = vadd.f32 %v2042, %v24
  %v2051 = vadd.f32 %v2043, %v25
  %v2052 = vadd.f32 %v2044, %v26
  %v2053 = vadd.f32 %v2045, %v27
  %v2054 = vadd.f32 %v2046, %v28
  %v2055 = vadd.f32 %v2047, %v29
  %v2056 = vadd.f32 %v2048, %v30
  %v2057 = vsel %vm297, %v2049, -inf
  %2058 = vmax.xlane.f32.xlu0 %v2057
  %v2059 = vpop.xlane.xlu0 %2058
  %v2060 = vsel %vm297, %v2050, -inf
  %2061 = vmax.xlane.f32.xlu0 %v2060
  %v2062 = vpop.xlane.xlu0 %2061
  %v2063 = vsel %vm297, %v2051, -inf
  %2064 = vmax.xlane.f32.xlu0 %v2063
  %v2065 = vpop.xlane.xlu0 %2064
  %v2066 = vsel %vm297, %v2052, -inf
  %2067 = vmax.xlane.f32.xlu0 %v2066
  %v2068 = vpop.xlane.xlu0 %2067
  %v2069 = vsel %vm297, %v2053, -inf
  %2070 = vmax.xlane.f32.xlu0 %v2069
  %v2071 = vpop.xlane.xlu0 %2070
  %v2072 = vsel %vm297, %v2054, -inf
  %2073 = vmax.xlane.f32.xlu0 %v2072
  %v2074 = vpop.xlane.xlu0 %2073
  %v2075 = vsel %vm297, %v2055, -inf
  %2076 = vmax.xlane.f32.xlu0 %v2075
  %v2077 = vpop.xlane.xlu0 %2076
  %v2078 = vsel %vm297, %v2056, -inf
  %2079 = vmax.xlane.f32.xlu0 %v2078
  %v2080 = vpop.xlane.xlu0 %2079
  %v2081 = vsub.f32 %v2049, %v2059
  %v2082 = vsub.f32 %v2050, %v2062
  %v2083 = vsub.f32 %v2051, %v2065
  %v2084 = vsub.f32 %v2052, %v2068
  %v2085 = vsub.f32 %v2053, %v2071
  %v2086 = vsub.f32 %v2054, %v2074
  %v2087 = vsub.f32 %v2055, %v2077
  %v2088 = vsub.f32 %v2056, %v2080
  %v2089 = vmul.f32 %v2081, 1.442695
  %v2090 = vpow.pop %v2089
  %v2091 = vmul.f32 %v2082, 1.442695
  %v2092 = vpow.pop %v2091
  %v2093 = vmul.f32 %v2083, 1.442695
  %v2094 = vpow.pop %v2093
  %v2095 = vmul.f32 %v2084, 1.442695
  %v2096 = vpow.pop %v2095
  %v2097 = vmul.f32 %v2085, 1.442695
  %v2098 = vpow.pop %v2097
  %v2099 = vmul.f32 %v2086, 1.442695
  %v2100 = vpow.pop %v2099
  %v2101 = vmul.f32 %v2087, 1.442695
  %v2102 = vpow.pop %v2101
  %v2103 = vmul.f32 %v2088, 1.442695
  %v2104 = vpow.pop %v2103
  %v2105 = vsel %vm297, %v2090, 0.0
  %2106 = vadd.xlane.f32.xlu0 %v2105
  %v2107 = vpop.xlane.xlu0 %2106
  %v2108 = vsel %vm297, %v2092, 0.0
  %2109 = vadd.xlane.f32.xlu0 %v2108
  %v2110 = vpop.xlane.xlu0 %2109
  %v2111 = vsel %vm297, %v2094, 0.0
  %2112 = vadd.xlane.f32.xlu0 %v2111
  %v2113 = vpop.xlane.xlu0 %2112
  %v2114 = vsel %vm297, %v2096, 0.0
  %2115 = vadd.xlane.f32.xlu0 %v2114
  %v2116 = vpop.xlane.xlu0 %2115
  %v2117 = vsel %vm297, %v2098, 0.0
  %2118 = vadd.xlane.f32.xlu0 %v2117
  %v2119 = vpop.xlane.xlu0 %2118
  %v2120 = vsel %vm297, %v2100, 0.0
  %2121 = vadd.xlane.f32.xlu0 %v2120
  %v2122 = vpop.xlane.xlu0 %2121
  %v2123 = vsel %vm297, %v2102, 0.0
  %2124 = vadd.xlane.f32.xlu0 %v2123
  %v2125 = vpop.xlane.xlu0 %2124
  %v2126 = vsel %vm297, %v2104, 0.0
  %2127 = vadd.xlane.f32.xlu0 %v2126
  %v2128 = vpop.xlane.xlu0 %2127
  %v2129 = vrcp.pop %v2107
  %v2130 = vrcp.pop %v2110
  %v2131 = vrcp.pop %v2113
  %v2132 = vrcp.pop %v2116
  %v2133 = vrcp.pop %v2119
  %v2134 = vrcp.pop %v2122
  %v2135 = vrcp.pop %v2125
  %v2136 = vrcp.pop %v2128
  %v2137 = vmul.f32 %v2090, %v2129
  %v2138 = vmul.f32 %v2092, %v2130
  %v2139 = vmul.f32 %v2094, %v2131
  %v2140 = vmul.f32 %v2096, %v2132
  %v2141 = vmul.f32 %v2098, %v2133
  %v2142 = vmul.f32 %v2100, %v2134
  %v2143 = vmul.f32 %v2102, %v2135
  %v2144 = vmul.f32 %v2104, %v2136
  %2153 = vrot.lane.b32.xlu0 %v2137, 64
  %v2154 = vpop.permute.xlu0 %2153
  %2155 = vrot.lane.b32.xlu0 %v2138, 64
  %v2156 = vpop.permute.xlu0 %2155
  %2157 = vrot.lane.b32.xlu0 %v2139, 64
  %v2158 = vpop.permute.xlu0 %2157
  %2159 = vrot.lane.b32.xlu0 %v2140, 64
  %v2160 = vpop.permute.xlu0 %2159
  %2161 = vrot.lane.b32.xlu0 %v2141, 64
  %v2162 = vpop.permute.xlu0 %2161
  %2163 = vrot.lane.b32.xlu0 %v2142, 64
  %v2164 = vpop.permute.xlu0 %2163
  %2165 = vrot.lane.b32.xlu0 %v2143, 64
  %v2166 = vpop.permute.xlu0 %2165
  %2167 = vrot.lane.b32.xlu0 %v2144, 64
  %v2168 = vpop.permute.xlu0 %2167
  %2177 = vst.msk [vmem:[#allocation2 + $0x8] sm:$0xff] %vm590, %v2154
  %2178 = vst.msk [vmem:[#allocation2 + $0x18] sm:$0xff] %vm590, %v2156
  %2179 = vst.msk [vmem:[#allocation2 + $0x28] sm:$0xff] %vm590, %v2158
  %2180 = vst.msk [vmem:[#allocation2 + $0x38] sm:$0xff] %vm590, %v2160
  %2181 = vst.msk [vmem:[#allocation2 + $0x48] sm:$0xff] %vm590, %v2162
  %2182 = vst.msk [vmem:[#allocation2 + $0x58] sm:$0xff] %vm590, %v2164
  %2183 = vst.msk [vmem:[#allocation2 + $0x68] sm:$0xff] %vm590, %v2166
  %2184 = vst.msk [vmem:[#allocation2 + $0x78] sm:$0xff] %vm590, %v2168
  %v2185 = vld [vmem:[%s2] sm:$0xff]
  %v2186 = vld [vmem:[%s2 + $0x8] sm:$0xff]
  %v2187 = vld [vmem:[%s2 + $0x10] sm:$0xff]
  %v2188 = vld [vmem:[%s2 + $0x18] sm:$0xff]
  %v2189 = vld [vmem:[%s2 + $0x20] sm:$0xff]
  %v2190 = vld [vmem:[%s2 + $0x28] sm:$0xff]
  %v2191 = vld [vmem:[%s2 + $0x30] sm:$0xff]
  %v2192 = vld [vmem:[%s2 + $0x38] sm:$0xff]
  %v2193 = vld [vmem:[%s2 + $0x40] sm:$0xff]
  %v2194 = vld [vmem:[%s2 + $0x48] sm:$0xff]
  %v2195 = vld [vmem:[%s2 + $0x50] sm:$0xff]
  %v2196 = vld [vmem:[%s2 + $0x58] sm:$0xff]
  %v2197 = vld [vmem:[%s2 + $0x60] sm:$0xff]
  %v2198 = vld [vmem:[%s2 + $0x68] sm:$0xff]
  %v2199 = vld [vmem:[%s2 + $0x70] sm:$0xff]
  %v2200 = vld [vmem:[%s2 + $0x78] sm:$0xff]
  %v2201 = vld [vmem:[%s2 + $0x80] sm:$0xff]
  %v2202 = vld [vmem:[%s2 + $0x88] sm:$0xff]
  %v2203 = vld [vmem:[%s2 + $0x90] sm:$0xff]
  %v2204 = vld [vmem:[%s2 + $0x98] sm:$0xff]
  %v2205 = vld [vmem:[%s2 + $0xa0] sm:$0xff]
  %v2206 = vld [vmem:[%s2 + $0xa8] sm:$0xff]
  %v2207 = vld [vmem:[%s2 + $0xb0] sm:$0xff]
  %v2208 = vld [vmem:[%s2 + $0xb8] sm:$0xff]
  %v2209 = vld [vmem:[%s2 + $0xc0] sm:$0xff]
  %v2210 = vld [vmem:[%s2 + $0xc8] sm:$0xff]
  %v2211 = vld [vmem:[%s2 + $0xd0] sm:$0xff]
  %v2212 = vld [vmem:[%s2 + $0xd8] sm:$0xff]
  %v2213 = vld [vmem:[%s2 + $0xe0] sm:$0xff]
  %v2214 = vld [vmem:[%s2 + $0xe8] sm:$0xff]
  %v2215 = vld [vmem:[%s2 + $0xf0] sm:$0xff]
  %v2216 = vld [vmem:[%s2 + $0xf8] sm:$0xff]
  %v2217 = vmul.f32 %v1347, %v2185
  %v2218 = vmul.f32 %v1353, %v2186
  %v2219 = vmul.f32 %v1359, %v2187
  %v2220 = vmul.f32 %v1365, %v2188
  %v2221 = vmul.f32 %v1371, %v2189
  %v2222 = vmul.f32 %v1377, %v2190
  %v2223 = vmul.f32 %v1383, %v2191
  %v2224 = vmul.f32 %v1389, %v2192
  %v2225 = vmul.f32 %v1347, %v2193
  %v2226 = vmul.f32 %v1353, %v2194
  %v2227 = vmul.f32 %v1359, %v2195
  %v2228 = vmul.f32 %v1365, %v2196
  %v2229 = vmul.f32 %v1371, %v2197
  %v2230 = vmul.f32 %v1377, %v2198
  %v2231 = vmul.f32 %v1383, %v2199
  %v2232 = vmul.f32 %v1389, %v2200
  %v2233 = vmul.f32 %v1347, %v2201
  %v2234 = vmul.f32 %v1353, %v2202
  %v2235 = vmul.f32 %v1359, %v2203
  %v2236 = vmul.f32 %v1365, %v2204
  %v2237 = vmul.f32 %v1371, %v2205
  %v2238 = vmul.f32 %v1377, %v2206
  %v2239 = vmul.f32 %v1383, %v2207
  %v2240 = vmul.f32 %v1389, %v2208
  %v2241 = vmul.f32 %v1347, %v2209
  %v2242 = vmul.f32 %v1353, %v2210
  %v2243 = vmul.f32 %v1359, %v2211
  %v2244 = vmul.f32 %v1365, %v2212
  %v2245 = vmul.f32 %v1371, %v2213
  %v2246 = vmul.f32 %v1377, %v2214
  %v2247 = vmul.f32 %v1383, %v2215
  %v2248 = vmul.f32 %v1389, %v2216
  %2249 = vst [vmem:[#allocation3] sm:$0xff] %v2217
  %2250 = vst [vmem:[#allocation3 + $0x8] sm:$0xff] %v2218
  %2251 = vst [vmem:[#allocation3 + $0x10] sm:$0xff] %v2219
  %2252 = vst [vmem:[#allocation3 + $0x18] sm:$0xff] %v2220
  %2253 = vst [vmem:[#allocation3 + $0x20] sm:$0xff] %v2221
  %2254 = vst [vmem:[#allocation3 + $0x28] sm:$0xff] %v2222
  %2255 = vst [vmem:[#allocation3 + $0x30] sm:$0xff] %v2223
  %2256 = vst [vmem:[#allocation3 + $0x38] sm:$0xff] %v2224
  %2257 = vst [vmem:[#allocation3 + $0x40] sm:$0xff] %v2225
  %2258 = vst [vmem:[#allocation3 + $0x48] sm:$0xff] %v2226
  %2259 = vst [vmem:[#allocation3 + $0x50] sm:$0xff] %v2227
  %2260 = vst [vmem:[#allocation3 + $0x58] sm:$0xff] %v2228
  %2261 = vst [vmem:[#allocation3 + $0x60] sm:$0xff] %v2229
  %2262 = vst [vmem:[#allocation3 + $0x68] sm:$0xff] %v2230
  %2263 = vst [vmem:[#allocation3 + $0x70] sm:$0xff] %v2231
  %2264 = vst [vmem:[#allocation3 + $0x78] sm:$0xff] %v2232
  %2265 = vst [vmem:[#allocation3 + $0x80] sm:$0xff] %v2233
  %2266 = vst [vmem:[#allocation3 + $0x88] sm:$0xff] %v2234
  %2267 = vst [vmem:[#allocation3 + $0x90] sm:$0xff] %v2235
  %2268 = vst [vmem:[#allocation3 + $0x98] sm:$0xff] %v2236
  %2269 = vst [vmem:[#allocation3 + $0xa0] sm:$0xff] %v2237
  %2270 = vst [vmem:[#allocation3 + $0xa8] sm:$0xff] %v2238
  %2271 = vst [vmem:[#allocation3 + $0xb0] sm:$0xff] %v2239
  %2272 = vst [vmem:[#allocation3 + $0xb8] sm:$0xff] %v2240
  %2273 = vst [vmem:[#allocation3 + $0xc0] sm:$0xff] %v2241
  %2274 = vst [vmem:[#allocation3 + $0xc8] sm:$0xff] %v2242
  %2275 = vst [vmem:[#allocation3 + $0xd0] sm:$0xff] %v2243
  %2276 = vst [vmem:[#allocation3 + $0xd8] sm:$0xff] %v2244
  %2277 = vst [vmem:[#allocation3 + $0xe0] sm:$0xff] %v2245
  %2278 = vst [vmem:[#allocation3 + $0xe8] sm:$0xff] %v2246
  %2279 = vst [vmem:[#allocation3 + $0xf0] sm:$0xff] %v2247
  %2280 = vst [vmem:[#allocation3 + $0xf8] sm:$0xff] %v2248
  %v2281 = vld [vmem:[#allocation2] sm:$0xff]
  %v2282 = vld [vmem:[#allocation2 + $0x8] sm:$0xff]
  %v2283 = vld [vmem:[#allocation2 + $0x10] sm:$0xff]
  %v2284 = vld [vmem:[#allocation2 + $0x18] sm:$0xff]
  %v2285 = vld [vmem:[#allocation2 + $0x20] sm:$0xff]
  %v2286 = vld [vmem:[#allocation2 + $0x28] sm:$0xff]
  %v2287 = vld [vmem:[#allocation2 + $0x30] sm:$0xff]
  %v2288 = vld [vmem:[#allocation2 + $0x38] sm:$0xff]
  %v2289 = vld [vmem:[#allocation2 + $0x40] sm:$0xff]
  %v2290 = vld [vmem:[#allocation2 + $0x48] sm:$0xff]
  %v2291 = vld [vmem:[#allocation2 + $0x50] sm:$0xff]
  %v2292 = vld [vmem:[#allocation2 + $0x58] sm:$0xff]
  %v2293 = vld [vmem:[#allocation2 + $0x60] sm:$0xff]
  %v2294 = vld [vmem:[#allocation2 + $0x68] sm:$0xff]
  %v2295 = vld [vmem:[#allocation2 + $0x70] sm:$0xff]
  %v2296 = vld [vmem:[#allocation2 + $0x78] sm:$0xff]
  %v2297 = vld [vmem:[#allocation3] sm:$0xff]
  %v2298 = vld [vmem:[#allocation3 + $0x8] sm:$0xff]
  %v2299 = vld [vmem:[#allocation3 + $0x10] sm:$0xff]
  %v2300 = vld [vmem:[#allocation3 + $0x18] sm:$0xff]
  %v2301 = vld [vmem:[#allocation3 + $0x20] sm:$0xff]
  %v2302 = vld [vmem:[#allocation3 + $0x28] sm:$0xff]
  %v2303 = vld [vmem:[#allocation3 + $0x30] sm:$0xff]
  %v2304 = vld [vmem:[#allocation3 + $0x38] sm:$0xff]
  %v2305 = vld [vmem:[#allocation3 + $0x40] sm:$0xff]
  %v2306 = vld [vmem:[#allocation3 + $0x48] sm:$0xff]
  %v2307 = vld [vmem:[#allocation3 + $0x50] sm:$0xff]
  %v2308 = vld [vmem:[#allocation3 + $0x58] sm:$0xff]
  %v2309 = vld [vmem:[#allocation3 + $0x60] sm:$0xff]
  %v2310 = vld [vmem:[#allocation3 + $0x68] sm:$0xff]
  %v2311 = vld [vmem:[#allocation3 + $0x70] sm:$0xff]
  %v2312 = vld [vmem:[#allocation3 + $0x78] sm:$0xff]
  %v2313 = vld [vmem:[#allocation3 + $0x80] sm:$0xff]
  %v2314 = vld [vmem:[#allocation3 + $0x88] sm:$0xff]
  %v2315 = vld [vmem:[#allocation3 + $0x90] sm:$0xff]
  %v2316 = vld [vmem:[#allocation3 + $0x98] sm:$0xff]
  %v2317 = vld [vmem:[#allocation3 + $0xa0] sm:$0xff]
  %v2318 = vld [vmem:[#allocation3 + $0xa8] sm:$0xff]
  %v2319 = vld [vmem:[#allocation3 + $0xb0] sm:$0xff]
  %v2320 = vld [vmem:[#allocation3 + $0xb8] sm:$0xff]
  %v2321 = vld [vmem:[#allocation3 + $0xc0] sm:$0xff]
  %v2322 = vld [vmem:[#allocation3 + $0xc8] sm:$0xff]
  %v2323 = vld [vmem:[#allocation3 + $0xd0] sm:$0xff]
  %v2324 = vld [vmem:[#allocation3 + $0xd8] sm:$0xff]
  %v2325 = vld [vmem:[#allocation3 + $0xe0] sm:$0xff]
  %v2326 = vld [vmem:[#allocation3 + $0xe8] sm:$0xff]
  %v2327 = vld [vmem:[#allocation3 + $0xf0] sm:$0xff]
  %v2328 = vld [vmem:[#allocation3 + $0xf8] sm:$0xff]
  %2329 = vmatprep.subr.mxu0 0.0
  %2330 = vmatpush1.msra.mxu0 %v2297
  %2331 = vmatprep.subr.mxu0 0.0
  %2332 = vmatpush1.msra.mxu0 %v2298
  %2333 = vmatprep.subr.mxu0 0.0
  %2334 = vmatpush1.msra.mxu0 %v2299
  %2335 = vmatprep.subr.mxu0 0.0
  %2336 = vmatpush1.msra.mxu0 %v2300
  %2337 = vmatprep.subr.mxu0 0.0
  %2338 = vmatpush1.msra.mxu0 %v2301
  %2339 = vmatprep.subr.mxu0 0.0
  %2340 = vmatpush1.msra.mxu0 %v2302
  %2341 = vmatprep.subr.mxu0 0.0
  %2342 = vmatpush1.msra.mxu0 %v2303
  %2343 = vmatprep.subr.mxu0 0.0
  %2344 = vmatpush1.msra.mxu0 %v2304
  %2345 = vmatprep.subr.mxu0 0.0
  %2346 = vmatpush1.msra.mxu0 %v2305
  %2347 = vmatprep.subr.mxu0 0.0
  %2348 = vmatpush1.msra.mxu0 %v2306
  %2349 = vmatprep.subr.mxu0 0.0
  %2350 = vmatpush1.msra.mxu0 %v2307
  %2351 = vmatprep.subr.mxu0 0.0
  %2352 = vmatpush1.msra.mxu0 %v2308
  %2353 = vmatprep.subr.mxu0 0.0
  %2354 = vmatpush1.msra.mxu0 %v2309
  %2355 = vmatprep.subr.mxu0 0.0
  %2356 = vmatpush1.msra.mxu0 %v2310
  %2357 = vmatprep.subr.mxu0 0.0
  %2358 = vmatpush1.msra.mxu0 %v2311
  %2359 = vmatprep.subr.mxu0 0.0
  %2360 = vmatpush1.msra.mxu0 %v2312
  %2361 = vmatprep.subr.mxu0 0.0
  %2362 = vmatpush1.msra.mxu0 %v2313
  %2363 = vmatprep.subr.mxu0 0.0
  %2364 = vmatpush1.msra.mxu0 %v2314
  %2365 = vmatprep.subr.mxu0 0.0
  %2366 = vmatpush1.msra.mxu0 %v2315
  %2367 = vmatprep.subr.mxu0 0.0
  %2368 = vmatpush1.msra.mxu0 %v2316
  %2369 = vmatprep.subr.mxu0 0.0
  %2370 = vmatpush1.msra.mxu0 %v2317
  %2371 = vmatprep.subr.mxu0 0.0
  %2372 = vmatpush1.msra.mxu0 %v2318
  %2373 = vmatprep.subr.mxu0 0.0
  %2374 = vmatpush1.msra.mxu0 %v2319
  %2375 = vmatprep.subr.mxu0 0.0
  %2376 = vmatpush1.msra.mxu0 %v2320
  %2377 = vmatprep.subr.mxu0 0.0
  %2378 = vmatpush1.msra.mxu0 %v2321
  %2379 = vmatprep.subr.mxu0 0.0
  %2380 = vmatpush1.msra.mxu0 %v2322
  %2381 = vmatprep.subr.mxu0 0.0
  %2382 = vmatpush1.msra.mxu0 %v2323
  %2383 = vmatprep.subr.mxu0 0.0
  %2384 = vmatpush1.msra.mxu0 %v2324
  %2385 = vmatprep.subr.mxu0 0.0
  %2386 = vmatpush1.msra.mxu0 %v2325
  %2387 = vmatprep.subr.mxu0 0.0
  %2388 = vmatpush1.msra.mxu0 %v2326
  %2389 = vmatprep.subr.mxu0 0.0
  %2390 = vmatpush1.msra.mxu0 %v2327
  %2391 = vmatprep.subr.mxu0 0.0
  %2392 = vmatpush1.msra.mxu0 %v2328
  %2393 = vmatprep.mubr.f32.mxu0 %v2282
  %2394 = vmatmul.mubr.f32.gmra.mrb[0].mxu0 %v2281
  %v2395 = vpop.f32.mrb[0].mxu0
  %v2396 = vadd.f32 0.0, %v2395
  %v2397 = vpop.f32.mrb[0].mxu0
  %2398 = vmatprep.mubr.f32.mxu0 %v2284
  %2399 = vmatmul.mubr.f32.gmra.mrb[0].mxu0 %v2283
  %v2400 = vpop.f32.mrb[0].mxu0
  %v2401 = vadd.f32 0.0, %v2400
  %v2402 = vpop.f32.mrb[0].mxu0
  %2403 = vmatprep.mubr.f32.mxu0 %v2286
  %2404 = vmatmul.mubr.f32.gmra.mrb[0].mxu0 %v2285
  %v2405 = vpop.f32.mrb[0].mxu0
  %v2406 = vadd.f32 0.0, %v2405
  %v2407 = vpop.f32.mrb[0].mxu0
  %2408 = vmatprep.mubr.f32.mxu0 %v2288
  %2409 = vmatmul.mubr.f32.gmra.mrb[0].mxu0 %v2287
  %v2410 = vpop.f32.mrb[0].mxu0
  %v2411 = vadd.f32 0.0, %v2410
  %v2412 = vpop.f32.mrb[0].mxu0
  %2413 = vmatprep.mubr.f32.mxu0 %v2290
  %2414 = vmatmul.mubr.f32.gmra.mrb[0].mxu0 %v2289
  %v2415 = vpop.f32.mrb[0].mxu0
  %v2416 = vadd.f32 0.0, %v2415
  %v2417 = vpop.f32.mrb[0].mxu0
  %2418 = vmatprep.mubr.f32.mxu0 %v2292
  %2419 = vmatmul.mubr.f32.gmra.mrb[0].mxu0 %v2291
  %v2420 = vpop.f32.mrb[0].mxu0
  %v2421 = vadd.f32 0.0, %v2420
  %v2422 = vpop.f32.mrb[0].mxu0
  %2423 = vmatprep.mubr.f32.mxu0 %v2294
  %2424 = vmatmul.mubr.f32.gmra.mrb[0].mxu0 %v2293
  %v2425 = vpop.f32.mrb[0].mxu0
  %v2426 = vadd.f32 0.0, %v2425
  %v2427 = vpop.f32.mrb[0].mxu0
  %2428 = vmatprep.mubr.f32.mxu0 %v2296
  %2429 = vmatmul.mubr.f32.gmra.mrb[0].mxu0 %v2295
  %v2430 = vpop.f32.mrb[0].mxu0
  %v2431 = vadd.f32 0.0, %v2430
  %v2432 = vpop.f32.mrb[0].mxu0
  %2433 = vdwg.mxu0
  %vm2434 = vcmp.gt.f32.partialorder %v2396, 0.0
  %vm2435 = vcmp.gt.f32.partialorder %v2401, 0.0
  %vm2436 = vcmp.gt.f32.partialorder %v2406, 0.0
  %vm2437 = vcmp.gt.f32.partialorder %v2411, 0.0
  %vm2438 = vcmp.gt.f32.partialorder %v2416, 0.0
  %vm2439 = vcmp.gt.f32.partialorder %v2421, 0.0
  %vm2440 = vcmp.gt.f32.partialorder %v2426, 0.0
  %vm2441 = vcmp.gt.f32.partialorder %v2431, 0.0
  %v2442 = vmul.f32 %v2396, 0.1
  %v2443 = vmul.f32 %v2401, 0.1
  %v2444 = vmul.f32 %v2406, 0.1
  %v2445 = vmul.f32 %v2411, 0.1
  %v2446 = vmul.f32 %v2416, 0.1
  %v2447 = vmul.f32 %v2421, 0.1
  %v2448 = vmul.f32 %v2426, 0.1
  %v2449 = vmul.f32 %v2431, 0.1
  %v2450 = vsel %vm2434, %v2396, %v2442
  %v2451 = vsel %vm2435, %v2401, %v2443
  %v2452 = vsel %vm2436, %v2406, %v2444
  %v2453 = vsel %vm2437, %v2411, %v2445
  %v2454 = vsel %vm2438, %v2416, %v2446
  %v2455 = vsel %vm2439, %v2421, %v2447
  %v2456 = vsel %vm2440, %v2426, %v2448
  %v2457 = vsel %vm2441, %v2431, %v2449
  %v2458 = vld [vmem:[%s5] sm:$0xff]
  %v2459 = vld [vmem:[%s5 + $0x8] sm:$0xff]
  %v2460 = vld [vmem:[%s5 + $0x10] sm:$0xff]
  %v2461 = vld [vmem:[%s5 + $0x18] sm:$0xff]
  %v2462 = vld [vmem:[%s5 + $0x20] sm:$0xff]
  %v2463 = vld [vmem:[%s5 + $0x28] sm:$0xff]
  %v2464 = vld [vmem:[%s5 + $0x30] sm:$0xff]
  %v2465 = vld [vmem:[%s5 + $0x38] sm:$0xff]
  %v2466 = vld [vmem:[%s5 + $0x40] sm:$0xff]
  %v2467 = vld [vmem:[%s5 + $0x48] sm:$0xff]
  %v2468 = vld [vmem:[%s5 + $0x50] sm:$0xff]
  %v2469 = vld [vmem:[%s5 + $0x58] sm:$0xff]
  %v2470 = vld [vmem:[%s5 + $0x60] sm:$0xff]
  %v2471 = vld [vmem:[%s5 + $0x68] sm:$0xff]
  %v2472 = vld [vmem:[%s5 + $0x70] sm:$0xff]
  %v2473 = vld [vmem:[%s5 + $0x78] sm:$0xff]
  %2474 = vmatprep.subr.mxu0 0.0
  %2475 = vmatpush1.msra.mxu0 %v2458
  %2476 = vmatprep.subr.mxu0 0.0
  %2477 = vmatpush1.msra.mxu0 %v2459
  %2478 = vmatprep.subr.mxu0 0.0
  %2479 = vmatpush1.msra.mxu0 %v2460
  %2480 = vmatprep.subr.mxu0 0.0
  %2481 = vmatpush1.msra.mxu0 %v2461
  %2482 = vmatprep.subr.mxu0 0.0
  %2483 = vmatpush1.msra.mxu0 %v2462
  %2484 = vmatprep.subr.mxu0 0.0
  %2485 = vmatpush1.msra.mxu0 %v2463
  %2486 = vmatprep.subr.mxu0 0.0
  %2487 = vmatpush1.msra.mxu0 %v2464
  %2488 = vmatprep.subr.mxu0 0.0
  %2489 = vmatpush1.msra.mxu0 %v2465
  %2490 = vmatprep.subr.mxu0 0.0
  %2491 = vmatpush1.msra.mxu0 %v2466
  %2492 = vmatprep.subr.mxu0 0.0
  %2493 = vmatpush1.msra.mxu0 %v2467
  %2494 = vmatprep.subr.mxu0 0.0
  %2495 = vmatpush1.msra.mxu0 %v2468
  %2496 = vmatprep.subr.mxu0 0.0
  %2497 = vmatpush1.msra.mxu0 %v2469
  %2498 = vmatprep.subr.mxu0 0.0
  %2499 = vmatpush1.msra.mxu0 %v2470
  %2500 = vmatprep.subr.mxu0 0.0
  %2501 = vmatpush1.msra.mxu0 %v2471
  %2502 = vmatprep.subr.mxu0 0.0
  %2503 = vmatpush1.msra.mxu0 %v2472
  %2504 = vmatprep.subr.mxu0 0.0
  %2505 = vmatpush1.msra.mxu0 %v2473
  %2506 = vmatprep.subr.mxu0 0.0
  %2507 = vmatpush1.msra.mxu0 0.0
  %2508 = vmatprep.subr.mxu0 0.0
  %2509 = vmatpush1.msra.mxu0 0.0
  %2510 = vmatprep.subr.mxu0 0.0
  %2511 = vmatpush1.msra.mxu0 0.0
  %2512 = vmatprep.subr.mxu0 0.0
  %2513 = vmatpush1.msra.mxu0 0.0
  %2514 = vmatprep.subr.mxu0 0.0
  %2515 = vmatpush1.msra.mxu0 0.0
  %2516 = vmatprep.subr.mxu0 0.0
  %2517 = vmatpush1.msra.mxu0 0.0
  %2518 = vmatprep.subr.mxu0 0.0
  %2519 = vmatpush1.msra.mxu0 0.0
  %2520 = vmatprep.subr.mxu0 0.0
  %2521 = vmatpush1.msra.mxu0 0.0
  %2522 = vmatprep.subr.mxu0 0.0
  %2523 = vmatpush1.msra.mxu0 0.0
  %2524 = vmatprep.subr.mxu0 0.0
  %2525 = vmatpush1.msra.mxu0 0.0
  %2526 = vmatprep.subr.mxu0 0.0
  %2527 = vmatpush1.msra.mxu0 0.0
  %2528 = vmatprep.subr.mxu0 0.0
  %2529 = vmatpush1.msra.mxu0 0.0
  %2530 = vmatprep.subr.mxu0 0.0
  %2531 = vmatpush1.msra.mxu0 0.0
  %2532 = vmatprep.subr.mxu0 0.0
  %2533 = vmatpush1.msra.mxu0 0.0
  %2534 = vmatprep.subr.mxu0 0.0
  %2535 = vmatpush1.msra.mxu0 0.0
  %2536 = vmatprep.subr.mxu0 0.0
  %2537 = vmatpush1.msra.mxu0 0.0
  %2538 = vmatprep.mubr.f32.mxu0 0.0
  %2539 = vmatmul.mubr.f32.gmra.mrb[0].mxu0 %v2450
  %v2540 = vpop.f32.mrb[0].mxu0
  %v2541 = vadd.f32 0.0, %v2540
  %v2542 = vpop.f32.mrb[0].mxu0
  %2543 = vmatprep.mubr.f32.mxu0 0.0
  %2544 = vmatmul.mubr.f32.gmra.mrb[0].mxu0 %v2451
  %v2545 = vpop.f32.mrb[0].mxu0
  %v2546 = vadd.f32 0.0, %v2545
  %v2547 = vpop.f32.mrb[0].mxu0
  %2548 = vmatprep.mubr.f32.mxu0 0.0
  %2549 = vmatmul.mubr.f32.gmra.mrb[0].mxu0 %v2452
  %v2550 = vpop.f32.mrb[0].mxu0
  %v2551 = vadd.f32 0.0, %v2550
  %v2552 = vpop.f32.mrb[0].mxu0
  %2553 = vmatprep.mubr.f32.mxu0 0.0
  %2554 = vmatmul.mubr.f32.gmra.mrb[0].mxu0 %v2453
  %v2555 = vpop.f32.mrb[0].mxu0
  %v2556 = vadd.f32 0.0, %v2555
  %v2557 = vpop.f32.mrb[0].mxu0
  %2558 = vmatprep.mubr.f32.mxu0 0.0
  %2559 = vmatmul.mubr.f32.gmra.mrb[0].mxu0 %v2454
  %v2560 = vpop.f32.mrb[0].mxu0
  %v2561 = vadd.f32 0.0, %v2560
  %v2562 = vpop.f32.mrb[0].mxu0
  %2563 = vmatprep.mubr.f32.mxu0 0.0
  %2564 = vmatmul.mubr.f32.gmra.mrb[0].mxu0 %v2455
  %v2565 = vpop.f32.mrb[0].mxu0
  %v2566 = vadd.f32 0.0, %v2565
  %v2567 = vpop.f32.mrb[0].mxu0
  %2568 = vmatprep.mubr.f32.mxu0 0.0
  %2569 = vmatmul.mubr.f32.gmra.mrb[0].mxu0 %v2456
  %v2570 = vpop.f32.mrb[0].mxu0
  %v2571 = vadd.f32 0.0, %v2570
  %v2572 = vpop.f32.mrb[0].mxu0
  %2573 = vmatprep.mubr.f32.mxu0 0.0
  %2574 = vmatmul.mubr.f32.gmra.mrb[0].mxu0 %v2457
  %v2575 = vpop.f32.mrb[0].mxu0
  %v2576 = vadd.f32 0.0, %v2575
  %v2577 = vpop.f32.mrb[0].mxu0
  %2578 = vdwg.mxu0
  %2587 = vrot.lane.b32.xlu0 %v2541, 112
  %v2588 = vpop.permute.xlu0 %2587
  %2589 = vrot.lane.b32.xlu0 %v2546, 112
  %v2590 = vpop.permute.xlu0 %2589
  %2591 = vrot.lane.b32.xlu0 %v2551, 112
  %v2592 = vpop.permute.xlu0 %2591
  %2593 = vrot.lane.b32.xlu0 %v2556, 112
  %v2594 = vpop.permute.xlu0 %2593
  %2595 = vrot.lane.b32.xlu0 %v2561, 112
  %v2596 = vpop.permute.xlu0 %2595
  %2597 = vrot.lane.b32.xlu0 %v2566, 112
  %v2598 = vpop.permute.xlu0 %2597
  %2599 = vrot.lane.b32.xlu0 %v2571, 112
  %v2600 = vpop.permute.xlu0 %2599
  %2601 = vrot.lane.b32.xlu0 %v2576, 112
  %v2602 = vpop.permute.xlu0 %2601
  %2611 = vxpose.xlu0.b32.start [1/16] %v2588, 128
  %2612 = vxpose.xlu0.b32.cont [2/16] %v2590, 128
  %2613 = vxpose.xlu0.b32.cont [3/16] %v2592, 128
  %2614 = vxpose.xlu0.b32.cont [4/16] %v2594, 128
  %2615 = vxpose.xlu0.b32.cont [5/16] %v2596, 128
  %2616 = vxpose.xlu0.b32.cont [6/16] %v2598, 128
  %2617 = vxpose.xlu0.b32.cont [7/16] %v2600, 128
  %2618 = vxpose.xlu0.b32.cont [8/16] %v2602, 128
  %2619 = vxpose.xlu0.b32.cont [9/16] 0.0, 128
  %2620 = vxpose.xlu0.b32.cont [10/16] 0.0, 128
  %2621 = vxpose.xlu0.b32.cont [11/16] 0.0, 128
  %2622 = vxpose.xlu0.b32.cont [12/16] 0.0, 128
  %2623 = vxpose.xlu0.b32.cont [13/16] 0.0, 128
  %2624 = vxpose.xlu0.b32.cont [14/16] 0.0, 128
  %2625 = vxpose.xlu0.b32.cont [15/16] 0.0, 128
  %2626 = vxpose.xlu0.b32.end [16/16] 0.0, 128
  %v2627 = vpop.trf.xlu0
  %v2628 = vpop.trf.xlu0
  %v2629 = vpop.trf.xlu0
  %v2630 = vpop.trf.xlu0
  %v2631 = vpop.trf.xlu0
  %v2632 = vpop.trf.xlu0
  %v2633 = vpop.trf.xlu0
  %v2634 = vpop.trf.xlu0
  %v2635 = vpop.trf.xlu0
  %v2636 = vpop.trf.xlu0
  %v2637 = vpop.trf.xlu0
  %v2638 = vpop.trf.xlu0
  %v2639 = vpop.trf.xlu0
  %v2640 = vpop.trf.xlu0
  %v2641 = vpop.trf.xlu0
  %v2642 = vpop.trf.xlu0
  %2643 = vset.pattern.permute.xlu0 16
  %2644 = vperm.xlu0 %2643, %v2541
  %v2645 = vpop.permute.xlu0 %2644
  %2647 = vset.pattern.permute.xlu0 16
  %2648 = vperm.xlu0 %2647, %v2546
  %v2649 = vpop.permute.xlu0 %2648
  %2651 = vset.pattern.permute.xlu0 16
  %2652 = vperm.xlu0 %2651, %v2551
  %v2653 = vpop.permute.xlu0 %2652
  %2655 = vset.pattern.permute.xlu0 16
  %2656 = vperm.xlu0 %2655, %v2556
  %v2657 = vpop.permute.xlu0 %2656
  %2659 = vset.pattern.permute.xlu0 16
  %2660 = vperm.xlu0 %2659, %v2561
  %v2661 = vpop.permute.xlu0 %2660
  %2663 = vset.pattern.permute.xlu0 16
  %2664 = vperm.xlu0 %2663, %v2566
  %v2665 = vpop.permute.xlu0 %2664
  %2667 = vset.pattern.permute.xlu0 16
  %2668 = vperm.xlu0 %2667, %v2571
  %v2669 = vpop.permute.xlu0 %2668
  %2671 = vset.pattern.permute.xlu0 16
  %2672 = vperm.xlu0 %2671, %v2576
  %v2673 = vpop.permute.xlu0 %2672
  %v2675 = vlaneseq
  %v2676 = vshrl.u32 %v2675, 7
  %v2677 = vsub.s32 1, %v2676
  %v2678 = vrot.slane %v2627, %v2677
  %v2679 = vadd.f32 %v2645, %v2678
  %v2680 = vadd.f32 %v2649, %v2678
  %v2681 = vadd.f32 %v2653, %v2678
  %v2682 = vadd.f32 %v2657, %v2678
  %v2683 = vadd.f32 %v2661, %v2678
  %v2684 = vadd.f32 %v2665, %v2678
  %v2685 = vadd.f32 %v2669, %v2678
  %v2686 = vadd.f32 %v2673, %v2678
  %vm2687 = vcmp.gt.f32.partialorder %v2679, 0.0
  %vm2688 = vcmp.gt.f32.partialorder %v2680, 0.0
  %vm2689 = vcmp.gt.f32.partialorder %v2681, 0.0
  %vm2690 = vcmp.gt.f32.partialorder %v2682, 0.0
  %vm2691 = vcmp.gt.f32.partialorder %v2683, 0.0
  %vm2692 = vcmp.gt.f32.partialorder %v2684, 0.0
  %vm2693 = vcmp.gt.f32.partialorder %v2685, 0.0
  %vm2694 = vcmp.gt.f32.partialorder %v2686, 0.0
  %v2695 = vmul.f32 %v2679, 0.01
  %v2696 = vmul.f32 %v2680, 0.01
  %v2697 = vmul.f32 %v2681, 0.01
  %v2698 = vmul.f32 %v2682, 0.01
  %v2699 = vmul.f32 %v2683, 0.01
  %v2700 = vmul.f32 %v2684, 0.01
  %v2701 = vmul.f32 %v2685, 0.01
  %v2702 = vmul.f32 %v2686, 0.01
  %v2703 = vsel %vm2687, %v2679, %v2695
  %v2704 = vsel %vm2688, %v2680, %v2696
  %v2705 = vsel %vm2689, %v2681, %v2697
  %v2706 = vsel %vm2690, %v2682, %v2698
  %v2707 = vsel %vm2691, %v2683, %v2699
  %v2708 = vsel %vm2692, %v2684, %v2700
  %v2709 = vsel %vm2693, %v2685, %v2701
  %v2710 = vsel %vm2694, %v2686, %v2702
  %v2711 = vadd.f32 %v2703, %v23
  %v2712 = vadd.f32 %v2704, %v24
  %v2713 = vadd.f32 %v2705, %v25
  %v2714 = vadd.f32 %v2706, %v26
  %v2715 = vadd.f32 %v2707, %v27
  %v2716 = vadd.f32 %v2708, %v28
  %v2717 = vadd.f32 %v2709, %v29
  %v2718 = vadd.f32 %v2710, %v30
  %v2719 = vsel %vm297, %v2711, -inf
  %2720 = vmax.xlane.f32.xlu0 %v2719
  %v2721 = vpop.xlane.xlu0 %2720
  %v2722 = vsel %vm297, %v2712, -inf
  %2723 = vmax.xlane.f32.xlu0 %v2722
  %v2724 = vpop.xlane.xlu0 %2723
  %v2725 = vsel %vm297, %v2713, -inf
  %2726 = vmax.xlane.f32.xlu0 %v2725
  %v2727 = vpop.xlane.xlu0 %2726
  %v2728 = vsel %vm297, %v2714, -inf
  %2729 = vmax.xlane.f32.xlu0 %v2728
  %v2730 = vpop.xlane.xlu0 %2729
  %v2731 = vsel %vm297, %v2715, -inf
  %2732 = vmax.xlane.f32.xlu0 %v2731
  %v2733 = vpop.xlane.xlu0 %2732
  %v2734 = vsel %vm297, %v2716, -inf
  %2735 = vmax.xlane.f32.xlu0 %v2734
  %v2736 = vpop.xlane.xlu0 %2735
  %v2737 = vsel %vm297, %v2717, -inf
  %2738 = vmax.xlane.f32.xlu0 %v2737
  %v2739 = vpop.xlane.xlu0 %2738
  %v2740 = vsel %vm297, %v2718, -inf
  %2741 = vmax.xlane.f32.xlu0 %v2740
  %v2742 = vpop.xlane.xlu0 %2741
  %v2743 = vsub.f32 %v2711, %v2721
  %v2744 = vsub.f32 %v2712, %v2724
  %v2745 = vsub.f32 %v2713, %v2727
  %v2746 = vsub.f32 %v2714, %v2730
  %v2747 = vsub.f32 %v2715, %v2733
  %v2748 = vsub.f32 %v2716, %v2736
  %v2749 = vsub.f32 %v2717, %v2739
  %v2750 = vsub.f32 %v2718, %v2742
  %v2751 = vmul.f32 %v2743, 1.442695
  %v2752 = vpow.pop %v2751
  %v2753 = vmul.f32 %v2744, 1.442695
  %v2754 = vpow.pop %v2753
  %v2755 = vmul.f32 %v2745, 1.442695
  %v2756 = vpow.pop %v2755
  %v2757 = vmul.f32 %v2746, 1.442695
  %v2758 = vpow.pop %v2757
  %v2759 = vmul.f32 %v2747, 1.442695
  %v2760 = vpow.pop %v2759
  %v2761 = vmul.f32 %v2748, 1.442695
  %v2762 = vpow.pop %v2761
  %v2763 = vmul.f32 %v2749, 1.442695
  %v2764 = vpow.pop %v2763
  %v2765 = vmul.f32 %v2750, 1.442695
  %v2766 = vpow.pop %v2765
  %v2767 = vsel %vm297, %v2752, 0.0
  %2768 = vadd.xlane.f32.xlu0 %v2767
  %v2769 = vpop.xlane.xlu0 %2768
  %v2770 = vsel %vm297, %v2754, 0.0
  %2771 = vadd.xlane.f32.xlu0 %v2770
  %v2772 = vpop.xlane.xlu0 %2771
  %v2773 = vsel %vm297, %v2756, 0.0
  %2774 = vadd.xlane.f32.xlu0 %v2773
  %v2775 = vpop.xlane.xlu0 %2774
  %v2776 = vsel %vm297, %v2758, 0.0
  %2777 = vadd.xlane.f32.xlu0 %v2776
  %v2778 = vpop.xlane.xlu0 %2777
  %v2779 = vsel %vm297, %v2760, 0.0
  %2780 = vadd.xlane.f32.xlu0 %v2779
  %v2781 = vpop.xlane.xlu0 %2780
  %v2782 = vsel %vm297, %v2762, 0.0
  %2783 = vadd.xlane.f32.xlu0 %v2782
  %v2784 = vpop.xlane.xlu0 %2783
  %v2785 = vsel %vm297, %v2764, 0.0
  %2786 = vadd.xlane.f32.xlu0 %v2785
  %v2787 = vpop.xlane.xlu0 %2786
  %v2788 = vsel %vm297, %v2766, 0.0
  %2789 = vadd.xlane.f32.xlu0 %v2788
  %v2790 = vpop.xlane.xlu0 %2789
  %v2791 = vrcp.pop %v2769
  %v2792 = vrcp.pop %v2772
  %v2793 = vrcp.pop %v2775
  %v2794 = vrcp.pop %v2778
  %v2795 = vrcp.pop %v2781
  %v2796 = vrcp.pop %v2784
  %v2797 = vrcp.pop %v2787
  %v2798 = vrcp.pop %v2790
  %v2799 = vmul.f32 %v2752, %v2791
  %v2800 = vmul.f32 %v2754, %v2792
  %v2801 = vmul.f32 %v2756, %v2793
  %v2802 = vmul.f32 %v2758, %v2794
  %v2803 = vmul.f32 %v2760, %v2795
  %v2804 = vmul.f32 %v2762, %v2796
  %v2805 = vmul.f32 %v2764, %v2797
  %v2806 = vmul.f32 %v2766, %v2798
  %v2808 = vsel %vm297, %v2799, 0
  %v2811 = vsel %vm297, %v2800, 0
  %v2814 = vsel %vm297, %v2801, 0
  %v2817 = vsel %vm297, %v2802, 0
  %v2820 = vsel %vm297, %v2803, 0
  %v2823 = vsel %vm297, %v2804, 0
  %v2826 = vsel %vm297, %v2805, 0
  %v2829 = vsel %vm297, %v2806, 0
  %2831 = vmatprep.subr.mxu0 0.0
  %2832 = vmatpush1.msra.mxu0 %v2541
  %2833 = vmatprep.subr.mxu0 0.0
  %2834 = vmatpush1.msra.mxu0 %v2546
  %2835 = vmatprep.subr.mxu0 0.0
  %2836 = vmatpush1.msra.mxu0 %v2551
  %2837 = vmatprep.subr.mxu0 0.0
  %2838 = vmatpush1.msra.mxu0 %v2556
  %2839 = vmatprep.subr.mxu0 0.0
  %2840 = vmatpush1.msra.mxu0 %v2561
  %2841 = vmatprep.subr.mxu0 0.0
  %2842 = vmatpush1.msra.mxu0 %v2566
  %2843 = vmatprep.subr.mxu0 0.0
  %2844 = vmatpush1.msra.mxu0 %v2571
  %2845 = vmatprep.subr.mxu0 0.0
  %2846 = vmatpush1.msra.mxu0 %v2576
  %2847 = vmatprep.subr.mxu0 0.0
  %2848 = vmatpush1.msra.mxu0 0.0
  %2849 = vmatprep.subr.mxu0 0.0
  %2850 = vmatpush1.msra.mxu0 0.0
  %2851 = vmatprep.subr.mxu0 0.0
  %2852 = vmatpush1.msra.mxu0 0.0
  %2853 = vmatprep.subr.mxu0 0.0
  %2854 = vmatpush1.msra.mxu0 0.0
  %2855 = vmatprep.subr.mxu0 0.0
  %2856 = vmatpush1.msra.mxu0 0.0
  %2857 = vmatprep.subr.mxu0 0.0
  %2858 = vmatpush1.msra.mxu0 0.0
  %2859 = vmatprep.subr.mxu0 0.0
  %2860 = vmatpush1.msra.mxu0 0.0
  %2861 = vmatprep.subr.mxu0 0.0
  %2862 = vmatpush1.msra.mxu0 0.0
  %2863 = vmatprep.subr.mxu0 0.0
  %2864 = vmatpush1.msra.mxu0 0.0
  %2865 = vmatprep.subr.mxu0 0.0
  %2866 = vmatpush1.msra.mxu0 0.0
  %2867 = vmatprep.subr.mxu0 0.0
  %2868 = vmatpush1.msra.mxu0 0.0
  %2869 = vmatprep.subr.mxu0 0.0
  %2870 = vmatpush1.msra.mxu0 0.0
  %2871 = vmatprep.subr.mxu0 0.0
  %2872 = vmatpush1.msra.mxu0 0.0
  %2873 = vmatprep.subr.mxu0 0.0
  %2874 = vmatpush1.msra.mxu0 0.0
  %2875 = vmatprep.subr.mxu0 0.0
  %2876 = vmatpush1.msra.mxu0 0.0
  %2877 = vmatprep.subr.mxu0 0.0
  %2878 = vmatpush1.msra.mxu0 0.0
  %2879 = vmatprep.subr.mxu0 0.0
  %2880 = vmatpush1.msra.mxu0 0.0
  %2881 = vmatprep.subr.mxu0 0.0
  %2882 = vmatpush1.msra.mxu0 0.0
  %2883 = vmatprep.subr.mxu0 0.0
  %2884 = vmatpush1.msra.mxu0 0.0
  %2885 = vmatprep.subr.mxu0 0.0
  %2886 = vmatpush1.msra.mxu0 0.0
  %2887 = vmatprep.subr.mxu0 0.0
  %2888 = vmatpush1.msra.mxu0 0.0
  %2889 = vmatprep.subr.mxu0 0.0
  %2890 = vmatpush1.msra.mxu0 0.0
  %2891 = vmatprep.subr.mxu0 0.0
  %2892 = vmatpush1.msra.mxu0 0.0
  %2893 = vmatprep.subr.mxu0 0.0
  %2894 = vmatpush1.msra.mxu0 0.0
  %2895 = vmatprep.mubr.f32.mxu0 0.0
  %2896 = vmatmul.mubr.f32.gmra.mrb[0].mxu0 %v2808
  %v2897 = vpop.f32.mrb[0].mxu0
  %v2898 = vadd.f32 0.0, %v2897
  %v2899 = vpop.f32.mrb[0].mxu0
  %2900 = vmatprep.mubr.f32.mxu0 0.0
  %2901 = vmatmul.mubr.f32.gmra.mrb[0].mxu0 %v2811
  %v2902 = vpop.f32.mrb[0].mxu0
  %v2903 = vadd.f32 0.0, %v2902
  %v2904 = vpop.f32.mrb[0].mxu0
  %2905 = vmatprep.mubr.f32.mxu0 0.0
  %2906 = vmatmul.mubr.f32.gmra.mrb[0].mxu0 %v2814
  %v2907 = vpop.f32.mrb[0].mxu0
  %v2908 = vadd.f32 0.0, %v2907
  %v2909 = vpop.f32.mrb[0].mxu0
  %2910 = vmatprep.mubr.f32.mxu0 0.0
  %2911 = vmatmul.mubr.f32.gmra.mrb[0].mxu0 %v2817
  %v2912 = vpop.f32.mrb[0].mxu0
  %v2913 = vadd.f32 0.0, %v2912
  %v2914 = vpop.f32.mrb[0].mxu0
  %2915 = vmatprep.mubr.f32.mxu0 0.0
  %2916 = vmatmul.mubr.f32.gmra.mrb[0].mxu0 %v2820
  %v2917 = vpop.f32.mrb[0].mxu0
  %v2918 = vadd.f32 0.0, %v2917
  %v2919 = vpop.f32.mrb[0].mxu0
  %2920 = vmatprep.mubr.f32.mxu0 0.0
  %2921 = vmatmul.mubr.f32.gmra.mrb[0].mxu0 %v2823
  %v2922 = vpop.f32.mrb[0].mxu0
  %v2923 = vadd.f32 0.0, %v2922
  %v2924 = vpop.f32.mrb[0].mxu0
  %2925 = vmatprep.mubr.f32.mxu0 0.0
  %2926 = vmatmul.mubr.f32.gmra.mrb[0].mxu0 %v2826
  %v2927 = vpop.f32.mrb[0].mxu0
  %v2928 = vadd.f32 0.0, %v2927
  %v2929 = vpop.f32.mrb[0].mxu0
  %2930 = vmatprep.mubr.f32.mxu0 0.0
  %2931 = vmatmul.mubr.f32.gmra.mrb[0].mxu0 %v2829
  %v2932 = vpop.f32.mrb[0].mxu0
  %v2933 = vadd.f32 0.0, %v2932
  %v2934 = vpop.f32.mrb[0].mxu0
  %2935 = vdwg.mxu0
  %2936 = vst.msk [vmem:[%s6] sm:$0xff] %vm43, %v2898
  %2937 = vst.msk [vmem:[%s6 + $0x8] sm:$0xff] %vm43, %v2903
  %2938 = vst.msk [vmem:[%s6 + $0x10] sm:$0xff] %vm43, %v2908
  %2939 = vst.msk [vmem:[%s6 + $0x18] sm:$0xff] %vm43, %v2913
  %2940 = vst.msk [vmem:[%s6 + $0x20] sm:$0xff] %vm43, %v2918
  %2941 = vst.msk [vmem:[%s6 + $0x28] sm:$0xff] %vm43, %v2923
  %2942 = vst.msk [vmem:[%s6 + $0x30] sm:$0xff] %vm43, %v2928
  %2943 = vst.msk [vmem:[%s6 + $0x38] sm:$0xff] %vm43, %v2933
  // Predicated region
  $region26: #{gat_forward.1} parent=0 // pred_check
    _
  $region27: #{gat_forward.1} parent=0 // pred_check_branch
    %2945 = sbr.rel (0) target = $region29
  $region28: #{gat_forward.1} parent=0 // pred_region
    _
  $region29: #{gat_forward.1} parent=0 // pred_fallthru
    _
  // Predicated region
  $region30: #{gat_forward.1} parent=0 // pred_check
    _
  $region31: #{gat_forward.1} parent=0 // pred_check_branch
    %2947 = sbr.rel (0) target = $region33
  $region32: #{gat_forward.1} parent=0 // pred_region
    _
  $region33: #{gat_forward.1} parent=0 // pred_fallthru
    _

</llo_original>
